<compile_context>
chip_gen: v5e
topology: v5e:2x2
jax: 0.10.0
libtpu: 0.0.40
codegen_flags: <defaults>
</compile_context>

<pallas_src>
import functools
import math

import jax
import jax.numpy as jnp
from jax.experimental import pallas as pl
from jax.experimental.pallas import tpu as pltpu

_LN_EPS = 1e-6
_NEG_INF = -1e9
_VMEM_LIMIT = 32 * 1024 * 1024  # safe on v5e/v6e/v7x


def _layer_norm(x, gamma, beta):
    # biased-variance LayerNorm over last dim, eps=1e-6 (f32 statistics)
    mu = jnp.mean(x, axis=-1, keepdims=True)
    var = jnp.mean((x - mu) ** 2, axis=-1, keepdims=True)
    return (x - mu) * jax.lax.rsqrt(var + _LN_EPS) * gamma + beta


# ----------------- fused attention sublayer (LN+QKV+attn+out+residual) ------

def _attn_sublayer_kernel(x_ref, kv_ref, mask_ref, g_ref, b_ref,
                          wq_ref, bq_ref, wkv_ref, bkv_ref, wo_ref, bo_ref,
                          o_ref, attn_ref,
                          *, num_heads, scale, kv_from_query):
    x = x_ref[...]                                        # [S, D] f32 (residual)
    y = _layer_norm(x, g_ref[...], b_ref[...])            # pre-norm, f32
    y_bf = y.astype(jnp.bfloat16)

    # Q projection (bf16 inputs, f32 accumulation)
    q = jnp.dot(y_bf, wq_ref[...],
                preferred_element_type=jnp.float32) + bq_ref[...]     # [S, D]

    # fused K|V projection from a single [D, 2D] weight
    if kv_from_query:
        kv_src = y_bf                                     # self-attention
    else:
        kv_src = kv_ref[...].astype(jnp.bfloat16)         # encoder memory (no LN)
    kv = jnp.dot(kv_src, wkv_ref[...],
                 preferred_element_type=jnp.float32) + bkv_ref[...]   # [Skv, 2D]

    d_model = q.shape[-1]
    d_head = d_model // num_heads
    k = kv[:, :d_model]
    v = kv[:, d_model:]

    mask = mask_ref[...]                                  # [S, Skv], 1.0 = keep
    q_bf = q.astype(jnp.bfloat16)
    k_bf = k.astype(jnp.bfloat16)
    v_bf = v.astype(jnp.bfloat16)

    for h in range(num_heads):                            # static unroll over heads
        sl = slice(h * d_head, (h + 1) * d_head)
        # scores: contract head dim of both operands directly (no k.T copy)
        s = jax.lax.dot_general(
            q_bf[:, sl], k_bf[:, sl],
            dimension_numbers=(((1,), (1,)), ((), ())),
            preferred_element_type=jnp.float32) * scale    # [S, Skv] f32
        s = jnp.where(mask == 0.0, _NEG_INF, s)
        s = s - jnp.max(s, axis=-1, keepdims=True)
        p = jnp.exp(s)
        p = p * pl.reciprocal(jnp.sum(p, axis=-1, keepdims=True), approx=True)
        attn_ref[:, sl] = jnp.dot(p.astype(jnp.bfloat16), v_bf[:, sl],
                                  preferred_element_type=jnp.float32)

    out = jnp.dot(attn_ref[...].astype(jnp.bfloat16), wo_ref[...],
                  preferred_element_type=jnp.float32) + bo_ref[...]
    o_ref[...] = x + out                                  # fused residual add


def _attention_sublayer(x, kv, mask, ln_g, ln_b, ap, num_heads, *, kv_from_query):
    B, S, D = x.shape
    Skv = kv.shape[1]
    scale = 1.0 / math.sqrt(D // num_heads)

    kernel = functools.partial(_attn_sublayer_kernel, num_heads=num_heads,
                               scale=scale, kv_from_query=kv_from_query)

    flops = B * (2 * S * D * D            # Q projection
                 + 4 * Skv * D * D        # fused K|V projection
                 + 4 * S * Skv * D        # scores + PV over all heads
                 + 2 * S * D * D)         # output projection
    bytes_accessed = (4 * (2 * B * S * D + B * Skv * D + B * S * Skv)
                      + 2 * 4 * D * D)    # bf16 weights
    cost = pl.CostEstimate(flops=int(flops),
                           transcendentals=int(B * num_heads * S * Skv),
                           bytes_accessed=int(bytes_accessed))

    return pl.pallas_call(
        kernel,
        out_shape=jax.ShapeDtypeStruct((B, S, D), jnp.float32),
        grid=(B,),
        in_specs=[
            pl.BlockSpec((None, S, D), lambda b: (b, 0, 0)),             # x
            pl.BlockSpec((None, Skv, D), lambda b: (b, 0, 0)),           # kv source
            pl.BlockSpec((None, None, S, Skv), lambda b: (b, 0, 0, 0)),  # mask
            pl.BlockSpec((1, D), lambda b: (0, 0)),                      # ln gamma
            pl.BlockSpec((1, D), lambda b: (0, 0)),                      # ln beta
            pl.BlockSpec((D, D), lambda b: (0, 0)),                      # wq (bf16)
            pl.BlockSpec((1, D), lambda b: (0, 0)),                      # bq
            pl.BlockSpec((D, 2 * D), lambda b: (0, 0)),                  # wkv (bf16)
            pl.BlockSpec((1, 2 * D), lambda b: (0, 0)),                  # bkv
            pl.BlockSpec((D, D), lambda b: (0, 0)),                      # wo (bf16)
            pl.BlockSpec((1, D), lambda b: (0, 0)),                      # bo
        ],
        out_specs=pl.BlockSpec((None, S, D), lambda b: (b, 0, 0)),
        scratch_shapes=[pltpu.VMEM((S, D), jnp.float32)],                # attn out
        compiler_params=pltpu.CompilerParams(
            dimension_semantics=("parallel",),
            vmem_limit_bytes=_VMEM_LIMIT),
        cost_estimate=cost,
    )(x, kv, mask, ln_g, ln_b,
      ap["wq"], ap["bq"], ap["wkv"], ap["bkv"], ap["wo"], ap["bo"])


# ----------------------- fused LN + FFN + residual kernel -------------------

def _ffn_sublayer_kernel(x_ref, g_ref, b_ref, w1_ref, b1_ref, w2_ref, b2_ref,
                         o_ref):
    x = x_ref[...]                                        # [tm, D] f32 (residual)
    y = _layer_norm(x, g_ref[...], b_ref[...]).astype(jnp.bfloat16)
    h = jnp.dot(y, w1_ref[...],
                preferred_element_type=jnp.float32) + b1_ref[...]
    h = jnp.maximum(h, 0.0).astype(jnp.bfloat16)          # relu (dropout=identity)
    out = jnp.dot(h, w2_ref[...],
                  preferred_element_type=jnp.float32) + b2_ref[...]
    o_ref[...] = x + out                                  # fused residual add


def _pick_row_tile(m):
    for t in (512, 256, 128, 64, 32, 16, 8):
        if m % t == 0:
            return t
    return m


def _ffn_sublayer(x, ln_g, ln_b, fp):
    B, S, D = x.shape
    M = B * S
    F = fp["w1"].shape[1]
    tm = _pick_row_tile(M)
    x2 = x.reshape(M, D)

    cost = pl.CostEstimate(flops=int(4 * M * D * F), transcendentals=0,
                           bytes_accessed=int(4 * 2 * M * D + 2 * 2 * D * F))

    out = pl.pallas_call(
        _ffn_sublayer_kernel,
        out_shape=jax.ShapeDtypeStruct((M, D), jnp.float32),
        grid=(M // tm,),
        in_specs=[
            pl.BlockSpec((tm, D), lambda i: (i, 0)),        # x rows
            pl.BlockSpec((1, D), lambda i: (0, 0)),         # ln gamma
            pl.BlockSpec((1, D), lambda i: (0, 0)),         # ln beta
            pl.BlockSpec((D, F), lambda i: (0, 0)),         # w1 (bf16)
            pl.BlockSpec((1, F), lambda i: (0, 0)),         # b1
            pl.BlockSpec((F, D), lambda i: (0, 0)),         # w2 (bf16)
            pl.BlockSpec((1, D), lambda i: (0, 0)),         # b2
        ],
        out_specs=pl.BlockSpec((tm, D), lambda i: (i, 0)),
        compiler_params=pltpu.CompilerParams(
            dimension_semantics=("parallel",),
            vmem_limit_bytes=_VMEM_LIMIT),
        cost_estimate=cost,
    )(x2, ln_g, ln_b, fp["w1"], fp["b1"], fp["w2"], fp["b2"])
    return out.reshape(B, S, D)


# --------------------------- decoder layer composition ----------------------

def decoder_layer(x, memory, src_mask, tgt_mask, kp, num_heads):
    """x = x + self_attn(LN(x)); x = x + src_attn(LN(x), mem); x = x + ffn(LN(x))"""
    x = _attention_sublayer(x, x, tgt_mask, kp["ln0_g"], kp["ln0_b"],
                            kp["self_attn"], num_heads, kv_from_query=True)
    x = _attention_sublayer(x, memory, src_mask, kp["ln1_g"], kp["ln1_b"],
                            kp["src_attn"], num_heads, kv_from_query=False)
    return _ffn_sublayer(x, kp["ln2_g"], kp["ln2_b"], kp["ffn"])


# ------------------------------ parameter init ------------------------------

def _dense_init(key, fan_in, fan_out):
    lim = 1.0 / math.sqrt(fan_in)
    kw, kb = jax.random.split(key)
    w = jax.random.uniform(kw, (fan_in, fan_out), jnp.float32, -lim, lim)
    b = jax.random.uniform(kb, (fan_out,), jnp.float32, -lim, lim)
    return w, b


def init_params(key, d_model, d_ff):
    keys = jax.random.split(key, 10)

    def mha_params(k):
        ks = jax.random.split(k, 4)
        wq, bq = _dense_init(ks[0], d_model, d_model)
        wk, bk = _dense_init(ks[1], d_model, d_model)
        wv, bv = _dense_init(ks[2], d_model, d_model)
        wo, bo = _dense_init(ks[3], d_model, d_model)
        return dict(wq=wq, bq=bq, wk=wk, bk=bk, wv=wv, bv=bv, wo=wo, bo=bo)

    w1, b1 = _dense_init(keys[2], d_model, d_ff)
    w2, b2 = _dense_init(keys[3], d_ff, d_model)
    ones = jnp.ones((d_model,), jnp.float32)
    zeros = jnp.zeros((d_model,), jnp.float32)
    return dict(
        self_attn=mha_params(keys[0]),
        src_attn=mha_params(keys[1]),
        w1=w1, b1=b1, w2=w2, b2=b2,
        ln0_g=ones, ln0_b=zeros,
        ln1_g=ones, ln1_b=zeros,
        ln2_g=ones, ln2_b=zeros,
    )


def prepare_params(params, d_model):
    """Make kernel-ready params: bf16 matmul weights, fused K|V weight, 2D biases."""
    def prep_attn(p):
        return dict(
            wq=p["wq"].astype(jnp.bfloat16),
            bq=p["bq"].reshape(1, d_model),
            wkv=jnp.concatenate([p["wk"], p["wv"]], axis=1).astype(jnp.bfloat16),
            bkv=jnp.concatenate([p["bk"], p["bv"]]).reshape(1, 2 * d_model),
            wo=p["wo"].astype(jnp.bfloat16),
            bo=p["bo"].reshape(1, d_model),
        )

    d_ff = params["w1"].shape[1]
    return dict(
        self_attn=prep_attn(params["self_attn"]),
        src_attn=prep_attn(params["src_attn"]),
        ffn=dict(w1=params["w1"].astype(jnp.bfloat16),
                 b1=params["b1"].reshape(1, d_ff),
                 w2=params["w2"].astype(jnp.bfloat16),
                 b2=params["b2"].reshape(1, d_model)),
        ln0_g=params["ln0_g"].reshape(1, d_model),
        ln0_b=params["ln0_b"].reshape(1, d_model),
        ln1_g=params["ln1_g"].reshape(1, d_model),
        ln1_b=params["ln1_b"].reshape(1, d_model),
        ln2_g=params["ln2_g"].reshape(1, d_model),
        ln2_b=params["ln2_b"].reshape(1, d_model),
    )


# ---------------------------------- main -------------------------------------

if __name__ == "__main__":
    B, S, S_SRC, D, H, D_FF = 2, 8, 8, 32, 4, 64

    root = jax.random.PRNGKey(0)
    k_x, k_mem, k_p = jax.random.split(root, 3)

    x = jax.random.normal(k_x, (B, S, D), jnp.float32)
    memory = jax.random.normal(k_mem, (B, S_SRC, D), jnp.float32)

    # tgt mask: causal; src mask: all ones (no padding) — 1.0 keep / 0.0 mask
    tgt_mask = jnp.broadcast_to(
        jnp.tril(jnp.ones((S, S), jnp.float32))[None, None], (B, 1, S, S))
    src_mask = jnp.ones((B, 1, S, S_SRC), jnp.float32)

    params = init_params(k_p, D, D_FF)
    kparams = prepare_params(params, D)

    fwd = jax.jit(functools.partial(decoder_layer, num_heads=H))
    out = jax.block_until_ready(fwd(x, memory, src_mask, tgt_mask, kparams))

    assert out.shape == (B, S, D) and out.dtype == jnp.float32
    assert bool(jnp.all(jnp.isfinite(out)))
    print("KERNEL_OK")
</pallas_src>

<mosaic_0001>
module attributes {stable_mosaic.version = 11 : i64} {
  func.func @_ffn_sublayer_kernel(%arg0: i32, %arg1: memref<16x32xf32, #tpu.memory_space<vmem>>, %arg2: memref<1x32xf32, #tpu.memory_space<vmem>>, %arg3: memref<1x32xf32, #tpu.memory_space<vmem>>, %arg4: memref<32x64xbf16, #tpu.memory_space<vmem>>, %arg5: memref<1x64xf32, #tpu.memory_space<vmem>>, %arg6: memref<64x32xbf16, #tpu.memory_space<vmem>>, %arg7: memref<1x32xf32, #tpu.memory_space<vmem>>, %arg8: memref<16x32xf32, #tpu.memory_space<vmem>>) attributes {dimension_semantics = [#tpu.dimension_semantics<parallel>], iteration_bounds = array<i64: 1>, scalar_prefetch = 0 : i64, scratch_operands = 0 : i64, tpu.core_type = #tpu.core_type<tc>, window_params = [{transform_indices = @transform_0, window_bounds = array<i64: 16, 32>}, {pipeline_mode = #tpu.pipeline_mode<synchronous>, transform_indices = @transform_1, window_bounds = array<i64: 1, 32>}, {pipeline_mode = #tpu.pipeline_mode<synchronous>, transform_indices = @transform_2, window_bounds = array<i64: 1, 32>}, {pipeline_mode = #tpu.pipeline_mode<synchronous>, transform_indices = @transform_3, window_bounds = array<i64: 32, 64>}, {pipeline_mode = #tpu.pipeline_mode<synchronous>, transform_indices = @transform_4, window_bounds = array<i64: 1, 64>}, {pipeline_mode = #tpu.pipeline_mode<synchronous>, transform_indices = @transform_5, window_bounds = array<i64: 64, 32>}, {pipeline_mode = #tpu.pipeline_mode<synchronous>, transform_indices = @transform_6, window_bounds = array<i64: 1, 32>}, {transform_indices = @transform_7, window_bounds = array<i64: 16, 32>}]} {
    %c0 = arith.constant 0 : index
    %c0_0 = arith.constant 0 : index
    %0 = vector.load %arg1[%c0, %c0_0] : memref<16x32xf32, #tpu.memory_space<vmem>>, vector<16x32xf32>
    %c0_1 = arith.constant 0 : index
    %c0_2 = arith.constant 0 : index
    %1 = vector.load %arg2[%c0_1, %c0_2] : memref<1x32xf32, #tpu.memory_space<vmem>>, vector<1x32xf32>
    %c0_3 = arith.constant 0 : index
    %c0_4 = arith.constant 0 : index
    %2 = vector.load %arg3[%c0_3, %c0_4] : memref<1x32xf32, #tpu.memory_space<vmem>>, vector<1x32xf32>
    %cst = arith.constant dense<0.000000e+00> : vector<16xf32>
    %3 = vector.multi_reduction <add>, %0, %cst [1] : vector<16x32xf32> to vector<16xf32>
    %4 = vector.shape_cast %3 : vector<16xf32> to vector<16x1xf32>
    %cst_5 = arith.constant 3.200000e+01 : f32
    %5 = vector.broadcast %cst_5 : f32 to vector<16x1xf32>
    %6 = arith.divf %4, %5 : vector<16x1xf32>
    %7 = vector.broadcast %6 : vector<16x1xf32> to vector<16x32xf32>
    %8 = arith.subf %0, %7 : vector<16x32xf32>
    %9 = arith.mulf %8, %8 : vector<16x32xf32>
    %cst_6 = arith.constant dense<0.000000e+00> : vector<16xf32>
    %10 = vector.multi_reduction <add>, %9, %cst_6 [1] : vector<16x32xf32> to vector<16xf32>
    %11 = vector.shape_cast %10 : vector<16xf32> to vector<16x1xf32>
    %cst_7 = arith.constant 3.200000e+01 : f32
    %12 = vector.broadcast %cst_7 : f32 to vector<16x1xf32>
    %13 = arith.divf %11, %12 : vector<16x1xf32>
    %14 = vector.broadcast %6 : vector<16x1xf32> to vector<16x32xf32>
    %15 = arith.subf %0, %14 : vector<16x32xf32>
    %cst_8 = arith.constant 9.99999997E-7 : f32
    %16 = vector.broadcast %cst_8 : f32 to vector<16x1xf32>
    %17 = arith.addf %13, %16 : vector<16x1xf32>
    %18 = math.rsqrt %17 : vector<16x1xf32>
    %19 = vector.broadcast %18 : vector<16x1xf32> to vector<16x32xf32>
    %20 = arith.mulf %15, %19 : vector<16x32xf32>
    %21 = vector.broadcast %1 : vector<1x32xf32> to vector<16x32xf32>
    %22 = arith.mulf %20, %21 : vector<16x32xf32>
    %23 = vector.broadcast %2 : vector<1x32xf32> to vector<16x32xf32>
    %24 = arith.addf %22, %23 : vector<16x32xf32>
    %25 = arith.truncf %24 : vector<16x32xf32> to vector<16x32xbf16>
    %c0_9 = arith.constant 0 : index
    %c0_10 = arith.constant 0 : index
    %26 = vector.load %arg4[%c0_9, %c0_10] : memref<32x64xbf16, #tpu.memory_space<vmem>>, vector<32x64xbf16>
    %cst_11 = arith.constant dense<0.000000e+00> : vector<16x64xf32>
    %27 = tpu.matmul %25, %26, %cst_11 {dimension_numbers = #tpu.dot_dimension_numbers<[1], [0], [0], [1], [0, 0, 1, 1], [], []>} : vector<16x32xbf16>, vector<32x64xbf16>, vector<16x64xf32> -> vector<16x64xf32>
    %c0_12 = arith.constant 0 : index
    %c0_13 = arith.constant 0 : index
    %28 = vector.load %arg5[%c0_12, %c0_13] : memref<1x64xf32, #tpu.memory_space<vmem>>, vector<1x64xf32>
    %29 = vector.broadcast %28 : vector<1x64xf32> to vector<16x64xf32>
    %30 = arith.addf %27, %29 : vector<16x64xf32>
    %cst_14 = arith.constant 0.000000e+00 : f32
    %31 = vector.broadcast %cst_14 : f32 to vector<16x64xf32>
    %32 = arith.maximumf %30, %31 : vector<16x64xf32>
    %33 = arith.truncf %32 : vector<16x64xf32> to vector<16x64xbf16>
    %c0_15 = arith.constant 0 : index
    %c0_16 = arith.constant 0 : index
    %34 = vector.load %arg6[%c0_15, %c0_16] : memref<64x32xbf16, #tpu.memory_space<vmem>>, vector<64x32xbf16>
    %cst_17 = arith.constant dense<0.000000e+00> : vector<16x32xf32>
    %35 = tpu.matmul %33, %34, %cst_17 {dimension_numbers = #tpu.dot_dimension_numbers<[1], [0], [0], [1], [0, 0, 1, 1], [], []>} : vector<16x64xbf16>, vector<64x32xbf16>, vector<16x32xf32> -> vector<16x32xf32>
    %c0_18 = arith.constant 0 : index
    %c0_19 = arith.constant 0 : index
    %36 = vector.load %arg7[%c0_18, %c0_19] : memref<1x32xf32, #tpu.memory_space<vmem>>, vector<1x32xf32>
    %37 = vector.broadcast %36 : vector<1x32xf32> to vector<16x32xf32>
    %38 = arith.addf %35, %37 : vector<16x32xf32>
    %39 = arith.addf %0, %38 : vector<16x32xf32>
    %c0_20 = arith.constant 0 : index
    %c0_21 = arith.constant 0 : index
    %40 = vector.load %arg8[%c0_20, %c0_21] : memref<16x32xf32, #tpu.memory_space<vmem>>, vector<16x32xf32>
    tpu.vector_store %arg8[%c0_20, %c0_21], %39 {strides = array<i32>} : memref<16x32xf32, #tpu.memory_space<vmem>>, vector<16x32xf32>,
    return
  }
  func.func @transform_0(%arg0: i32) -> (i32, i32) {
    %c0_i32 = arith.constant 0 : i32
    %c0_i32_0 = arith.constant 0 : i32
    return %arg0, %c0_i32 : i32, i32
  }
  func.func @transform_1(%arg0: i32) -> (i32, i32) {
    %c0_i32 = arith.constant 0 : i32
    %c0_i32_0 = arith.constant 0 : i32
    %c0_i32_1 = arith.constant 0 : i32
    return %c0_i32, %c0_i32_0 : i32, i32
  }
  func.func @transform_2(%arg0: i32) -> (i32, i32) {
    %c0_i32 = arith.constant 0 : i32
    %c0_i32_0 = arith.constant 0 : i32
    %c0_i32_1 = arith.constant 0 : i32
    return %c0_i32, %c0_i32_0 : i32, i32
  }
  func.func @transform_3(%arg0: i32) -> (i32, i32) {
    %c0_i32 = arith.constant 0 : i32
    %c0_i32_0 = arith.constant 0 : i32
    %c0_i32_1 = arith.constant 0 : i32
    return %c0_i32, %c0_i32_0 : i32, i32
  }
  func.func @transform_4(%arg0: i32) -> (i32, i32) {
    %c0_i32 = arith.constant 0 : i32
    %c0_i32_0 = arith.constant 0 : i32
    %c0_i32_1 = arith.constant 0 : i32
    return %c0_i32, %c0_i32_0 : i32, i32
  }
  func.func @transform_5(%arg0: i32) -> (i32, i32) {
    %c0_i32 = arith.constant 0 : i32
    %c0_i32_0 = arith.constant 0 : i32
    %c0_i32_1 = arith.constant 0 : i32
    return %c0_i32, %c0_i32_0 : i32, i32
  }
  func.func @transform_6(%arg0: i32) -> (i32, i32) {
    %c0_i32 = arith.constant 0 : i32
    %c0_i32_0 = arith.constant 0 : i32
    %c0_i32_1 = arith.constant 0 : i32
    return %c0_i32, %c0_i32_0 : i32, i32
  }
  func.func @transform_7(%arg0: i32) -> (i32, i32) {
    %c0_i32 = arith.constant 0 : i32
    %c0_i32_0 = arith.constant 0 : i32
    return %arg0, %c0_i32 : i32, i32
  }
}

module attributes {stable_mosaic.version = 11 : i64} {
  func.func @_attn_sublayer_kernel(%arg0: i32, %arg1: memref<1x8x32xf32, #tpu.memory_space<vmem>>, %arg2: memref<1x8x32xf32, #tpu.memory_space<vmem>>, %arg3: memref<1x1x8x8xf32, #tpu.memory_space<vmem>>, %arg4: memref<1x32xf32, #tpu.memory_space<vmem>>, %arg5: memref<1x32xf32, #tpu.memory_space<vmem>>, %arg6: memref<32x32xbf16, #tpu.memory_space<vmem>>, %arg7: memref<1x32xf32, #tpu.memory_space<vmem>>, %arg8: memref<32x64xbf16, #tpu.memory_space<vmem>>, %arg9: memref<1x64xf32, #tpu.memory_space<vmem>>, %arg10: memref<32x32xbf16, #tpu.memory_space<vmem>>, %arg11: memref<1x32xf32, #tpu.memory_space<vmem>>, %arg12: memref<1x8x32xf32, #tpu.memory_space<vmem>>, %arg13: memref<8x32xf32, #tpu.memory_space<vmem>>) attributes {dimension_semantics = [#tpu.dimension_semantics<parallel>], iteration_bounds = array<i64: 2>, scalar_prefetch = 0 : i64, scratch_operands = 1 : i64, tpu.core_type = #tpu.core_type<tc>, window_params = [{transform_indices = @transform_0, window_bounds = array<i64: 1, 8, 32>}, {transform_indices = @transform_1, window_bounds = array<i64: 1, 8, 32>}, {transform_indices = @transform_2, window_bounds = array<i64: 1, 1, 8, 8>}, {pipeline_mode = #tpu.pipeline_mode<synchronous>, transform_indices = @transform_3, window_bounds = array<i64: 1, 32>}, {pipeline_mode = #tpu.pipeline_mode<synchronous>, transform_indices = @transform_4, window_bounds = array<i64: 1, 32>}, {pipeline_mode = #tpu.pipeline_mode<synchronous>, transform_indices = @transform_5, window_bounds = array<i64: 32, 32>}, {pipeline_mode = #tpu.pipeline_mode<synchronous>, transform_indices = @transform_6, window_bounds = array<i64: 1, 32>}, {pipeline_mode = #tpu.pipeline_mode<synchronous>, transform_indices = @transform_7, window_bounds = array<i64: 32, 64>}, {pipeline_mode = #tpu.pipeline_mode<synchronous>, transform_indices = @transform_8, window_bounds = array<i64: 1, 64>}, {pipeline_mode = #tpu.pipeline_mode<synchronous>, transform_indices = @transform_9, window_bounds = array<i64: 32, 32>}, {pipeline_mode = #tpu.pipeline_mode<synchronous>, transform_indices = @transform_10, window_bounds = array<i64: 1, 32>}, {transform_indices = @transform_11, window_bounds = array<i64: 1, 8, 32>}]} {
    %c0 = arith.constant 0 : index
    %c0_0 = arith.constant 0 : index
    %c0_1 = arith.constant 0 : index
    %0 = vector.load %arg1[%c0, %c0_0, %c0_1] : memref<1x8x32xf32, #tpu.memory_space<vmem>>, vector<1x8x32xf32>
    %1 = vector.shape_cast %0 : vector<1x8x32xf32> to vector<8x32xf32>
    %c0_2 = arith.constant 0 : index
    %c0_3 = arith.constant 0 : index
    %2 = vector.load %arg4[%c0_2, %c0_3] : memref<1x32xf32, #tpu.memory_space<vmem>>, vector<1x32xf32>
    %c0_4 = arith.constant 0 : index
    %c0_5 = arith.constant 0 : index
    %3 = vector.load %arg5[%c0_4, %c0_5] : memref<1x32xf32, #tpu.memory_space<vmem>>, vector<1x32xf32>
    %cst = arith.constant dense<0.000000e+00> : vector<8xf32>
    %4 = vector.multi_reduction <add>, %1, %cst [1] : vector<8x32xf32> to vector<8xf32>
    %5 = vector.shape_cast %4 : vector<8xf32> to vector<8x1xf32>
    %cst_6 = arith.constant 3.200000e+01 : f32
    %6 = vector.broadcast %cst_6 : f32 to vector<8x1xf32>
    %7 = arith.divf %5, %6 : vector<8x1xf32>
    %8 = vector.broadcast %7 : vector<8x1xf32> to vector<8x32xf32>
    %9 = arith.subf %1, %8 : vector<8x32xf32>
    %10 = arith.mulf %9, %9 : vector<8x32xf32>
    %cst_7 = arith.constant dense<0.000000e+00> : vector<8xf32>
    %11 = vector.multi_reduction <add>, %10, %cst_7 [1] : vector<8x32xf32> to vector<8xf32>
    %12 = vector.shape_cast %11 : vector<8xf32> to vector<8x1xf32>
    %cst_8 = arith.constant 3.200000e+01 : f32
    %13 = vector.broadcast %cst_8 : f32 to vector<8x1xf32>
    %14 = arith.divf %12, %13 : vector<8x1xf32>
    %15 = vector.broadcast %7 : vector<8x1xf32> to vector<8x32xf32>
    %16 = arith.subf %1, %15 : vector<8x32xf32>
    %cst_9 = arith.constant 9.99999997E-7 : f32
    %17 = vector.broadcast %cst_9 : f32 to vector<8x1xf32>
    %18 = arith.addf %14, %17 : vector<8x1xf32>
    %19 = math.rsqrt %18 : vector<8x1xf32>
    %20 = vector.broadcast %19 : vector<8x1xf32> to vector<8x32xf32>
    %21 = arith.mulf %16, %20 : vector<8x32xf32>
    %22 = vector.broadcast %2 : vector<1x32xf32> to vector<8x32xf32>
    %23 = arith.mulf %21, %22 : vector<8x32xf32>
    %24 = vector.broadcast %3 : vector<1x32xf32> to vector<8x32xf32>
    %25 = arith.addf %23, %24 : vector<8x32xf32>
    %26 = arith.truncf %25 : vector<8x32xf32> to vector<8x32xbf16>
    %c0_10 = arith.constant 0 : index
    %c0_11 = arith.constant 0 : index
    %27 = vector.load %arg6[%c0_10, %c0_11] : memref<32x32xbf16, #tpu.memory_space<vmem>>, vector<32x32xbf16>
    %cst_12 = arith.constant dense<0.000000e+00> : vector<8x32xf32>
    %28 = tpu.matmul %26, %27, %cst_12 {dimension_numbers = #tpu.dot_dimension_numbers<[1], [0], [0], [1], [0, 0, 1, 1], [], []>} : vector<8x32xbf16>, vector<32x32xbf16>, vector<8x32xf32> -> vector<8x32xf32>
    %c0_13 = arith.constant 0 : index
    %c0_14 = arith.constant 0 : index
    %29 = vector.load %arg7[%c0_13, %c0_14] : memref<1x32xf32, #tpu.memory_space<vmem>>, vector<1x32xf32>
    %30 = vector.broadcast %29 : vector<1x32xf32> to vector<8x32xf32>
    %31 = arith.addf %28, %30 : vector<8x32xf32>
    %c0_15 = arith.constant 0 : index
    %c0_16 = arith.constant 0 : index
    %32 = vector.load %arg8[%c0_15, %c0_16] : memref<32x64xbf16, #tpu.memory_space<vmem>>, vector<32x64xbf16>
    %cst_17 = arith.constant dense<0.000000e+00> : vector<8x64xf32>
    %33 = tpu.matmul %26, %32, %cst_17 {dimension_numbers = #tpu.dot_dimension_numbers<[1], [0], [0], [1], [0, 0, 1, 1], [], []>} : vector<8x32xbf16>, vector<32x64xbf16>, vector<8x64xf32> -> vector<8x64xf32>
    %c0_18 = arith.constant 0 : index
    %c0_19 = arith.constant 0 : index
    %34 = vector.load %arg9[%c0_18, %c0_19] : memref<1x64xf32, #tpu.memory_space<vmem>>, vector<1x64xf32>
    %35 = vector.broadcast %34 : vector<1x64xf32> to vector<8x64xf32>
    %36 = arith.addf %33, %35 : vector<8x64xf32>
    %37 = vector.extract_strided_slice %36 {offsets = [0, 0], sizes = [8, 32], strides = [1, 1]} : vector<8x64xf32> to vector<8x32xf32>
    %38 = vector.extract_strided_slice %36 {offsets = [0, 32], sizes = [8, 32], strides = [1, 1]} : vector<8x64xf32> to vector<8x32xf32>
    %c0_20 = arith.constant 0 : index
    %c0_21 = arith.constant 0 : index
    %c0_22 = arith.constant 0 : index
    %c0_23 = arith.constant 0 : index
    %39 = vector.load %arg3[%c0_20, %c0_21, %c0_22, %c0_23] : memref<1x1x8x8xf32, #tpu.memory_space<vmem>>, vector<1x1x8x8xf32>
    %40 = vector.shape_cast %39 : vector<1x1x8x8xf32> to vector<8x8xf32>
    %41 = arith.truncf %31 : vector<8x32xf32> to vector<8x32xbf16>
    %42 = arith.truncf %37 : vector<8x32xf32> to vector<8x32xbf16>
    %43 = arith.truncf %38 : vector<8x32xf32> to vector<8x32xbf16>
    %44 = vector.extract_strided_slice %41 {offsets = [0, 0], sizes = [8, 8], strides = [1, 1]} : vector<8x32xbf16> to vector<8x8xbf16>
    %45 = vector.extract_strided_slice %42 {offsets = [0, 0], sizes = [8, 8], strides = [1, 1]} : vector<8x32xbf16> to vector<8x8xbf16>
    %cst_24 = arith.constant dense<0.000000e+00> : vector<8x8xf32>
    %46 = tpu.matmul %44, %45, %cst_24 {dimension_numbers = #tpu.dot_dimension_numbers<[1], [1], [0], [0], [0, 0, 1, 0], [], []>} : vector<8x8xbf16>, vector<8x8xbf16>, vector<8x8xf32> -> vector<8x8xf32>
    %cst_25 = arith.constant 0.353553385 : f32
    %47 = vector.broadcast %cst_25 : f32 to vector<8x8xf32>
    %48 = arith.mulf %46, %47 : vector<8x8xf32>
    %cst_26 = arith.constant 0.000000e+00 : f32
    %49 = vector.broadcast %cst_26 : f32 to vector<8x8xf32>
    %50 = arith.cmpf oeq, %40, %49 : vector<8x8xf32>
    %cst_27 = arith.constant -1.000000e+09 : f32
    %51 = vector.broadcast %cst_27 : f32 to vector<8x8xf32>
    %52 = arith.select %50, %51, %48 : vector<8x8xi1>, vector<8x8xf32>
    %cst_28 = arith.constant dense<0xFF800000> : vector<8xf32>
    %53 = vector.multi_reduction <maximumf>, %52, %cst_28 [1] : vector<8x8xf32> to vector<8xf32>
    %54 = vector.shape_cast %53 : vector<8xf32> to vector<8x1xf32>
    %55 = vector.broadcast %54 : vector<8x1xf32> to vector<8x8xf32>
    %56 = arith.subf %52, %55 : vector<8x8xf32>
    %57 = math.exp %56 : vector<8x8xf32>
    %cst_29 = arith.constant dense<0.000000e+00> : vector<8xf32>
    %58 = vector.multi_reduction <add>, %57, %cst_29 [1] : vector<8x8xf32> to vector<8xf32>
    %59 = vector.shape_cast %58 : vector<8xf32> to vector<8x1xf32>
    %60 = tpu.reciprocal %59 {approx = true} : vector<8x1xf32> -> vector<8x1xf32>
    %61 = vector.broadcast %60 : vector<8x1xf32> to vector<8x8xf32>
    %62 = arith.mulf %57, %61 : vector<8x8xf32>
    %63 = arith.truncf %62 : vector<8x8xf32> to vector<8x8xbf16>
    %64 = vector.extract_strided_slice %43 {offsets = [0, 0], sizes = [8, 8], strides = [1, 1]} : vector<8x32xbf16> to vector<8x8xbf16>
    %cst_30 = arith.constant dense<0.000000e+00> : vector<8x8xf32>
    %65 = tpu.matmul %63, %64, %cst_30 {dimension_numbers = #tpu.dot_dimension_numbers<[1], [0], [0], [1], [0, 0, 1, 1], [], []>} : vector<8x8xbf16>, vector<8x8xbf16>, vector<8x8xf32> -> vector<8x8xf32>
    %c0_31 = arith.constant 0 : index
    %c0_32 = arith.constant 0 : index
    %66 = vector.load %arg13[%c0_31, %c0_32] : memref<8x32xf32, #tpu.memory_space<vmem>>, vector<8x8xf32>
    tpu.vector_store %arg13[%c0_31, %c0_32], %65 {strides = array<i32>} : memref<8x32xf32, #tpu.memory_space<vmem>>, vector<8x8xf32>,
    %67 = vector.extract_strided_slice %41 {offsets = [0, 8], sizes = [8, 8], strides = [1, 1]} : vector<8x32xbf16> to vector<8x8xbf16>
    %68 = vector.extract_strided_slice %42 {offsets = [0, 8], sizes = [8, 8], strides = [1, 1]} : vector<8x32xbf16> to vector<8x8xbf16>
    %cst_33 = arith.constant dense<0.000000e+00> : vector<8x8xf32>
    %69 = tpu.matmul %67, %68, %cst_33 {dimension_numbers = #tpu.dot_dimension_numbers<[1], [1], [0], [0], [0, 0, 1, 0], [], []>} : vector<8x8xbf16>, vector<8x8xbf16>, vector<8x8xf32> -> vector<8x8xf32>
    %cst_34 = arith.constant 0.353553385 : f32
    %70 = vector.broadcast %cst_34 : f32 to vector<8x8xf32>
    %71 = arith.mulf %69, %70 : vector<8x8xf32>
    %cst_35 = arith.constant 0.000000e+00 : f32
    %72 = vector.broadcast %cst_35 : f32 to vector<8x8xf32>
    %73 = arith.cmpf oeq, %40, %72 : vector<8x8xf32>
    %cst_36 = arith.constant -1.000000e+09 : f32
    %74 = vector.broadcast %cst_36 : f32 to vector<8x8xf32>
    %75 = arith.select %73, %74, %71 : vector<8x8xi1>, vector<8x8xf32>
    %cst_37 = arith.constant dense<0xFF800000> : vector<8xf32>
    %76 = vector.multi_reduction <maximumf>, %75, %cst_37 [1] : vector<8x8xf32> to vector<8xf32>
    %77 = vector.shape_cast %76 : vector<8xf32> to vector<8x1xf32>
    %78 = vector.broadcast %77 : vector<8x1xf32> to vector<8x8xf32>
    %79 = arith.subf %75, %78 : vector<8x8xf32>
    %80 = math.exp %79 : vector<8x8xf32>
    %cst_38 = arith.constant dense<0.000000e+00> : vector<8xf32>
    %81 = vector.multi_reduction <add>, %80, %cst_38 [1] : vector<8x8xf32> to vector<8xf32>
    %82 = vector.shape_cast %81 : vector<8xf32> to vector<8x1xf32>
    %83 = tpu.reciprocal %82 {approx = true} : vector<8x1xf32> -> vector<8x1xf32>
    %84 = vector.broadcast %83 : vector<8x1xf32> to vector<8x8xf32>
    %85 = arith.mulf %80, %84 : vector<8x8xf32>
    %86 = arith.truncf %85 : vector<8x8xf32> to vector<8x8xbf16>
    %87 = vector.extract_strided_slice %43 {offsets = [0, 8], sizes = [8, 8], strides = [1, 1]} : vector<8x32xbf16> to vector<8x8xbf16>
    %cst_39 = arith.constant dense<0.000000e+00> : vector<8x8xf32>
    %88 = tpu.matmul %86, %87, %cst_39 {dimension_numbers = #tpu.dot_dimension_numbers<[1], [0], [0], [1], [0, 0, 1, 1], [], []>} : vector<8x8xbf16>, vector<8x8xbf16>, vector<8x8xf32> -> vector<8x8xf32>
    %c0_40 = arith.constant 0 : index
    %c8 = arith.constant 8 : index
    %89 = vector.load %arg13[%c0_40, %c8] : memref<8x32xf32, #tpu.memory_space<vmem>>, vector<8x8xf32>
    tpu.vector_store %arg13[%c0_40, %c8], %88 {strides = array<i32>} : memref<8x32xf32, #tpu.memory_space<vmem>>, vector<8x8xf32>,
    %90 = vector.extract_strided_slice %41 {offsets = [0, 16], sizes = [8, 8], strides = [1, 1]} : vector<8x32xbf16> to vector<8x8xbf16>
    %91 = vector.extract_strided_slice %42 {offsets = [0, 16], sizes = [8, 8], strides = [1, 1]} : vector<8x32xbf16> to vector<8x8xbf16>
    %cst_41 = arith.constant dense<0.000000e+00> : vector<8x8xf32>
    %92 = tpu.matmul %90, %91, %cst_41 {dimension_numbers = #tpu.dot_dimension_numbers<[1], [1], [0], [0], [0, 0, 1, 0], [], []>} : vector<8x8xbf16>, vector<8x8xbf16>, vector<8x8xf32> -> vector<8x8xf32>
    %cst_42 = arith.constant 0.353553385 : f32
    %93 = vector.broadcast %cst_42 : f32 to vector<8x8xf32>
    %94 = arith.mulf %92, %93 : vector<8x8xf32>
    %cst_43 = arith.constant 0.000000e+00 : f32
    %95 = vector.broadcast %cst_43 : f32 to vector<8x8xf32>
    %96 = arith.cmpf oeq, %40, %95 : vector<8x8xf32>
    %cst_44 = arith.constant -1.000000e+09 : f32
    %97 = vector.broadcast %cst_44 : f32 to vector<8x8xf32>
    %98 = arith.select %96, %97, %94 : vector<8x8xi1>, vector<8x8xf32>
    %cst_45 = arith.constant dense<0xFF800000> : vector<8xf32>
    %99 = vector.multi_reduction <maximumf>, %98, %cst_45 [1] : vector<8x8xf32> to vector<8xf32>
    %100 = vector.shape_cast %99 : vector<8xf32> to vector<8x1xf32>
    %101 = vector.broadcast %100 : vector<8x1xf32> to vector<8x8xf32>
    %102 = arith.subf %98, %101 : vector<8x8xf32>
    %103 = math.exp %102 : vector<8x8xf32>
    %cst_46 = arith.constant dense<0.000000e+00> : vector<8xf32>
    %104 = vector.multi_reduction <add>, %103, %cst_46 [1] : vector<8x8xf32> to vector<8xf32>
    %105 = vector.shape_cast %104 : vector<8xf32> to vector<8x1xf32>
    %106 = tpu.reciprocal %105 {approx = true} : vector<8x1xf32> -> vector<8x1xf32>
    %107 = vector.broadcast %106 : vector<8x1xf32> to vector<8x8xf32>
    %108 = arith.mulf %103, %107 : vector<8x8xf32>
    %109 = arith.truncf %108 : vector<8x8xf32> to vector<8x8xbf16>
    %110 = vector.extract_strided_slice %43 {offsets = [0, 16], sizes = [8, 8], strides = [1, 1]} : vector<8x32xbf16> to vector<8x8xbf16>
    %cst_47 = arith.constant dense<0.000000e+00> : vector<8x8xf32>
    %111 = tpu.matmul %109, %110, %cst_47 {dimension_numbers = #tpu.dot_dimension_numbers<[1], [0], [0], [1], [0, 0, 1, 1], [], []>} : vector<8x8xbf16>, vector<8x8xbf16>, vector<8x8xf32> -> vector<8x8xf32>
    %c0_48 = arith.constant 0 : index
    %c16 = arith.constant 16 : index
    %112 = vector.load %arg13[%c0_48, %c16] : memref<8x32xf32, #tpu.memory_space<vmem>>, vector<8x8xf32>
    tpu.vector_store %arg13[%c0_48, %c16], %111 {strides = array<i32>} : memref<8x32xf32, #tpu.memory_space<vmem>>, vector<8x8xf32>,
    %113 = vector.extract_strided_slice %41 {offsets = [0, 24], sizes = [8, 8], strides = [1, 1]} : vector<8x32xbf16> to vector<8x8xbf16>
    %114 = vector.extract_strided_slice %42 {offsets = [0, 24], sizes = [8, 8], strides = [1, 1]} : vector<8x32xbf16> to vector<8x8xbf16>
    %cst_49 = arith.constant dense<0.000000e+00> : vector<8x8xf32>
    %115 = tpu.matmul %113, %114, %cst_49 {dimension_numbers = #tpu.dot_dimension_numbers<[1], [1], [0], [0], [0, 0, 1, 0], [], []>} : vector<8x8xbf16>, vector<8x8xbf16>, vector<8x8xf32> -> vector<8x8xf32>
    %cst_50 = arith.constant 0.353553385 : f32
    %116 = vector.broadcast %cst_50 : f32 to vector<8x8xf32>
    %117 = arith.mulf %115, %116 : vector<8x8xf32>
    %cst_51 = arith.constant 0.000000e+00 : f32
    %118 = vector.broadcast %cst_51 : f32 to vector<8x8xf32>
    %119 = arith.cmpf oeq, %40, %118 : vector<8x8xf32>
    %cst_52 = arith.constant -1.000000e+09 : f32
    %120 = vector.broadcast %cst_52 : f32 to vector<8x8xf32>
    %121 = arith.select %119, %120, %117 : vector<8x8xi1>, vector<8x8xf32>
    %cst_53 = arith.constant dense<0xFF800000> : vector<8xf32>
    %122 = vector.multi_reduction <maximumf>, %121, %cst_53 [1] : vector<8x8xf32> to vector<8xf32>
    %123 = vector.shape_cast %122 : vector<8xf32> to vector<8x1xf32>
    %124 = vector.broadcast %123 : vector<8x1xf32> to vector<8x8xf32>
    %125 = arith.subf %121, %124 : vector<8x8xf32>
    %126 = math.exp %125 : vector<8x8xf32>
    %cst_54 = arith.constant dense<0.000000e+00> : vector<8xf32>
    %127 = vector.multi_reduction <add>, %126, %cst_54 [1] : vector<8x8xf32> to vector<8xf32>
    %128 = vector.shape_cast %127 : vector<8xf32> to vector<8x1xf32>
    %129 = tpu.reciprocal %128 {approx = true} : vector<8x1xf32> -> vector<8x1xf32>
    %130 = vector.broadcast %129 : vector<8x1xf32> to vector<8x8xf32>
    %131 = arith.mulf %126, %130 : vector<8x8xf32>
    %132 = arith.truncf %131 : vector<8x8xf32> to vector<8x8xbf16>
    %133 = vector.extract_strided_slice %43 {offsets = [0, 24], sizes = [8, 8], strides = [1, 1]} : vector<8x32xbf16> to vector<8x8xbf16>
    %cst_55 = arith.constant dense<0.000000e+00> : vector<8x8xf32>
    %134 = tpu.matmul %132, %133, %cst_55 {dimension_numbers = #tpu.dot_dimension_numbers<[1], [0], [0], [1], [0, 0, 1, 1], [], []>} : vector<8x8xbf16>, vector<8x8xbf16>, vector<8x8xf32> -> vector<8x8xf32>
    %c0_56 = arith.constant 0 : index
    %c24 = arith.constant 24 : index
    %135 = vector.load %arg13[%c0_56, %c24] : memref<8x32xf32, #tpu.memory_space<vmem>>, vector<8x8xf32>
    tpu.vector_store %arg13[%c0_56, %c24], %134 {strides = array<i32>} : memref<8x32xf32, #tpu.memory_space<vmem>>, vector<8x8xf32>,
    %c0_57 = arith.constant 0 : index
    %c0_58 = arith.constant 0 : index
    %136 = vector.load %arg13[%c0_57, %c0_58] : memref<8x32xf32, #tpu.memory_space<vmem>>, vector<8x32xf32>
    %137 = arith.truncf %136 : vector<8x32xf32> to vector<8x32xbf16>
    %c0_59 = arith.constant 0 : index
    %c0_60 = arith.constant 0 : index
    %138 = vector.load %arg10[%c0_59, %c0_60] : memref<32x32xbf16, #tpu.memory_space<vmem>>, vector<32x32xbf16>
    %cst_61 = arith.constant dense<0.000000e+00> : vector<8x32xf32>
    %139 = tpu.matmul %137, %138, %cst_61 {dimension_numbers = #tpu.dot_dimension_numbers<[1], [0], [0], [1], [0, 0, 1, 1], [], []>} : vector<8x32xbf16>, vector<32x32xbf16>, vector<8x32xf32> -> vector<8x32xf32>
    %c0_62 = arith.constant 0 : index
    %c0_63 = arith.constant 0 : index
    %140 = vector.load %arg11[%c0_62, %c0_63] : memref<1x32xf32, #tpu.memory_space<vmem>>, vector<1x32xf32>
    %141 = vector.broadcast %140 : vector<1x32xf32> to vector<8x32xf32>
    %142 = arith.addf %139, %141 : vector<8x32xf32>
    %143 = arith.addf %1, %142 : vector<8x32xf32>
    %c0_64 = arith.constant 0 : index
    %c0_65 = arith.constant 0 : index
    %c0_66 = arith.constant 0 : index
    %144 = vector.load %arg12[%c0_64, %c0_65, %c0_66] : memref<1x8x32xf32, #tpu.memory_space<vmem>>, vector<1x8x32xf32>
    %145 = vector.shape_cast %144 : vector<1x8x32xf32> to vector<8x32xf32>
    %146 = vector.shape_cast %143 : vector<8x32xf32> to vector<1x8x32xf32>
    tpu.vector_store %arg12[%c0_64, %c0_65, %c0_66], %146 {strides = array<i32>} : memref<1x8x32xf32, #tpu.memory_space<vmem>>, vector<1x8x32xf32>,
    return
  }
  func.func @transform_0(%arg0: i32) -> (i32, i32, i32) {
    %c0_i32 = arith.constant 0 : i32
    %c0_i32_0 = arith.constant 0 : i32
    %c0_i32_1 = arith.constant 0 : i32
    return %arg0, %c0_i32, %c0_i32_0 : i32, i32, i32
  }
  func.func @transform_1(%arg0: i32) -> (i32, i32, i32) {
    %c0_i32 = arith.constant 0 : i32
    %c0_i32_0 = arith.constant 0 : i32
    %c0_i32_1 = arith.constant 0 : i32
    return %arg0, %c0_i32, %c0_i32_0 : i32, i32, i32
  }
  func.func @transform_2(%arg0: i32) -> (i32, i32, i32, i32) {
    %c0_i32 = arith.constant 0 : i32
    %c0_i32_0 = arith.constant 0 : i32
    %c0_i32_1 = arith.constant 0 : i32
    %c0_i32_2 = arith.constant 0 : i32
    return %arg0, %c0_i32, %c0_i32_0, %c0_i32_1 : i32, i32, i32, i32
  }
  func.func @transform_3(%arg0: i32) -> (i32, i32) {
    %c0_i32 = arith.constant 0 : i32
    %c0_i32_0 = arith.constant 0 : i32
    %c0_i32_1 = arith.constant 0 : i32
    return %c0_i32, %c0_i32_0 : i32, i32
  }
  func.func @transform_4(%arg0: i32) -> (i32, i32) {
    %c0_i32 = arith.constant 0 : i32
    %c0_i32_0 = arith.constant 0 : i32
    %c0_i32_1 = arith.constant 0 : i32
    return %c0_i32, %c0_i32_0 : i32, i32
  }
  func.func @transform_5(%arg0: i32) -> (i32, i32) {
    %c0_i32 = arith.constant 0 : i32
    %c0_i32_0 = arith.constant 0 : i32
    %c0_i32_1 = arith.constant 0 : i32
    return %c0_i32, %c0_i32_0 : i32, i32
  }
  func.func @transform_6(%arg0: i32) -> (i32, i32) {
    %c0_i32 = arith.constant 0 : i32
    %c0_i32_0 = arith.constant 0 : i32
    %c0_i32_1 = arith.constant 0 : i32
    return %c0_i32, %c0_i32_0 : i32, i32
  }
  func.func @transform_7(%arg0: i32) -> (i32, i32) {
    %c0_i32 = arith.constant 0 : i32
    %c0_i32_0 = arith.constant 0 : i32
    %c0_i32_1 = arith.constant 0 : i32
    return %c0_i32, %c0_i32_0 : i32, i32
  }
  func.func @transform_8(%arg0: i32) -> (i32, i32) {
    %c0_i32 = arith.constant 0 : i32
    %c0_i32_0 = arith.constant 0 : i32
    %c0_i32_1 = arith.constant 0 : i32
    return %c0_i32, %c0_i32_0 : i32, i32
  }
  func.func @transform_9(%arg0: i32) -> (i32, i32) {
    %c0_i32 = arith.constant 0 : i32
    %c0_i32_0 = arith.constant 0 : i32
    %c0_i32_1 = arith.constant 0 : i32
    return %c0_i32, %c0_i32_0 : i32, i32
  }
  func.func @transform_10(%arg0: i32) -> (i32, i32) {
    %c0_i32 = arith.constant 0 : i32
    %c0_i32_0 = arith.constant 0 : i32
    %c0_i32_1 = arith.constant 0 : i32
    return %c0_i32, %c0_i32_0 : i32, i32
  }
  func.func @transform_11(%arg0: i32) -> (i32, i32, i32) {
    %c0_i32 = arith.constant 0 : i32
    %c0_i32_0 = arith.constant 0 : i32
    %c0_i32_1 = arith.constant 0 : i32
    return %arg0, %c0_i32, %c0_i32_0 : i32, i32, i32
  }
}

module attributes {stable_mosaic.version = 11 : i64} {
  func.func @_attn_sublayer_kernel(%arg0: i32, %arg1: memref<1x8x32xf32, #tpu.memory_space<vmem>>, %arg2: memref<1x8x32xf32, #tpu.memory_space<vmem>>, %arg3: memref<1x1x8x8xf32, #tpu.memory_space<vmem>>, %arg4: memref<1x32xf32, #tpu.memory_space<vmem>>, %arg5: memref<1x32xf32, #tpu.memory_space<vmem>>, %arg6: memref<32x32xbf16, #tpu.memory_space<vmem>>, %arg7: memref<1x32xf32, #tpu.memory_space<vmem>>, %arg8: memref<32x64xbf16, #tpu.memory_space<vmem>>, %arg9: memref<1x64xf32, #tpu.memory_space<vmem>>, %arg10: memref<32x32xbf16, #tpu.memory_space<vmem>>, %arg11: memref<1x32xf32, #tpu.memory_space<vmem>>, %arg12: memref<1x8x32xf32, #tpu.memory_space<vmem>>, %arg13: memref<8x32xf32, #tpu.memory_space<vmem>>) attributes {dimension_semantics = [#tpu.dimension_semantics<parallel>], iteration_bounds = array<i64: 2>, scalar_prefetch = 0 : i64, scratch_operands = 1 : i64, tpu.core_type = #tpu.core_type<tc>, window_params = [{transform_indices = @transform_0, window_bounds = array<i64: 1, 8, 32>}, {transform_indices = @transform_1, window_bounds = array<i64: 1, 8, 32>}, {transform_indices = @transform_2, window_bounds = array<i64: 1, 1, 8, 8>}, {pipeline_mode = #tpu.pipeline_mode<synchronous>, transform_indices = @transform_3, window_bounds = array<i64: 1, 32>}, {pipeline_mode = #tpu.pipeline_mode<synchronous>, transform_indices = @transform_4, window_bounds = array<i64: 1, 32>}, {pipeline_mode = #tpu.pipeline_mode<synchronous>, transform_indices = @transform_5, window_bounds = array<i64: 32, 32>}, {pipeline_mode = #tpu.pipeline_mode<synchronous>, transform_indices = @transform_6, window_bounds = array<i64: 1, 32>}, {pipeline_mode = #tpu.pipeline_mode<synchronous>, transform_indices = @transform_7, window_bounds = array<i64: 32, 64>}, {pipeline_mode = #tpu.pipeline_mode<synchronous>, transform_indices = @transform_8, window_bounds = array<i64: 1, 64>}, {pipeline_mode = #tpu.pipeline_mode<synchronous>, transform_indices = @transform_9, window_bounds = array<i64: 32, 32>}, {pipeline_mode = #tpu.pipeline_mode<synchronous>, transform_indices = @transform_10, window_bounds = array<i64: 1, 32>}, {transform_indices = @transform_11, window_bounds = array<i64: 1, 8, 32>}]} {
    %c0 = arith.constant 0 : index
    %c0_0 = arith.constant 0 : index
    %c0_1 = arith.constant 0 : index
    %0 = vector.load %arg1[%c0, %c0_0, %c0_1] : memref<1x8x32xf32, #tpu.memory_space<vmem>>, vector<1x8x32xf32>
    %1 = vector.shape_cast %0 : vector<1x8x32xf32> to vector<8x32xf32>
    %c0_2 = arith.constant 0 : index
    %c0_3 = arith.constant 0 : index
    %2 = vector.load %arg4[%c0_2, %c0_3] : memref<1x32xf32, #tpu.memory_space<vmem>>, vector<1x32xf32>
    %c0_4 = arith.constant 0 : index
    %c0_5 = arith.constant 0 : index
    %3 = vector.load %arg5[%c0_4, %c0_5] : memref<1x32xf32, #tpu.memory_space<vmem>>, vector<1x32xf32>
    %cst = arith.constant dense<0.000000e+00> : vector<8xf32>
    %4 = vector.multi_reduction <add>, %1, %cst [1] : vector<8x32xf32> to vector<8xf32>
    %5 = vector.shape_cast %4 : vector<8xf32> to vector<8x1xf32>
    %cst_6 = arith.constant 3.200000e+01 : f32
    %6 = vector.broadcast %cst_6 : f32 to vector<8x1xf32>
    %7 = arith.divf %5, %6 : vector<8x1xf32>
    %8 = vector.broadcast %7 : vector<8x1xf32> to vector<8x32xf32>
    %9 = arith.subf %1, %8 : vector<8x32xf32>
    %10 = arith.mulf %9, %9 : vector<8x32xf32>
    %cst_7 = arith.constant dense<0.000000e+00> : vector<8xf32>
    %11 = vector.multi_reduction <add>, %10, %cst_7 [1] : vector<8x32xf32> to vector<8xf32>
    %12 = vector.shape_cast %11 : vector<8xf32> to vector<8x1xf32>
    %cst_8 = arith.constant 3.200000e+01 : f32
    %13 = vector.broadcast %cst_8 : f32 to vector<8x1xf32>
    %14 = arith.divf %12, %13 : vector<8x1xf32>
    %15 = vector.broadcast %7 : vector<8x1xf32> to vector<8x32xf32>
    %16 = arith.subf %1, %15 : vector<8x32xf32>
    %cst_9 = arith.constant 9.99999997E-7 : f32
    %17 = vector.broadcast %cst_9 : f32 to vector<8x1xf32>
    %18 = arith.addf %14, %17 : vector<8x1xf32>
    %19 = math.rsqrt %18 : vector<8x1xf32>
    %20 = vector.broadcast %19 : vector<8x1xf32> to vector<8x32xf32>
    %21 = arith.mulf %16, %20 : vector<8x32xf32>
    %22 = vector.broadcast %2 : vector<1x32xf32> to vector<8x32xf32>
    %23 = arith.mulf %21, %22 : vector<8x32xf32>
    %24 = vector.broadcast %3 : vector<1x32xf32> to vector<8x32xf32>
    %25 = arith.addf %23, %24 : vector<8x32xf32>
    %26 = arith.truncf %25 : vector<8x32xf32> to vector<8x32xbf16>
    %c0_10 = arith.constant 0 : index
    %c0_11 = arith.constant 0 : index
    %27 = vector.load %arg6[%c0_10, %c0_11] : memref<32x32xbf16, #tpu.memory_space<vmem>>, vector<32x32xbf16>
    %cst_12 = arith.constant dense<0.000000e+00> : vector<8x32xf32>
    %28 = tpu.matmul %26, %27, %cst_12 {dimension_numbers = #tpu.dot_dimension_numbers<[1], [0], [0], [1], [0, 0, 1, 1], [], []>} : vector<8x32xbf16>, vector<32x32xbf16>, vector<8x32xf32> -> vector<8x32xf32>
    %c0_13 = arith.constant 0 : index
    %c0_14 = arith.constant 0 : index
    %29 = vector.load %arg7[%c0_13, %c0_14] : memref<1x32xf32, #tpu.memory_space<vmem>>, vector<1x32xf32>
    %30 = vector.broadcast %29 : vector<1x32xf32> to vector<8x32xf32>
    %31 = arith.addf %28, %30 : vector<8x32xf32>
    %c0_15 = arith.constant 0 : index
    %c0_16 = arith.constant 0 : index
    %c0_17 = arith.constant 0 : index
    %32 = vector.load %arg2[%c0_15, %c0_16, %c0_17] : memref<1x8x32xf32, #tpu.memory_space<vmem>>, vector<1x8x32xf32>
    %33 = vector.shape_cast %32 : vector<1x8x32xf32> to vector<8x32xf32>
    %34 = arith.truncf %33 : vector<8x32xf32> to vector<8x32xbf16>
    %c0_18 = arith.constant 0 : index
    %c0_19 = arith.constant 0 : index
    %35 = vector.load %arg8[%c0_18, %c0_19] : memref<32x64xbf16, #tpu.memory_space<vmem>>, vector<32x64xbf16>
    %cst_20 = arith.constant dense<0.000000e+00> : vector<8x64xf32>
    %36 = tpu.matmul %34, %35, %cst_20 {dimension_numbers = #tpu.dot_dimension_numbers<[1], [0], [0], [1], [0, 0, 1, 1], [], []>} : vector<8x32xbf16>, vector<32x64xbf16>, vector<8x64xf32> -> vector<8x64xf32>
    %c0_21 = arith.constant 0 : index
    %c0_22 = arith.constant 0 : index
    %37 = vector.load %arg9[%c0_21, %c0_22] : memref<1x64xf32, #tpu.memory_space<vmem>>, vector<1x64xf32>
    %38 = vector.broadcast %37 : vector<1x64xf32> to vector<8x64xf32>
    %39 = arith.addf %36, %38 : vector<8x64xf32>
    %40 = vector.extract_strided_slice %39 {offsets = [0, 0], sizes = [8, 32], strides = [1, 1]} : vector<8x64xf32> to vector<8x32xf32>
    %41 = vector.extract_strided_slice %39 {offsets = [0, 32], sizes = [8, 32], strides = [1, 1]} : vector<8x64xf32> to vector<8x32xf32>
    %c0_23 = arith.constant 0 : index
    %c0_24 = arith.constant 0 : index
    %c0_25 = arith.constant 0 : index
    %c0_26 = arith.constant 0 : index
    %42 = vector.load %arg3[%c0_23, %c0_24, %c0_25, %c0_26] : memref<1x1x8x8xf32, #tpu.memory_space<vmem>>, vector<1x1x8x8xf32>
    %43 = vector.shape_cast %42 : vector<1x1x8x8xf32> to vector<8x8xf32>
    %44 = arith.truncf %31 : vector<8x32xf32> to vector<8x32xbf16>
    %45 = arith.truncf %40 : vector<8x32xf32> to vector<8x32xbf16>
    %46 = arith.truncf %41 : vector<8x32xf32> to vector<8x32xbf16>
    %47 = vector.extract_strided_slice %44 {offsets = [0, 0], sizes = [8, 8], strides = [1, 1]} : vector<8x32xbf16> to vector<8x8xbf16>
    %48 = vector.extract_strided_slice %45 {offsets = [0, 0], sizes = [8, 8], strides = [1, 1]} : vector<8x32xbf16> to vector<8x8xbf16>
    %cst_27 = arith.constant dense<0.000000e+00> : vector<8x8xf32>
    %49 = tpu.matmul %47, %48, %cst_27 {dimension_numbers = #tpu.dot_dimension_numbers<[1], [1], [0], [0], [0, 0, 1, 0], [], []>} : vector<8x8xbf16>, vector<8x8xbf16>, vector<8x8xf32> -> vector<8x8xf32>
    %cst_28 = arith.constant 0.353553385 : f32
    %50 = vector.broadcast %cst_28 : f32 to vector<8x8xf32>
    %51 = arith.mulf %49, %50 : vector<8x8xf32>
    %cst_29 = arith.constant 0.000000e+00 : f32
    %52 = vector.broadcast %cst_29 : f32 to vector<8x8xf32>
    %53 = arith.cmpf oeq, %43, %52 : vector<8x8xf32>
    %cst_30 = arith.constant -1.000000e+09 : f32
    %54 = vector.broadcast %cst_30 : f32 to vector<8x8xf32>
    %55 = arith.select %53, %54, %51 : vector<8x8xi1>, vector<8x8xf32>
    %cst_31 = arith.constant dense<0xFF800000> : vector<8xf32>
    %56 = vector.multi_reduction <maximumf>, %55, %cst_31 [1] : vector<8x8xf32> to vector<8xf32>
    %57 = vector.shape_cast %56 : vector<8xf32> to vector<8x1xf32>
    %58 = vector.broadcast %57 : vector<8x1xf32> to vector<8x8xf32>
    %59 = arith.subf %55, %58 : vector<8x8xf32>
    %60 = math.exp %59 : vector<8x8xf32>
    %cst_32 = arith.constant dense<0.000000e+00> : vector<8xf32>
    %61 = vector.multi_reduction <add>, %60, %cst_32 [1] : vector<8x8xf32> to vector<8xf32>
    %62 = vector.shape_cast %61 : vector<8xf32> to vector<8x1xf32>
    %63 = tpu.reciprocal %62 {approx = true} : vector<8x1xf32> -> vector<8x1xf32>
    %64 = vector.broadcast %63 : vector<8x1xf32> to vector<8x8xf32>
    %65 = arith.mulf %60, %64 : vector<8x8xf32>
    %66 = arith.truncf %65 : vector<8x8xf32> to vector<8x8xbf16>
    %67 = vector.extract_strided_slice %46 {offsets = [0, 0], sizes = [8, 8], strides = [1, 1]} : vector<8x32xbf16> to vector<8x8xbf16>
    %cst_33 = arith.constant dense<0.000000e+00> : vector<8x8xf32>
    %68 = tpu.matmul %66, %67, %cst_33 {dimension_numbers = #tpu.dot_dimension_numbers<[1], [0], [0], [1], [0, 0, 1, 1], [], []>} : vector<8x8xbf16>, vector<8x8xbf16>, vector<8x8xf32> -> vector<8x8xf32>
    %c0_34 = arith.constant 0 : index
    %c0_35 = arith.constant 0 : index
    %69 = vector.load %arg13[%c0_34, %c0_35] : memref<8x32xf32, #tpu.memory_space<vmem>>, vector<8x8xf32>
    tpu.vector_store %arg13[%c0_34, %c0_35], %68 {strides = array<i32>} : memref<8x32xf32, #tpu.memory_space<vmem>>, vector<8x8xf32>,
    %70 = vector.extract_strided_slice %44 {offsets = [0, 8], sizes = [8, 8], strides = [1, 1]} : vector<8x32xbf16> to vector<8x8xbf16>
    %71 = vector.extract_strided_slice %45 {offsets = [0, 8], sizes = [8, 8], strides = [1, 1]} : vector<8x32xbf16> to vector<8x8xbf16>
    %cst_36 = arith.constant dense<0.000000e+00> : vector<8x8xf32>
    %72 = tpu.matmul %70, %71, %cst_36 {dimension_numbers = #tpu.dot_dimension_numbers<[1], [1], [0], [0], [0, 0, 1, 0], [], []>} : vector<8x8xbf16>, vector<8x8xbf16>, vector<8x8xf32> -> vector<8x8xf32>
    %cst_37 = arith.constant 0.353553385 : f32
    %73 = vector.broadcast %cst_37 : f32 to vector<8x8xf32>
    %74 = arith.mulf %72, %73 : vector<8x8xf32>
    %cst_38 = arith.constant 0.000000e+00 : f32
    %75 = vector.broadcast %cst_38 : f32 to vector<8x8xf32>
    %76 = arith.cmpf oeq, %43, %75 : vector<8x8xf32>
    %cst_39 = arith.constant -1.000000e+09 : f32
    %77 = vector.broadcast %cst_39 : f32 to vector<8x8xf32>
    %78 = arith.select %76, %77, %74 : vector<8x8xi1>, vector<8x8xf32>
    %cst_40 = arith.constant dense<0xFF800000> : vector<8xf32>
    %79 = vector.multi_reduction <maximumf>, %78, %cst_40 [1] : vector<8x8xf32> to vector<8xf32>
    %80 = vector.shape_cast %79 : vector<8xf32> to vector<8x1xf32>
    %81 = vector.broadcast %80 : vector<8x1xf32> to vector<8x8xf32>
    %82 = arith.subf %78, %81 : vector<8x8xf32>
    %83 = math.exp %82 : vector<8x8xf32>
    %cst_41 = arith.constant dense<0.000000e+00> : vector<8xf32>
    %84 = vector.multi_reduction <add>, %83, %cst_41 [1] : vector<8x8xf32> to vector<8xf32>
    %85 = vector.shape_cast %84 : vector<8xf32> to vector<8x1xf32>
    %86 = tpu.reciprocal %85 {approx = true} : vector<8x1xf32> -> vector<8x1xf32>
    %87 = vector.broadcast %86 : vector<8x1xf32> to vector<8x8xf32>
    %88 = arith.mulf %83, %87 : vector<8x8xf32>
    %89 = arith.truncf %88 : vector<8x8xf32> to vector<8x8xbf16>
    %90 = vector.extract_strided_slice %46 {offsets = [0, 8], sizes = [8, 8], strides = [1, 1]} : vector<8x32xbf16> to vector<8x8xbf16>
    %cst_42 = arith.constant dense<0.000000e+00> : vector<8x8xf32>
    %91 = tpu.matmul %89, %90, %cst_42 {dimension_numbers = #tpu.dot_dimension_numbers<[1], [0], [0], [1], [0, 0, 1, 1], [], []>} : vector<8x8xbf16>, vector<8x8xbf16>, vector<8x8xf32> -> vector<8x8xf32>
    %c0_43 = arith.constant 0 : index
    %c8 = arith.constant 8 : index
    %92 = vector.load %arg13[%c0_43, %c8] : memref<8x32xf32, #tpu.memory_space<vmem>>, vector<8x8xf32>
    tpu.vector_store %arg13[%c0_43, %c8], %91 {strides = array<i32>} : memref<8x32xf32, #tpu.memory_space<vmem>>, vector<8x8xf32>,
    %93 = vector.extract_strided_slice %44 {offsets = [0, 16], sizes = [8, 8], strides = [1, 1]} : vector<8x32xbf16> to vector<8x8xbf16>
    %94 = vector.extract_strided_slice %45 {offsets = [0, 16], sizes = [8, 8], strides = [1, 1]} : vector<8x32xbf16> to vector<8x8xbf16>
    %cst_44 = arith.constant dense<0.000000e+00> : vector<8x8xf32>
    %95 = tpu.matmul %93, %94, %cst_44 {dimension_numbers = #tpu.dot_dimension_numbers<[1], [1], [0], [0], [0, 0, 1, 0], [], []>} : vector<8x8xbf16>, vector<8x8xbf16>, vector<8x8xf32> -> vector<8x8xf32>
    %cst_45 = arith.constant 0.353553385 : f32
    %96 = vector.broadcast %cst_45 : f32 to vector<8x8xf32>
    %97 = arith.mulf %95, %96 : vector<8x8xf32>
    %cst_46 = arith.constant 0.000000e+00 : f32
    %98 = vector.broadcast %cst_46 : f32 to vector<8x8xf32>
    %99 = arith.cmpf oeq, %43, %98 : vector<8x8xf32>
    %cst_47 = arith.constant -1.000000e+09 : f32
    %100 = vector.broadcast %cst_47 : f32 to vector<8x8xf32>
    %101 = arith.select %99, %100, %97 : vector<8x8xi1>, vector<8x8xf32>
    %cst_48 = arith.constant dense<0xFF800000> : vector<8xf32>
    %102 = vector.multi_reduction <maximumf>, %101, %cst_48 [1] : vector<8x8xf32> to vector<8xf32>
    %103 = vector.shape_cast %102 : vector<8xf32> to vector<8x1xf32>
    %104 = vector.broadcast %103 : vector<8x1xf32> to vector<8x8xf32>
    %105 = arith.subf %101, %104 : vector<8x8xf32>
    %106 = math.exp %105 : vector<8x8xf32>
    %cst_49 = arith.constant dense<0.000000e+00> : vector<8xf32>
    %107 = vector.multi_reduction <add>, %106, %cst_49 [1] : vector<8x8xf32> to vector<8xf32>
    %108 = vector.shape_cast %107 : vector<8xf32> to vector<8x1xf32>
    %109 = tpu.reciprocal %108 {approx = true} : vector<8x1xf32> -> vector<8x1xf32>
    %110 = vector.broadcast %109 : vector<8x1xf32> to vector<8x8xf32>
    %111 = arith.mulf %106, %110 : vector<8x8xf32>
    %112 = arith.truncf %111 : vector<8x8xf32> to vector<8x8xbf16>
    %113 = vector.extract_strided_slice %46 {offsets = [0, 16], sizes = [8, 8], strides = [1, 1]} : vector<8x32xbf16> to vector<8x8xbf16>
    %cst_50 = arith.constant dense<0.000000e+00> : vector<8x8xf32>
    %114 = tpu.matmul %112, %113, %cst_50 {dimension_numbers = #tpu.dot_dimension_numbers<[1], [0], [0], [1], [0, 0, 1, 1], [], []>} : vector<8x8xbf16>, vector<8x8xbf16>, vector<8x8xf32> -> vector<8x8xf32>
    %c0_51 = arith.constant 0 : index
    %c16 = arith.constant 16 : index
    %115 = vector.load %arg13[%c0_51, %c16] : memref<8x32xf32, #tpu.memory_space<vmem>>, vector<8x8xf32>
    tpu.vector_store %arg13[%c0_51, %c16], %114 {strides = array<i32>} : memref<8x32xf32, #tpu.memory_space<vmem>>, vector<8x8xf32>,
    %116 = vector.extract_strided_slice %44 {offsets = [0, 24], sizes = [8, 8], strides = [1, 1]} : vector<8x32xbf16> to vector<8x8xbf16>
    %117 = vector.extract_strided_slice %45 {offsets = [0, 24], sizes = [8, 8], strides = [1, 1]} : vector<8x32xbf16> to vector<8x8xbf16>
    %cst_52 = arith.constant dense<0.000000e+00> : vector<8x8xf32>
    %118 = tpu.matmul %116, %117, %cst_52 {dimension_numbers = #tpu.dot_dimension_numbers<[1], [1], [0], [0], [0, 0, 1, 0], [], []>} : vector<8x8xbf16>, vector<8x8xbf16>, vector<8x8xf32> -> vector<8x8xf32>
    %cst_53 = arith.constant 0.353553385 : f32
    %119 = vector.broadcast %cst_53 : f32 to vector<8x8xf32>
    %120 = arith.mulf %118, %119 : vector<8x8xf32>
    %cst_54 = arith.constant 0.000000e+00 : f32
    %121 = vector.broadcast %cst_54 : f32 to vector<8x8xf32>
    %122 = arith.cmpf oeq, %43, %121 : vector<8x8xf32>
    %cst_55 = arith.constant -1.000000e+09 : f32
    %123 = vector.broadcast %cst_55 : f32 to vector<8x8xf32>
    %124 = arith.select %122, %123, %120 : vector<8x8xi1>, vector<8x8xf32>
    %cst_56 = arith.constant dense<0xFF800000> : vector<8xf32>
    %125 = vector.multi_reduction <maximumf>, %124, %cst_56 [1] : vector<8x8xf32> to vector<8xf32>
    %126 = vector.shape_cast %125 : vector<8xf32> to vector<8x1xf32>
    %127 = vector.broadcast %126 : vector<8x1xf32> to vector<8x8xf32>
    %128 = arith.subf %124, %127 : vector<8x8xf32>
    %129 = math.exp %128 : vector<8x8xf32>
    %cst_57 = arith.constant dense<0.000000e+00> : vector<8xf32>
    %130 = vector.multi_reduction <add>, %129, %cst_57 [1] : vector<8x8xf32> to vector<8xf32>
    %131 = vector.shape_cast %130 : vector<8xf32> to vector<8x1xf32>
    %132 = tpu.reciprocal %131 {approx = true} : vector<8x1xf32> -> vector<8x1xf32>
    %133 = vector.broadcast %132 : vector<8x1xf32> to vector<8x8xf32>
    %134 = arith.mulf %129, %133 : vector<8x8xf32>
    %135 = arith.truncf %134 : vector<8x8xf32> to vector<8x8xbf16>
    %136 = vector.extract_strided_slice %46 {offsets = [0, 24], sizes = [8, 8], strides = [1, 1]} : vector<8x32xbf16> to vector<8x8xbf16>
    %cst_58 = arith.constant dense<0.000000e+00> : vector<8x8xf32>
    %137 = tpu.matmul %135, %136, %cst_58 {dimension_numbers = #tpu.dot_dimension_numbers<[1], [0], [0], [1], [0, 0, 1, 1], [], []>} : vector<8x8xbf16>, vector<8x8xbf16>, vector<8x8xf32> -> vector<8x8xf32>
    %c0_59 = arith.constant 0 : index
    %c24 = arith.constant 24 : index
    %138 = vector.load %arg13[%c0_59, %c24] : memref<8x32xf32, #tpu.memory_space<vmem>>, vector<8x8xf32>
    tpu.vector_store %arg13[%c0_59, %c24], %137 {strides = array<i32>} : memref<8x32xf32, #tpu.memory_space<vmem>>, vector<8x8xf32>,
    %c0_60 = arith.constant 0 : index
    %c0_61 = arith.constant 0 : index
    %139 = vector.load %arg13[%c0_60, %c0_61] : memref<8x32xf32, #tpu.memory_space<vmem>>, vector<8x32xf32>
    %140 = arith.truncf %139 : vector<8x32xf32> to vector<8x32xbf16>
    %c0_62 = arith.constant 0 : index
    %c0_63 = arith.constant 0 : index
    %141 = vector.load %arg10[%c0_62, %c0_63] : memref<32x32xbf16, #tpu.memory_space<vmem>>, vector<32x32xbf16>
    %cst_64 = arith.constant dense<0.000000e+00> : vector<8x32xf32>
    %142 = tpu.matmul %140, %141, %cst_64 {dimension_numbers = #tpu.dot_dimension_numbers<[1], [0], [0], [1], [0, 0, 1, 1], [], []>} : vector<8x32xbf16>, vector<32x32xbf16>, vector<8x32xf32> -> vector<8x32xf32>
    %c0_65 = arith.constant 0 : index
    %c0_66 = arith.constant 0 : index
    %143 = vector.load %arg11[%c0_65, %c0_66] : memref<1x32xf32, #tpu.memory_space<vmem>>, vector<1x32xf32>
    %144 = vector.broadcast %143 : vector<1x32xf32> to vector<8x32xf32>
    %145 = arith.addf %142, %144 : vector<8x32xf32>
    %146 = arith.addf %1, %145 : vector<8x32xf32>
    %c0_67 = arith.constant 0 : index
    %c0_68 = arith.constant 0 : index
    %c0_69 = arith.constant 0 : index
    %147 = vector.load %arg12[%c0_67, %c0_68, %c0_69] : memref<1x8x32xf32, #tpu.memory_space<vmem>>, vector<1x8x32xf32>
    %148 = vector.shape_cast %147 : vector<1x8x32xf32> to vector<8x32xf32>
    %149 = vector.shape_cast %146 : vector<8x32xf32> to vector<1x8x32xf32>
    tpu.vector_store %arg12[%c0_67, %c0_68, %c0_69], %149 {strides = array<i32>} : memref<1x8x32xf32, #tpu.memory_space<vmem>>, vector<1x8x32xf32>,
    return
  }
  func.func @transform_0(%arg0: i32) -> (i32, i32, i32) {
    %c0_i32 = arith.constant 0 : i32
    %c0_i32_0 = arith.constant 0 : i32
    %c0_i32_1 = arith.constant 0 : i32
    return %arg0, %c0_i32, %c0_i32_0 : i32, i32, i32
  }
  func.func @transform_1(%arg0: i32) -> (i32, i32, i32) {
    %c0_i32 = arith.constant 0 : i32
    %c0_i32_0 = arith.constant 0 : i32
    %c0_i32_1 = arith.constant 0 : i32
    return %arg0, %c0_i32, %c0_i32_0 : i32, i32, i32
  }
  func.func @transform_2(%arg0: i32) -> (i32, i32, i32, i32) {
    %c0_i32 = arith.constant 0 : i32
    %c0_i32_0 = arith.constant 0 : i32
    %c0_i32_1 = arith.constant 0 : i32
    %c0_i32_2 = arith.constant 0 : i32
    return %arg0, %c0_i32, %c0_i32_0, %c0_i32_1 : i32, i32, i32, i32
  }
  func.func @transform_3(%arg0: i32) -> (i32, i32) {
    %c0_i32 = arith.constant 0 : i32
    %c0_i32_0 = arith.constant 0 : i32
    %c0_i32_1 = arith.constant 0 : i32
    return %c0_i32, %c0_i32_0 : i32, i32
  }
  func.func @transform_4(%arg0: i32) -> (i32, i32) {
    %c0_i32 = arith.constant 0 : i32
    %c0_i32_0 = arith.constant 0 : i32
    %c0_i32_1 = arith.constant 0 : i32
    return %c0_i32, %c0_i32_0 : i32, i32
  }
  func.func @transform_5(%arg0: i32) -> (i32, i32) {
    %c0_i32 = arith.constant 0 : i32
    %c0_i32_0 = arith.constant 0 : i32
    %c0_i32_1 = arith.constant 0 : i32
    return %c0_i32, %c0_i32_0 : i32, i32
  }
  func.func @transform_6(%arg0: i32) -> (i32, i32) {
    %c0_i32 = arith.constant 0 : i32
    %c0_i32_0 = arith.constant 0 : i32
    %c0_i32_1 = arith.constant 0 : i32
    return %c0_i32, %c0_i32_0 : i32, i32
  }
  func.func @transform_7(%arg0: i32) -> (i32, i32) {
    %c0_i32 = arith.constant 0 : i32
    %c0_i32_0 = arith.constant 0 : i32
    %c0_i32_1 = arith.constant 0 : i32
    return %c0_i32, %c0_i32_0 : i32, i32
  }
  func.func @transform_8(%arg0: i32) -> (i32, i32) {
    %c0_i32 = arith.constant 0 : i32
    %c0_i32_0 = arith.constant 0 : i32
    %c0_i32_1 = arith.constant 0 : i32
    return %c0_i32, %c0_i32_0 : i32, i32
  }
  func.func @transform_9(%arg0: i32) -> (i32, i32) {
    %c0_i32 = arith.constant 0 : i32
    %c0_i32_0 = arith.constant 0 : i32
    %c0_i32_1 = arith.constant 0 : i32
    return %c0_i32, %c0_i32_0 : i32, i32
  }
  func.func @transform_10(%arg0: i32) -> (i32, i32) {
    %c0_i32 = arith.constant 0 : i32
    %c0_i32_0 = arith.constant 0 : i32
    %c0_i32_1 = arith.constant 0 : i32
    return %c0_i32, %c0_i32_0 : i32, i32
  }
  func.func @transform_11(%arg0: i32) -> (i32, i32, i32) {
    %c0_i32 = arith.constant 0 : i32
    %c0_i32_0 = arith.constant 0 : i32
    %c0_i32_1 = arith.constant 0 : i32
    return %arg0, %c0_i32, %c0_i32_0 : i32, i32, i32
  }
}

</mosaic_0001>

<llo_original>
// kernel: decoder_layer.4
$region0: #{decoder_layer.4}
  #allocation0 [shape = 'u32[]', space=smem, size = 0x4, offset = 0x4, fixed_abs, tag = 'smem constant byte address 0x4 - core index']
  #allocation1 [shape = 'u32[72,128]{1,0:T(1,128)}', space=vmem, size = 0x9000, scoped, tag = 'internal scratch']
  #allocation2 [shape = 'f32[8,32]{1,0:T(8,128)}', space=vmem, size = 0x1000, scoped, tag = 'scratch operand']
  %s0 = inlined_call_operand.vmem [shape: f32[2,8,32], index: 0, kind: input, shape index: {}]
  %s1 = inlined_call_operand.vmem [shape: f32[2,8,32], index: 1, kind: input, shape index: {}]
  %s2 = inlined_call_operand.hbm [shape: f32[2,1,8,8], index: 2, kind: input, shape index: {}]
  %s3 = inlined_call_operand.vmem [shape: f32[1,32], index: 3, kind: input, shape index: {}]
  %s4 = inlined_call_operand.vmem [shape: f32[1,32], index: 4, kind: input, shape index: {}]
  %s5 = inlined_call_operand.hbm [shape: bf16[32,32], index: 5, kind: input, shape index: {}]
  %s6 = inlined_call_operand.vmem [shape: f32[1,32], index: 6, kind: input, shape index: {}]
  %s7 = inlined_call_operand.hbm [shape: bf16[32,64], index: 7, kind: input, shape index: {}]
  %s8 = inlined_call_operand.vmem [shape: f32[1,64], index: 8, kind: input, shape index: {}]
  %s9 = inlined_call_operand.hbm [shape: bf16[32,32], index: 9, kind: input, shape index: {}]
  %s10 = inlined_call_operand.vmem [shape: f32[1,32], index: 10, kind: input, shape index: {}]
  %s11 = inlined_call_operand.vmem [shape: f32[2,8,32], index: 11, kind: output, shape index: {}]
  %s12 = sld [smem:[#allocation0]]
  $region93: #{decoder_layer.4} parent=0
    _
  %s14 = ssub.s32 1, %s12
  %s15 = scalar_select 0, %s14, %s12
  $region1: #{decoder_layer.4} parent=0
    #allocation3 [shape = 'u8[8192]{0}', space=vmem, size = 0x2000, scoped, tag = 'input window, operand 2']
    #allocation4 [shape = 's32[2]{0}', space=sflag, size = 0x8, scoped, tag = 'scoped memory for decoder_layer.4']
    #allocation5 [shape = 'u8[8192]{0}', space=vmem, size = 0x2000, scoped, tag = 'input window, operand 5, single buffered']
    #allocation6 [shape = 's32[1]{0}', space=sflag, size = 0x4, scoped, tag = 'scoped memory for decoder_layer.4']
    #allocation7 [shape = 'u8[8192]{0}', space=vmem, size = 0x2000, scoped, tag = 'input window, operand 7, single buffered']
    #allocation8 [shape = 'u8[8192]{0}', space=vmem, size = 0x2000, scoped, tag = 'input window, operand 9, single buffered']
    #allocation9 [shape = 's32[1]{0}', space=sflag, size = 0x4, scoped, tag = 'scoped memory for decoder_layer.4']
    %16 = vsyncpa [#allocation4], 0
    %s17 = scalar_lea.sflag [#allocation4], 1
    %18 = vsyncpa %s17, 0
    %19 = vsyncpa [#allocation6], 0
    %20 = vsyncpa [#allocation9], 0
    loop: start=0, step=1, limit=4
    $region2: #{decoder_layer.4} parent=1 // loop_pre_header
      _
    $region3: #{decoder_layer.4} parent=1 // loop_header
      %s22 = sphi 0, %s26
      %p23 = scmp.ge.s32.totalorder %s22, 4
      %s32 = sphi 0, %s34
      %s35 = sphi 0, %s32
      %s36 = sphi 0, %s35
      %s52 = sphi 0, %s36
      %s58 = sphi 0, %s60
      %s61 = sphi 0, %s58
      %s62 = sphi 0, %s61
      %s78 = sphi 0, %s62
      %s84 = sphi 0, %s86
      %s87 = sphi 0, %s84
      %s88 = sphi 0, %s87
      %s104 = sphi 0, %s88
      %s108 = sphi 0, %s108
      %s110 = sphi 0, %s108
      %s111 = sphi 0, %s110
      %s125 = sphi 0, %s111
      %s129 = sphi 0, %s129
      %s131 = sphi 0, %s129
      %s132 = sphi 0, %s131
      %s146 = sphi 0, %s132
      %s150 = sphi 0, %s150
      %s152 = sphi 0, %s150
      %s153 = sphi 0, %s152
      %s167 = sphi 0, %s153
      %s171 = sphi 0, %s171
      %s173 = sphi 0, %s171
      %s174 = sphi 0, %s173
      %s188 = sphi 0, %s174
      %s192 = sphi 0, %s192
      %s194 = sphi 0, %s192
      %s195 = sphi 0, %s194
      %s209 = sphi 0, %s195
      %s213 = sphi 0, %s213
      %s215 = sphi 0, %s213
      %s216 = sphi 0, %s215
      %s230 = sphi 0, %s216
      %s234 = sphi 0, %s234
      %s236 = sphi 0, %s234
      %s237 = sphi 0, %s236
      %s251 = sphi 0, %s237
      %s255 = sphi 0, %s255
      %s257 = sphi 0, %s255
      %s258 = sphi 0, %s257
      %s272 = sphi 0, %s258
      %s278 = sphi 0, %s280
      %s281 = sphi 0, %s278
      %s282 = sphi 0, %s281
      %s298 = sphi 0, %s282
    $region4: #{decoder_layer.4} parent=1 // loop_header_branch
      %25 = sbr.rel (%p23) target = $region8
    $region5: #{decoder_layer.4} parent=1 // loop_body
      %s27 = ssub.s32 %s22, 1
      %s28 = ssub.s32 %s22, 2
      %s29 = sadd.s32 %s22, 1
      %s30 = ssub.s32 %s22, %s29
      %p31 = scmp.eq.s32.totalorder %s30, 0
      %s33 = sadd.s32 %s32, 1
      %s34 = scalar_select %p31, %s32, %s33
      %p37 = pneg %p31
      %p38 = scmp.eq.s32.totalorder %s22, 1
      %p39 = por %p37, %p38
      %p40 = scmp.ne.s32.totalorder %s32, %s35
      %p41 = scmp.eq.s32.totalorder %s22, 0
      %p42 = por %p40, %p41
      %p43 = scmp.ne.s32.totalorder %s32, %s35
      %p44 = scmp.eq.s32.totalorder %s27, 1
      %p45 = por %p43, %p44
      %p46 = scmp.ne.s32.totalorder %s35, %s36
      %p47 = scmp.eq.s32.totalorder %s27, 0
      %p48 = por %p46, %p47
      %p49 = scmp.ne.s32.totalorder %s35, %s36
      %p50 = scmp.eq.s32.totalorder %s28, 1
      %p51 = por %p49, %p50
      %p53 = scmp.ne.s32.totalorder %s36, %s52
      %p54 = scmp.eq.s32.totalorder %s28, 0
      %p55 = por %p53, %p54
      %s56 = ssub.s32 %s22, %s29
      %p57 = scmp.eq.s32.totalorder %s56, 0
      %s59 = sadd.s32 %s58, 1
      %s60 = scalar_select %p57, %s58, %s59
      %p63 = pneg %p57
      %p64 = scmp.eq.s32.totalorder %s22, 1
      %p65 = por %p63, %p64
      %p66 = scmp.ne.s32.totalorder %s58, %s61
      %p67 = scmp.eq.s32.totalorder %s22, 0
      %p68 = por %p66, %p67
      %p69 = scmp.ne.s32.totalorder %s58, %s61
      %p70 = scmp.eq.s32.totalorder %s27, 1
      %p71 = por %p69, %p70
      %p72 = scmp.ne.s32.totalorder %s61, %s62
      %p73 = scmp.eq.s32.totalorder %s27, 0
      %p74 = por %p72, %p73
      %p75 = scmp.ne.s32.totalorder %s61, %s62
      %p76 = scmp.eq.s32.totalorder %s28, 1
      %p77 = por %p75, %p76
      %p79 = scmp.ne.s32.totalorder %s62, %s78
      %p80 = scmp.eq.s32.totalorder %s28, 0
      %p81 = por %p79, %p80
      %s82 = ssub.s32 %s22, %s29
      %p83 = scmp.eq.s32.totalorder %s82, 0
      %s85 = sadd.s32 %s84, 1
      %s86 = scalar_select %p83, %s84, %s85
      %p89 = pneg %p83
      %p90 = scmp.eq.s32.totalorder %s22, 1
      %p91 = por %p89, %p90
      %p92 = scmp.ne.s32.totalorder %s84, %s87
      %p93 = scmp.eq.s32.totalorder %s22, 0
      %p94 = por %p92, %p93
      %p95 = scmp.ne.s32.totalorder %s84, %s87
      %p96 = scmp.eq.s32.totalorder %s27, 1
      %p97 = por %p95, %p96
      %p98 = scmp.ne.s32.totalorder %s87, %s88
      %p99 = scmp.eq.s32.totalorder %s27, 0
      %p100 = por %p98, %p99
      %p101 = scmp.ne.s32.totalorder %s87, %s88
      %p102 = scmp.eq.s32.totalorder %s28, 1
      %p103 = por %p101, %p102
      %p105 = scmp.ne.s32.totalorder %s88, %s104
      %p106 = scmp.eq.s32.totalorder %s28, 0
      %p107 = por %p105, %p106
      %s109 = sadd.s32 %s108, 1
      %p112 = scmp.eq.s32.totalorder %s22, 1
      %p113 = scmp.ne.s32.totalorder %s108, %s110
      %p114 = scmp.eq.s32.totalorder %s22, 0
      %p115 = por %p113, %p114
      %p116 = scmp.ne.s32.totalorder %s108, %s110
      %p117 = scmp.eq.s32.totalorder %s27, 1
      %p118 = por %p116, %p117
      %p119 = scmp.ne.s32.totalorder %s110, %s111
      %p120 = scmp.eq.s32.totalorder %s27, 0
      %p121 = por %p119, %p120
      %p122 = scmp.ne.s32.totalorder %s110, %s111
      %p123 = scmp.eq.s32.totalorder %s28, 1
      %p124 = por %p122, %p123
      %p126 = scmp.ne.s32.totalorder %s111, %s125
      %p127 = scmp.eq.s32.totalorder %s28, 0
      %p128 = por %p126, %p127
      %s130 = sadd.s32 %s129, 1
      %p133 = scmp.eq.s32.totalorder %s22, 1
      %p134 = scmp.ne.s32.totalorder %s129, %s131
      %p135 = scmp.eq.s32.totalorder %s22, 0
      %p136 = por %p134, %p135
      %p137 = scmp.ne.s32.totalorder %s129, %s131
      %p138 = scmp.eq.s32.totalorder %s27, 1
      %p139 = por %p137, %p138
      %p140 = scmp.ne.s32.totalorder %s131, %s132
      %p141 = scmp.eq.s32.totalorder %s27, 0
      %p142 = por %p140, %p141
      %p143 = scmp.ne.s32.totalorder %s131, %s132
      %p144 = scmp.eq.s32.totalorder %s28, 1
      %p145 = por %p143, %p144
      %p147 = scmp.ne.s32.totalorder %s132, %s146
      %p148 = scmp.eq.s32.totalorder %s28, 0
      %p149 = por %p147, %p148
      %s151 = sadd.s32 %s150, 1
      %p154 = scmp.eq.s32.totalorder %s22, 1
      %p155 = scmp.ne.s32.totalorder %s150, %s152
      %p156 = scmp.eq.s32.totalorder %s22, 0
      %p157 = por %p155, %p156
      %p158 = scmp.ne.s32.totalorder %s150, %s152
      %p159 = scmp.eq.s32.totalorder %s27, 1
      %p160 = por %p158, %p159
      %p161 = scmp.ne.s32.totalorder %s152, %s153
      %p162 = scmp.eq.s32.totalorder %s27, 0
      %p163 = por %p161, %p162
      %p164 = scmp.ne.s32.totalorder %s152, %s153
      %p165 = scmp.eq.s32.totalorder %s28, 1
      %p166 = por %p164, %p165
      %p168 = scmp.ne.s32.totalorder %s153, %s167
      %p169 = scmp.eq.s32.totalorder %s28, 0
      %p170 = por %p168, %p169
      %s172 = sadd.s32 %s171, 1
      %p175 = scmp.eq.s32.totalorder %s22, 1
      %p176 = scmp.ne.s32.totalorder %s171, %s173
      %p177 = scmp.eq.s32.totalorder %s22, 0
      %p178 = por %p176, %p177
      %p179 = scmp.ne.s32.totalorder %s171, %s173
      %p180 = scmp.eq.s32.totalorder %s27, 1
      %p181 = por %p179, %p180
      %p182 = scmp.ne.s32.totalorder %s173, %s174
      %p183 = scmp.eq.s32.totalorder %s27, 0
      %p184 = por %p182, %p183
      %p185 = scmp.ne.s32.totalorder %s173, %s174
      %p186 = scmp.eq.s32.totalorder %s28, 1
      %p187 = por %p185, %p186
      %p189 = scmp.ne.s32.totalorder %s174, %s188
      %p190 = scmp.eq.s32.totalorder %s28, 0
      %p191 = por %p189, %p190
      %s193 = sadd.s32 %s192, 1
      %p196 = scmp.eq.s32.totalorder %s22, 1
      %p197 = scmp.ne.s32.totalorder %s192, %s194
      %p198 = scmp.eq.s32.totalorder %s22, 0
      %p199 = por %p197, %p198
      %p200 = scmp.ne.s32.totalorder %s192, %s194
      %p201 = scmp.eq.s32.totalorder %s27, 1
      %p202 = por %p200, %p201
      %p203 = scmp.ne.s32.totalorder %s194, %s195
      %p204 = scmp.eq.s32.totalorder %s27, 0
      %p205 = por %p203, %p204
      %p206 = scmp.ne.s32.totalorder %s194, %s195
      %p207 = scmp.eq.s32.totalorder %s28, 1
      %p208 = por %p206, %p207
      %p210 = scmp.ne.s32.totalorder %s195, %s209
      %p211 = scmp.eq.s32.totalorder %s28, 0
      %p212 = por %p210, %p211
      %s214 = sadd.s32 %s213, 1
      %p217 = scmp.eq.s32.totalorder %s22, 1
      %p218 = scmp.ne.s32.totalorder %s213, %s215
      %p219 = scmp.eq.s32.totalorder %s22, 0
      %p220 = por %p218, %p219
      %p221 = scmp.ne.s32.totalorder %s213, %s215
      %p222 = scmp.eq.s32.totalorder %s27, 1
      %p223 = por %p221, %p222
      %p224 = scmp.ne.s32.totalorder %s215, %s216
      %p225 = scmp.eq.s32.totalorder %s27, 0
      %p226 = por %p224, %p225
      %p227 = scmp.ne.s32.totalorder %s215, %s216
      %p228 = scmp.eq.s32.totalorder %s28, 1
      %p229 = por %p227, %p228
      %p231 = scmp.ne.s32.totalorder %s216, %s230
      %p232 = scmp.eq.s32.totalorder %s28, 0
      %p233 = por %p231, %p232
      %s235 = sadd.s32 %s234, 1
      %p238 = scmp.eq.s32.totalorder %s22, 1
      %p239 = scmp.ne.s32.totalorder %s234, %s236
      %p240 = scmp.eq.s32.totalorder %s22, 0
      %p241 = por %p239, %p240
      %p242 = scmp.ne.s32.totalorder %s234, %s236
      %p243 = scmp.eq.s32.totalorder %s27, 1
      %p244 = por %p242, %p243
      %p245 = scmp.ne.s32.totalorder %s236, %s237
      %p246 = scmp.eq.s32.totalorder %s27, 0
      %p247 = por %p245, %p246
      %p248 = scmp.ne.s32.totalorder %s236, %s237
      %p249 = scmp.eq.s32.totalorder %s28, 1
      %p250 = por %p248, %p249
      %p252 = scmp.ne.s32.totalorder %s237, %s251
      %p253 = scmp.eq.s32.totalorder %s28, 0
      %p254 = por %p252, %p253
      %s256 = sadd.s32 %s255, 1
      %p259 = scmp.eq.s32.totalorder %s22, 1
      %p260 = scmp.ne.s32.totalorder %s255, %s257
      %p261 = scmp.eq.s32.totalorder %s22, 0
      %p262 = por %p260, %p261
      %p263 = scmp.ne.s32.totalorder %s255, %s257
      %p264 = scmp.eq.s32.totalorder %s27, 1
      %p265 = por %p263, %p264
      %p266 = scmp.ne.s32.totalorder %s257, %s258
      %p267 = scmp.eq.s32.totalorder %s27, 0
      %p268 = por %p266, %p267
      %p269 = scmp.ne.s32.totalorder %s257, %s258
      %p270 = scmp.eq.s32.totalorder %s28, 1
      %p271 = por %p269, %p270
      %p273 = scmp.ne.s32.totalorder %s258, %s272
      %p274 = scmp.eq.s32.totalorder %s28, 0
      %p275 = por %p273, %p274
      %s276 = ssub.s32 %s22, %s29
      %p277 = scmp.eq.s32.totalorder %s276, 0
      %s279 = sadd.s32 %s278, 1
      %s280 = scalar_select %p277, %s278, %s279
      %p283 = pneg %p277
      %p284 = scmp.eq.s32.totalorder %s22, 1
      %p285 = por %p283, %p284
      %p286 = scmp.ne.s32.totalorder %s278, %s281
      %p287 = scmp.eq.s32.totalorder %s22, 0
      %p288 = por %p286, %p287
      %p289 = scmp.ne.s32.totalorder %s278, %s281
      %p290 = scmp.eq.s32.totalorder %s27, 1
      %p291 = por %p289, %p290
      %p292 = scmp.ne.s32.totalorder %s281, %s282
      %p293 = scmp.eq.s32.totalorder %s27, 0
      %p294 = por %p292, %p293
      %p295 = scmp.ne.s32.totalorder %s281, %s282
      %p296 = scmp.eq.s32.totalorder %s28, 1
      %p297 = por %p295, %p296
      %p299 = scmp.ne.s32.totalorder %s282, %s298
      %p300 = scmp.eq.s32.totalorder %s28, 0
      %p301 = por %p299, %p300
      %p302 = scmp.le.s32.totalorder 1, %s22
      %p303 = scmp.lt.s32.totalorder %s22, 3
      %p304 = pnand %p302, %p303
      %p305 = pneg %p304
      // Predicated region
      $region9: #{decoder_layer.4} parent=5 // pred_check
        _
      $region10: #{decoder_layer.4} parent=5 // pred_check_branch
        %307 = sbr.rel (%p304) target = $region12
      $region11: #{decoder_layer.4} parent=5 // pred_region
        %s308 = ssub.s32 %s22, 1
        // Predicated region
        $region13: #{decoder_layer.4} parent=11 // pred_check
          %p309 = pneg %p121
        $region14: #{decoder_layer.4} parent=11 // pred_check_branch
          %311 = sbr.rel (%p309) target = $region16
        $region15: #{decoder_layer.4} parent=11 // pred_region
          _
        $region16: #{decoder_layer.4} parent=11 // pred_fallthru
          _
        // Predicated region
        $region17: #{decoder_layer.4} parent=11 // pred_check
          %p312 = pneg %p142
        $region18: #{decoder_layer.4} parent=11 // pred_check_branch
          %314 = sbr.rel (%p312) target = $region20
        $region19: #{decoder_layer.4} parent=11 // pred_region
          _
        $region20: #{decoder_layer.4} parent=11 // pred_fallthru
          _
        // Predicated region
        $region21: #{decoder_layer.4} parent=11 // pred_check
          %p315 = pneg %p163
        $region22: #{decoder_layer.4} parent=11 // pred_check_branch
          %317 = sbr.rel (%p315) target = $region24
        $region23: #{decoder_layer.4} parent=11 // pred_region
          %319 = vsyncadd [#allocation6], 0
          %s320 = sshll.u32 %s5, 4
          %s321 = int_to_ptr.hbm [resolvable:$true] %s320
          %s322 = sshll.u32 [#allocation5], 4
          %s323 = int_to_ptr.vmem [resolvable:$true] %s322
          %328 = dma.hbm_to_vmem [thread:$0]  %s321, 256, %s323, [#allocation6], 64, 64, 4
        $region24: #{decoder_layer.4} parent=11 // pred_fallthru
          _
        // Predicated region
        $region25: #{decoder_layer.4} parent=11 // pred_check
          %p329 = pneg %p184
        $region26: #{decoder_layer.4} parent=11 // pred_check_branch
          %331 = sbr.rel (%p329) target = $region28
        $region27: #{decoder_layer.4} parent=11 // pred_region
          _
        $region28: #{decoder_layer.4} parent=11 // pred_fallthru
          _
        // Predicated region
        $region29: #{decoder_layer.4} parent=11 // pred_check
          %p332 = pneg %p205
        $region30: #{decoder_layer.4} parent=11 // pred_check_branch
          %334 = sbr.rel (%p332) target = $region32
        $region31: #{decoder_layer.4} parent=11 // pred_region
          %336 = vsyncadd [#allocation6], 0
          %s337 = sshll.u32 %s7, 4
          %s338 = int_to_ptr.hbm [resolvable:$true] %s337
          %s339 = sshll.u32 [#allocation7], 4
          %s340 = int_to_ptr.vmem [resolvable:$true] %s339
          %345 = dma.hbm_to_vmem [thread:$0]  %s338, 256, %s340, [#allocation6], 64, 64, 4
        $region32: #{decoder_layer.4} parent=11 // pred_fallthru
          _
        // Predicated region
        $region33: #{decoder_layer.4} parent=11 // pred_check
          %p346 = pneg %p226
        $region34: #{decoder_layer.4} parent=11 // pred_check_branch
          %348 = sbr.rel (%p346) target = $region36
        $region35: #{decoder_layer.4} parent=11 // pred_region
          _
        $region36: #{decoder_layer.4} parent=11 // pred_fallthru
          _
        // Predicated region
        $region37: #{decoder_layer.4} parent=11 // pred_check
          %p349 = pneg %p247
        $region38: #{decoder_layer.4} parent=11 // pred_check_branch
          %351 = sbr.rel (%p349) target = $region40
        $region39: #{decoder_layer.4} parent=11 // pred_region
          %353 = vsyncadd [#allocation9], 0
          %s354 = sshll.u32 %s9, 4
          %s355 = int_to_ptr.hbm [resolvable:$true] %s354
          %s356 = sshll.u32 [#allocation8], 4
          %s357 = int_to_ptr.vmem [resolvable:$true] %s356
          %362 = dma.hbm_to_vmem [thread:$0]  %s355, 256, %s357, [#allocation9], 64, 64, 4
        $region40: #{decoder_layer.4} parent=11 // pred_fallthru
          _
        // Predicated region
        $region41: #{decoder_layer.4} parent=11 // pred_check
          %p363 = pneg %p268
        $region42: #{decoder_layer.4} parent=11 // pred_check_branch
          %365 = sbr.rel (%p363) target = $region44
        $region43: #{decoder_layer.4} parent=11 // pred_region
          _
        $region44: #{decoder_layer.4} parent=11 // pred_fallthru
          _
      $region12: #{decoder_layer.4} parent=5 // pred_fallthru
        _
      %p366 = scmp.lt.s32.totalorder %s22, 2
      // Predicated region
      $region45: #{decoder_layer.4} parent=5 // pred_check
        %p367 = pneg %p366
      $region46: #{decoder_layer.4} parent=5 // pred_check_branch
        %369 = sbr.rel (%p367) target = $region48
      $region47: #{decoder_layer.4} parent=5 // pred_region
        // Predicated region
        $region49: #{decoder_layer.4} parent=47 // pred_check
          %p370 = pneg %p42
        $region50: #{decoder_layer.4} parent=47 // pred_check_branch
          %372 = sbr.rel (%p370) target = $region52
        $region51: #{decoder_layer.4} parent=47 // pred_region
          %p373 = scmp.lt.s32.totalorder %s22, 1
          %s374 = scalar_select %p373, %s22, 1
          %s375 = smul.addr %s374, 8
          %s376 = scalar_lea.vmem %s0, %s375
        $region52: #{decoder_layer.4} parent=47 // pred_fallthru
          _
        // Predicated region
        $region53: #{decoder_layer.4} parent=47 // pred_check
          %p377 = pneg %p68
        $region54: #{decoder_layer.4} parent=47 // pred_check_branch
          %379 = sbr.rel (%p377) target = $region56
        $region55: #{decoder_layer.4} parent=47 // pred_region
          %p380 = scmp.lt.s32.totalorder %s22, 1
          %s381 = scalar_select %p380, %s22, 1
          %s382 = smul.addr %s381, 8
          %s383 = scalar_lea.vmem %s1, %s382
        $region56: #{decoder_layer.4} parent=47 // pred_fallthru
          _
        // Predicated region
        $region57: #{decoder_layer.4} parent=47 // pred_check
          %p384 = pneg %p94
        $region58: #{decoder_layer.4} parent=47 // pred_check_branch
          %386 = sbr.rel (%p384) target = $region60
        $region59: #{decoder_layer.4} parent=47 // pred_region
          %s387 = sand.u32 %s84, 1
          %s388 = scalar_lea.sflag [#allocation4], %s387
          %s389 = sand.u32 %s84, 1
          %s390 = smul.addr %s389, 8
          %s391 = scalar_lea.vmem [#allocation3], %s390
          %393 = vsyncadd %s388, 0
          %s394 = smul.addr %s22, 8
          %s395 = scalar_lea.hbm %s2, %s394
          %s397 = sshll.u32 %s395, 4
          %s398 = int_to_ptr.hbm [resolvable:$true] %s397
          %s399 = sshll.u32 %s391, 4
          %s400 = int_to_ptr.vmem [resolvable:$true] %s399
          %402 = dma.hbm_to_vmem [thread:$0]  %s398, 128, %s400, %s388
        $region60: #{decoder_layer.4} parent=47 // pred_fallthru
          _
      $region48: #{decoder_layer.4} parent=5 // pred_fallthru
        _
      %p403 = scmp.le.s32.totalorder 1, %s22
      %p404 = scmp.lt.s32.totalorder %s22, 3
      %p405 = pnand %p403, %p404
      %p406 = pneg %p405
      // Predicated region
      $region61: #{decoder_layer.4} parent=5 // pred_check
        _
      $region62: #{decoder_layer.4} parent=5 // pred_check_branch
        %408 = sbr.rel (%p405) target = $region64
      $region63: #{decoder_layer.4} parent=5 // pred_region
        %s409 = ssub.s32 %s22, 1
        %s410 = sand.u32 %s87, 1
        %s411 = scalar_lea.sflag [#allocation4], %s410
        %s412 = sand.u32 %s87, 1
        %s413 = smul.addr %s412, 8
        %s414 = scalar_lea.vmem [#allocation3], %s413
        // Predicated region
        $region65: #{decoder_layer.4} parent=63 // pred_check
          %p415 = pneg %p100
        $region66: #{decoder_layer.4} parent=63 // pred_check_branch
          %417 = sbr.rel (%p415) target = $region68
        $region67: #{decoder_layer.4} parent=63 // pred_region
          %419 = dma.done %s411, 128
        $region68: #{decoder_layer.4} parent=63 // pred_fallthru
          _
        // Predicated region
        $region69: #{decoder_layer.4} parent=63 // pred_check
          %p420 = pneg %p163
        $region70: #{decoder_layer.4} parent=63 // pred_check_branch
          %422 = sbr.rel (%p420) target = $region72
        $region71: #{decoder_layer.4} parent=63 // pred_region
          %424 = dma.done [#allocation6], 256
        $region72: #{decoder_layer.4} parent=63 // pred_fallthru
          _
        // Predicated region
        $region73: #{decoder_layer.4} parent=63 // pred_check
          %p425 = pneg %p205
        $region74: #{decoder_layer.4} parent=63 // pred_check_branch
          %427 = sbr.rel (%p425) target = $region76
        $region75: #{decoder_layer.4} parent=63 // pred_region
          %429 = dma.done [#allocation6], 256
        $region76: #{decoder_layer.4} parent=63 // pred_fallthru
          _
        // Predicated region
        $region77: #{decoder_layer.4} parent=63 // pred_check
          %p430 = pneg %p247
        $region78: #{decoder_layer.4} parent=63 // pred_check_branch
          %432 = sbr.rel (%p430) target = $region80
        $region79: #{decoder_layer.4} parent=63 // pred_region
          %434 = dma.done [#allocation9], 256
        $region80: #{decoder_layer.4} parent=63 // pred_fallthru
          _
        %p435 = scmp.lt.s32.totalorder %s27, 1
        %s436 = scalar_select %p435, %s27, 1
        %s437 = smul.addr %s436, 8
        %s438 = scalar_lea.vmem %s0, %s437
        %p439 = pneg %p48
        %p440 = pneg %p45
        %p441 = scmp.lt.s32.totalorder %s27, 1
        %s442 = scalar_select %p441, %s27, 1
        %s443 = smul.addr %s442, 8
        %s444 = scalar_lea.vmem %s1, %s443
        %p445 = pneg %p74
        %p446 = pneg %p71
        %s447 = sand.u32 %s87, 1
        %s448 = scalar_lea.sflag [#allocation4], %s447
        %s449 = sand.u32 %s87, 1
        %s450 = smul.addr %s449, 8
        %s451 = scalar_lea.vmem [#allocation3], %s450
        %p452 = pneg %p100
        %p453 = pneg %p97
        %p454 = pneg %p121
        %p455 = pneg %p118
        %p456 = pneg %p142
        %p457 = pneg %p139
        %p458 = pneg %p163
        %p459 = pneg %p160
        %p460 = pneg %p184
        %p461 = pneg %p181
        %p462 = pneg %p205
        %p463 = pneg %p202
        %p464 = pneg %p226
        %p465 = pneg %p223
        %p466 = pneg %p247
        %p467 = pneg %p244
        %p468 = pneg %p268
        %p469 = pneg %p265
        %p470 = pneg %p294
        %p471 = pneg %p291
        %p472 = scmp.lt.s32.totalorder %s27, 1
        %s473 = scalar_select %p472, %s27, 1
        %s474 = smul.addr %s473, 8
        %s475 = scalar_lea.vmem %s11, %s474
        %p476 = scmp.lt.s32.totalorder %s27, 1
        %s477 = scalar_select %p476, %s27, 1
        %s478 = smul.addr %s477, 8
        %s479 = scalar_lea.vmem %s0, %s478
        %p480 = scmp.lt.s32.totalorder %s27, 1
        %s481 = scalar_select %p480, %s27, 1
        %s482 = smul.addr %s481, 8
        %s483 = scalar_lea.vmem %s1, %s482
        %p484 = scmp.lt.s32.totalorder %s27, 1
        %s485 = scalar_select %p484, %s27, 1
        %s486 = smul.addr %s485, 8
        %s487 = scalar_lea.vmem %s11, %s486
        %v489 = vld [vmem:[%s479] sm:$0xff]
        %v490 = vld [vmem:[%s3] sm:$0x1]
        %v491 = vld [vmem:[%s4] sm:$0x1]
        %vm492 = vcmask 261120
        %v493 = vsel %vm492, %v489, 0.0
        %494 = vadd.xlane.f32.xlu0 %v493
        %v495 = vpop.xlane.xlu0 %494
        %v496 = vrcp.pop 32.0
        %v497 = vmul.f32 32.0, %v496
        %v498 = vsub.f32 1.0, %v497
        %v499 = vmul.f32 %v496, %v498
        %v500 = vadd.f32 %v496, %v499
        %vm501 = vweird.f32 %v496
        %v502 = vsel %vm501, %v496, %v500
        %v503 = vmul.f32 %v495, %v502
        %v504 = vsub.f32 %v489, %v503
        %v505 = vmul.f32 %v504, %v504
        %v506 = vsel %vm492, %v505, 0.0
        %507 = vadd.xlane.f32.xlu0 %v506
        %v508 = vpop.xlane.xlu0 %507
        %v509 = vmul.f32 %v508, %v502
        %v510 = vadd.f32 %v509, 1e-06
        %v511 = vrsqrt.pop %v510
        %v512 = vmul.f32 %v511, %v510
        %v513 = vmul.f32 %v512, %v511
        %v514 = vmul.f32 0.5, %v513
        %v515 = vsub.f32 1.5, %v514
        %v516 = vmul.f32 %v511, %v515
        %vm517 = vweird.f32 %v510
        %vm518 = vweird.f32 %v511
        %vm519 = vmor %vm517, %vm518
        %v520 = vsel %vm519, %v511, %v516
        %v521 = vmul.f32 %v504, %v520
        %v523 = vperm.slane %v490, 0
        %v525 = vmul.f32 %v521, %v523
        %v527 = vperm.slane %v491, 0
        %v529 = vadd.f32 %v525, %v527
        %v530 = vpack.c.bf16 %v529, %v529
        %v531 = vld [vmem:[#allocation5] sm:$0xf]
        %v532 = vld [vmem:[#allocation5 + $0x4] sm:$0xf]
        %v533 = vld [vmem:[#allocation5 + $0x8] sm:$0xf]
        %v534 = vld [vmem:[#allocation5 + $0xc] sm:$0xf]
        %v535 = vld [vmem:[%s6] sm:$0x1]
        %v537 = vperm.slane %v535, 0
        %v543 = vunpack.c.l.b16 %v531
        %v544 = vunpack.c.l.b16 %v532
        %v545 = vunpack.c.l.b16 %v533
        %v546 = vunpack.c.l.b16 %v534
        %v547 = vpack.c.b16 %v544, %v543
        %v548 = vpack.c.b16 %v546, %v545
        %v552 = vsel %vm492, %v530, 0
        %554 = vmatpush.bf16.msra.mxu0 0
        %555 = vmatpush.bf16.msra.mxu0 0
        %556 = vmatpush.bf16.msra.mxu0 0
        %557 = vmatpush.bf16.msra.mxu0 0
        %558 = vmatpush.bf16.msra.mxu0 0
        %559 = vmatpush.bf16.msra.mxu0 0
        %560 = vmatpush.bf16.msra.mxu0 %v548
        %561 = vmatpush.bf16.msra.mxu0 %v547
        %562 = vmatmul.bf16.gmra.mxu0 %v552
        %v563 = vpop.f32.mrf.mxu0
        %v564 = vadd.f32 %v537, %v563
        %v565 = vpop.f32.mrf.mxu0
        %566 = vdwg.mxu0
        %v567 = vld [vmem:[%s483] sm:$0xff]
        %v568 = vpack.c.bf16 %v567, %v567
        %v569 = vld [vmem:[#allocation7] sm:$0xf]
        %v570 = vld [vmem:[#allocation7 + $0x4] sm:$0xf]
        %v571 = vld [vmem:[#allocation7 + $0x8] sm:$0xf]
        %v572 = vld [vmem:[#allocation7 + $0xc] sm:$0xf]
        %v573 = vld [vmem:[%s8] sm:$0x1]
        %v575 = vperm.slane %v573, 0
        %v581 = vunpack.c.l.b16 %v569
        %v582 = vunpack.c.l.b16 %v570
        %v583 = vunpack.c.l.b16 %v571
        %v584 = vunpack.c.l.b16 %v572
        %v585 = vpack.c.b16 %v582, %v581
        %v586 = vpack.c.b16 %v584, %v583
        %v590 = vsel %vm492, %v568, 0
        %592 = vmatpush.bf16.msra.mxu0 0
        %593 = vmatpush.bf16.msra.mxu0 0
        %594 = vmatpush.bf16.msra.mxu0 0
        %595 = vmatpush.bf16.msra.mxu0 0
        %596 = vmatpush.bf16.msra.mxu0 0
        %597 = vmatpush.bf16.msra.mxu0 0
        %598 = vmatpush.bf16.msra.mxu0 %v586
        %599 = vmatpush.bf16.msra.mxu0 %v585
        %600 = vmatmul.bf16.gmra.mxu0 %v590
        %v601 = vpop.f32.mrf.mxu0
        %v602 = vadd.f32 %v575, %v601
        %v603 = vpop.f32.mrf.mxu0
        %604 = vdwg.mxu0
        %v605 = vld [vmem:[%s414] sm:$0xff]
        %v606 = vpack.c.bf16 %v564, %v564
        %v607 = vpack.c.bf16 %v602, %v602
        %vm608 = vcmask 64512
        %v610 = vsel %vm608, %v606, 0
        %v613 = vsel %vm608, %v607, 0
        %615 = vmatpush.bf16.xpose.msra.mxu0 0
        %616 = vmatpush.bf16.xpose.msra.mxu0 0
        %617 = vmatpush.bf16.xpose.msra.mxu0 0
        %618 = vmatpush.bf16.xpose.msra.mxu0 0
        %619 = vmatpush.bf16.xpose.msra.mxu0 0
        %620 = vmatpush.bf16.xpose.msra.mxu0 0
        %621 = vmatpush.bf16.xpose.msra.mxu0 0
        %622 = vmatpush.bf16.xpose.msra.mxu0 %v613
        %623 = vmatmul.bf16.gmra.mxu0 %v610
        %v624 = vpop.f32.mrf.mxu0
        %v625 = vadd.f32 0.0, %v624
        %v626 = vpop.f32.mrf.mxu0
        %627 = vdwg.mxu0
        %v628 = vmul.f32 %v625, 0.35355338
        %vm629 = vcmp.eq.f32.partialorder %v605, 0.0
        %v630 = vsel %vm629, -1e+09, %v628
        %v631 = vsel %vm608, %v630, -inf
        %632 = vmax.xlane.f32.xlu0 %v631
        %v633 = vpop.xlane.xlu0 %632
        %v634 = vsub.f32 %v630, %v633
        %v635 = vmul.f32 %v634, 1.442695
        %v636 = vpow.pop %v635
        %v637 = vsel %vm608, %v636, 0.0
        %638 = vadd.xlane.f32.xlu0 %v637
        %v639 = vpop.xlane.xlu0 %638
        %v640 = vrcp.pop %v639
        %v641 = vmul.f32 %v636, %v640
        %v642 = vpack.c.bf16 %v641, %v641
        %v644 = vunpack.c.l.b16 %v607
        %v645 = vpack.c.b16 %v644, %v644
        %646 = vrot.lane.b32.xlu0 %v645, 96
        %v647 = vpop.permute.xlu0 %646
        %v649 = vsel %vm608, %v642, 0
        %vm651 = vcmask 1043456
        %v653 = vsel %vm651, %v647, 0
        %655 = vmatpush.bf16.msra.mxu0 0
        %656 = vmatpush.bf16.msra.mxu0 0
        %657 = vmatpush.bf16.msra.mxu0 0
        %658 = vmatpush.bf16.msra.mxu0 0
        %659 = vmatpush.bf16.msra.mxu0 0
        %660 = vmatpush.bf16.msra.mxu0 0
        %661 = vmatpush.bf16.msra.mxu0 0
        %662 = vmatpush.bf16.msra.mxu0 %v653
        %663 = vmatmul.bf16.gmra.mxu0 %v649
        %v664 = vpop.f32.mrf.mxu0
        %v665 = vadd.f32 0.0, %v664
        %v666 = vpop.f32.mrf.mxu0
        %667 = vdwg.mxu0
        %668 = vst.msk [vmem:[#allocation2] sm:$0xff] %vm608, %v665
        %v670 = vunpack.c.l.b16 %v606
        %v671 = vpack.c.b16 %v670, %v670
        %672 = vrot.lane.b32.xlu0 %v671, 120
        %v673 = vpop.permute.xlu0 %672
        %674 = vrot.lane.b32.xlu0 %v645, 120
        %v675 = vpop.permute.xlu0 %674
        %v677 = vsel %vm608, %v673, 0
        %v680 = vsel %vm608, %v675, 0
        %682 = vmatpush.bf16.xpose.msra.mxu0 0
        %683 = vmatpush.bf16.xpose.msra.mxu0 0
        %684 = vmatpush.bf16.xpose.msra.mxu0 0
        %685 = vmatpush.bf16.xpose.msra.mxu0 0
        %686 = vmatpush.bf16.xpose.msra.mxu0 0
        %687 = vmatpush.bf16.xpose.msra.mxu0 0
        %688 = vmatpush.bf16.xpose.msra.mxu0 0
        %689 = vmatpush.bf16.xpose.msra.mxu0 %v680
        %690 = vmatmul.bf16.gmra.mxu0 %v677
        %v691 = vpop.f32.mrf.mxu0
        %v692 = vadd.f32 0.0, %v691
        %v693 = vpop.f32.mrf.mxu0
        %694 = vdwg.mxu0
        %v695 = vmul.f32 %v692, 0.35355338
        %v696 = vsel %vm629, -1e+09, %v695
        %v697 = vsel %vm608, %v696, -inf
        %698 = vmax.xlane.f32.xlu0 %v697
        %v699 = vpop.xlane.xlu0 %698
        %v700 = vsub.f32 %v696, %v699
        %v701 = vmul.f32 %v700, 1.442695
        %v702 = vpow.pop %v701
        %v703 = vsel %vm608, %v702, 0.0
        %704 = vadd.xlane.f32.xlu0 %v703
        %v705 = vpop.xlane.xlu0 %704
        %v706 = vrcp.pop %v705
        %v707 = vmul.f32 %v702, %v706
        %v708 = vpack.c.bf16 %v707, %v707
        %709 = vrot.lane.b32.xlu0 %v645, 88
        %v710 = vpop.permute.xlu0 %709
        %v712 = vsel %vm608, %v708, 0
        %v715 = vsel %vm651, %v710, 0
        %717 = vmatpush.bf16.msra.mxu0 0
        %718 = vmatpush.bf16.msra.mxu0 0
        %719 = vmatpush.bf16.msra.mxu0 0
        %720 = vmatpush.bf16.msra.mxu0 0
        %721 = vmatpush.bf16.msra.mxu0 0
        %722 = vmatpush.bf16.msra.mxu0 0
        %723 = vmatpush.bf16.msra.mxu0 0
        %724 = vmatpush.bf16.msra.mxu0 %v715
        %725 = vmatmul.bf16.gmra.mxu0 %v712
        %v726 = vpop.f32.mrf.mxu0
        %v727 = vadd.f32 0.0, %v726
        %v728 = vpop.f32.mrf.mxu0
        %729 = vdwg.mxu0
        %731 = vrot.lane.b32.xlu0 %v727, 8
        %v732 = vpop.permute.xlu0 %731
        %vm734 = vcmask 130112
        %735 = vst.msk [vmem:[#allocation2] sm:$0xff] %vm734, %v732
        %736 = vrot.lane.b32.xlu0 %v671, 112
        %v737 = vpop.permute.xlu0 %736
        %738 = vrot.lane.b32.xlu0 %v645, 112
        %v739 = vpop.permute.xlu0 %738
        %v741 = vsel %vm608, %v737, 0
        %v744 = vsel %vm608, %v739, 0
        %746 = vmatpush.bf16.xpose.msra.mxu0 0
        %747 = vmatpush.bf16.xpose.msra.mxu0 0
        %748 = vmatpush.bf16.xpose.msra.mxu0 0
        %749 = vmatpush.bf16.xpose.msra.mxu0 0
        %750 = vmatpush.bf16.xpose.msra.mxu0 0
        %751 = vmatpush.bf16.xpose.msra.mxu0 0
        %752 = vmatpush.bf16.xpose.msra.mxu0 0
        %753 = vmatpush.bf16.xpose.msra.mxu0 %v744
        %754 = vmatmul.bf16.gmra.mxu0 %v741
        %v755 = vpop.f32.mrf.mxu0
        %v756 = vadd.f32 0.0, %v755
        %v757 = vpop.f32.mrf.mxu0
        %758 = vdwg.mxu0
        %v759 = vmul.f32 %v756, 0.35355338
        %v760 = vsel %vm629, -1e+09, %v759
        %v761 = vsel %vm608, %v760, -inf
        %762 = vmax.xlane.f32.xlu0 %v761
        %v763 = vpop.xlane.xlu0 %762
        %v764 = vsub.f32 %v760, %v763
        %v765 = vmul.f32 %v764, 1.442695
        %v766 = vpow.pop %v765
        %v767 = vsel %vm608, %v766, 0.0
        %768 = vadd.xlane.f32.xlu0 %v767
        %v769 = vpop.xlane.xlu0 %768
        %v770 = vrcp.pop %v769
        %v771 = vmul.f32 %v766, %v770
        %v772 = vpack.c.bf16 %v771, %v771
        %773 = vrot.lane.b32.xlu0 %v645, 80
        %v774 = vpop.permute.xlu0 %773
        %v776 = vsel %vm608, %v772, 0
        %v779 = vsel %vm651, %v774, 0
        %781 = vmatpush.bf16.msra.mxu0 0
        %782 = vmatpush.bf16.msra.mxu0 0
        %783 = vmatpush.bf16.msra.mxu0 0
        %784 = vmatpush.bf16.msra.mxu0 0
        %785 = vmatpush.bf16.msra.mxu0 0
        %786 = vmatpush.bf16.msra.mxu0 0
        %787 = vmatpush.bf16.msra.mxu0 0
        %788 = vmatpush.bf16.msra.mxu0 %v779
        %789 = vmatmul.bf16.gmra.mxu0 %v776
        %v790 = vpop.f32.mrf.mxu0
        %v791 = vadd.f32 0.0, %v790
        %v792 = vpop.f32.mrf.mxu0
        %793 = vdwg.mxu0
        %795 = vrot.lane.b32.xlu0 %v791, 16
        %v796 = vpop.permute.xlu0 %795
        %vm798 = vcmask 195712
        %799 = vst.msk [vmem:[#allocation2] sm:$0xff] %vm798, %v796
        %800 = vrot.lane.b32.xlu0 %v671, 104
        %v801 = vpop.permute.xlu0 %800
        %802 = vrot.lane.b32.xlu0 %v645, 104
        %v803 = vpop.permute.xlu0 %802
        %v805 = vsel %vm608, %v801, 0
        %v808 = vsel %vm608, %v803, 0
        %810 = vmatpush.bf16.xpose.msra.mxu0 0
        %811 = vmatpush.bf16.xpose.msra.mxu0 0
        %812 = vmatpush.bf16.xpose.msra.mxu0 0
        %813 = vmatpush.bf16.xpose.msra.mxu0 0
        %814 = vmatpush.bf16.xpose.msra.mxu0 0
        %815 = vmatpush.bf16.xpose.msra.mxu0 0
        %816 = vmatpush.bf16.xpose.msra.mxu0 0
        %817 = vmatpush.bf16.xpose.msra.mxu0 %v808
        %818 = vmatmul.bf16.gmra.mxu0 %v805
        %v819 = vpop.f32.mrf.mxu0
        %v820 = vadd.f32 0.0, %v819
        %v821 = vpop.f32.mrf.mxu0
        %822 = vdwg.mxu0
        %v823 = vmul.f32 %v820, 0.35355338
        %v824 = vsel %vm629, -1e+09, %v823
        %v825 = vsel %vm608, %v824, -inf
        %826 = vmax.xlane.f32.xlu0 %v825
        %v827 = vpop.xlane.xlu0 %826
        %v828 = vsub.f32 %v824, %v827
        %v829 = vmul.f32 %v828, 1.442695
        %v830 = vpow.pop %v829
        %v831 = vsel %vm608, %v830, 0.0
        %832 = vadd.xlane.f32.xlu0 %v831
        %v833 = vpop.xlane.xlu0 %832
        %v834 = vrcp.pop %v833
        %v835 = vmul.f32 %v830, %v834
        %v836 = vpack.c.bf16 %v835, %v835
        %837 = vrot.lane.b32.xlu0 %v645, 72
        %v838 = vpop.permute.xlu0 %837
        %v840 = vsel %vm608, %v836, 0
        %v843 = vsel %vm651, %v838, 0
        %845 = vmatpush.bf16.msra.mxu0 0
        %846 = vmatpush.bf16.msra.mxu0 0
        %847 = vmatpush.bf16.msra.mxu0 0
        %848 = vmatpush.bf16.msra.mxu0 0
        %849 = vmatpush.bf16.msra.mxu0 0
        %850 = vmatpush.bf16.msra.mxu0 0
        %851 = vmatpush.bf16.msra.mxu0 0
        %852 = vmatpush.bf16.msra.mxu0 %v843
        %853 = vmatmul.bf16.gmra.mxu0 %v840
        %v854 = vpop.f32.mrf.mxu0
        %v855 = vadd.f32 0.0, %v854
        %v856 = vpop.f32.mrf.mxu0
        %857 = vdwg.mxu0
        %859 = vrot.lane.b32.xlu0 %v855, 24
        %v860 = vpop.permute.xlu0 %859
        %vm862 = vcmask 261312
        %863 = vst.msk [vmem:[#allocation2] sm:$0xff] %vm862, %v860
        %v864 = vld [vmem:[#allocation2] sm:$0xff]
        %v865 = vpack.c.bf16 %v864, %v864
        %v866 = vld [vmem:[#allocation8] sm:$0xf]
        %v867 = vld [vmem:[#allocation8 + $0x4] sm:$0xf]
        %v868 = vld [vmem:[#allocation8 + $0x8] sm:$0xf]
        %v869 = vld [vmem:[#allocation8 + $0xc] sm:$0xf]
        %v870 = vld [vmem:[%s10] sm:$0x1]
        %v872 = vperm.slane %v870, 0
        %v878 = vunpack.c.l.b16 %v866
        %v879 = vunpack.c.l.b16 %v867
        %v880 = vunpack.c.l.b16 %v868
        %v881 = vunpack.c.l.b16 %v869
        %v882 = vpack.c.b16 %v879, %v878
        %v883 = vpack.c.b16 %v881, %v880
        %v887 = vsel %vm492, %v865, 0
        %889 = vmatpush.bf16.msra.mxu0 0
        %890 = vmatpush.bf16.msra.mxu0 0
        %891 = vmatpush.bf16.msra.mxu0 0
        %892 = vmatpush.bf16.msra.mxu0 0
        %893 = vmatpush.bf16.msra.mxu0 0
        %894 = vmatpush.bf16.msra.mxu0 0
        %895 = vmatpush.bf16.msra.mxu0 %v883
        %896 = vmatpush.bf16.msra.mxu0 %v882
        %897 = vmatmul.bf16.gmra.mxu0 %v887
        %v898 = vpop.f32.mrf.mxu0
        %v899 = vadd.f32 %v872, %v898
        %v900 = vpop.f32.mrf.mxu0
        %901 = vdwg.mxu0
        %v902 = vadd.f32 %v489, %v899
        %903 = vst.msk [vmem:[%s487] sm:$0xff] %vm492, %v902
        %p904 = scmp.lt.s32.totalorder %s27, 1
        %s905 = scalar_select %p904, %s27, 1
        %s906 = smul.addr %s905, 8
        %s907 = scalar_lea.vmem %s11, %s906
        // Predicated region
        $region81: #{decoder_layer.4} parent=63 // pred_check
          %p908 = pneg %p291
        $region82: #{decoder_layer.4} parent=63 // pred_check_branch
          %910 = sbr.rel (%p908) target = $region84
        $region83: #{decoder_layer.4} parent=63 // pred_region
          _
        $region84: #{decoder_layer.4} parent=63 // pred_fallthru
          _
      $region64: #{decoder_layer.4} parent=5 // pred_fallthru
        _
      %p911 = scmp.le.s32.totalorder 2, %s22
      // Predicated region
      $region85: #{decoder_layer.4} parent=5 // pred_check
        %p912 = pneg %p911
      $region86: #{decoder_layer.4} parent=5 // pred_check_branch
        %914 = sbr.rel (%p912) target = $region88
      $region87: #{decoder_layer.4} parent=5 // pred_region
        %s915 = ssub.s32 %s22, 2
        // Predicated region
        $region89: #{decoder_layer.4} parent=87 // pred_check
          %p916 = pneg %p297
        $region90: #{decoder_layer.4} parent=87 // pred_check_branch
          %918 = sbr.rel (%p916) target = $region92
        $region91: #{decoder_layer.4} parent=87 // pred_region
          %p919 = scmp.lt.s32.totalorder %s28, 1
          %s920 = scalar_select %p919, %s28, 1
          %s921 = smul.addr %s920, 8
          %s922 = scalar_lea.vmem %s11, %s921
        $region92: #{decoder_layer.4} parent=87 // pred_fallthru
          _
      $region88: #{decoder_layer.4} parent=5 // pred_fallthru
        _
    $region6: #{decoder_layer.4} parent=1 // loop_footer
      %s26 = sadd.s32 1, %s22
    $region7: #{decoder_layer.4} parent=1 // loop_footer_branch
      %21 = sbr.rel target = $region3
    $region8: #{decoder_layer.4} parent=1 // loop_exit
      _
    %923 = vsyncpa [#allocation4], 1
    %s924 = scalar_lea.sflag [#allocation4], 1
    %925 = vsyncpa %s924, 1
    %926 = vsyncpa [#allocation6], 1
    %927 = vsyncpa [#allocation9], 1

// kernel: decoder_layer.3
$region0: #{decoder_layer.3}
  #allocation0 [shape = 'u32[]', space=smem, size = 0x4, offset = 0x4, fixed_abs, tag = 'smem constant byte address 0x4 - core index']
  #allocation1 [shape = 'u32[72,128]{1,0:T(1,128)}', space=vmem, size = 0x9000, scoped, tag = 'internal scratch']
  #allocation2 [shape = 'f32[8,32]{1,0:T(8,128)}', space=vmem, size = 0x1000, scoped, tag = 'scratch operand']
  %s0 = inlined_call_operand.hbm [shape: f32[2,8,32], index: 0, kind: input, shape index: {}, may-alias: {0,1}]
  %s1 = inlined_call_operand.hbm [shape: f32[2,8,32], index: 1, kind: input, shape index: {}, may-alias: {0,1}]
  %s2 = inlined_call_operand.hbm [shape: f32[2,1,8,8], index: 2, kind: input, shape index: {}]
  %s3 = inlined_call_operand.vmem [shape: f32[1,32], index: 3, kind: input, shape index: {}]
  %s4 = inlined_call_operand.vmem [shape: f32[1,32], index: 4, kind: input, shape index: {}]
  %s5 = inlined_call_operand.vmem [shape: bf16[32,32], index: 5, kind: input, shape index: {}]
  %s6 = inlined_call_operand.hbm [shape: f32[1,32], index: 6, kind: input, shape index: {}]
  %s7 = inlined_call_operand.hbm [shape: bf16[32,64], index: 7, kind: input, shape index: {}]
  %s8 = inlined_call_operand.hbm [shape: f32[1,64], index: 8, kind: input, shape index: {}]
  %s9 = inlined_call_operand.hbm [shape: bf16[32,32], index: 9, kind: input, shape index: {}]
  %s10 = inlined_call_operand.hbm [shape: f32[1,32], index: 10, kind: input, shape index: {}]
  %s11 = inlined_call_operand.vmem [shape: f32[2,8,32], index: 11, kind: output, shape index: {}]
  %s12 = sld [smem:[#allocation0]]
  $region109: #{decoder_layer.3} parent=0
    _
  %s14 = ssub.s32 1, %s12
  %s15 = scalar_select 0, %s14, %s12
  $region1: #{decoder_layer.3} parent=0
    #allocation3 [shape = 'u8[8192]{0}', space=vmem, size = 0x2000, scoped, tag = 'input window, operand 0']
    #allocation4 [shape = 's32[2]{0}', space=sflag, size = 0x8, scoped, tag = 'scoped memory for decoder_layer.3']
    #allocation5 [shape = 'u8[8192]{0}', space=vmem, size = 0x2000, scoped, tag = 'input window, operand 1']
    #allocation6 [shape = 's32[2]{0}', space=sflag, size = 0x8, scoped, tag = 'scoped memory for decoder_layer.3']
    #allocation7 [shape = 'u8[8192]{0}', space=vmem, size = 0x2000, scoped, tag = 'input window, operand 2']
    #allocation8 [shape = 'u8[512]{0}', space=vmem, size = 0x400, scoped, tag = 'input window, operand 6, single buffered']
    #allocation9 [shape = 's32[1]{0}', space=sflag, size = 0x4, scoped, tag = 'scoped memory for decoder_layer.3']
    #allocation10 [shape = 'u8[8192]{0}', space=vmem, size = 0x2000, scoped, tag = 'input window, operand 7, single buffered']
    #allocation11 [shape = 'u8[512]{0}', space=vmem, size = 0x400, scoped, tag = 'input window, operand 8, single buffered']
    #allocation12 [shape = 's32[1]{0}', space=sflag, size = 0x4, scoped, tag = 'scoped memory for decoder_layer.3']
    #allocation13 [shape = 'u8[8192]{0}', space=vmem, size = 0x2000, scoped, tag = 'input window, operand 9, single buffered']
    #allocation14 [shape = 'u8[512]{0}', space=vmem, size = 0x400, scoped, tag = 'input window, operand 10, single buffered']
    #allocation15 [shape = 's32[1]{0}', space=sflag, size = 0x4, scoped, tag = 'scoped memory for decoder_layer.3']
    %16 = vsyncpa [#allocation4], 0
    %s17 = scalar_lea.sflag [#allocation4], 1
    %18 = vsyncpa %s17, 0
    %19 = vsyncpa [#allocation6], 0
    %s20 = scalar_lea.sflag [#allocation6], 1
    %21 = vsyncpa %s20, 0
    %22 = vsyncpa [#allocation9], 0
    %23 = vsyncpa [#allocation12], 0
    %24 = vsyncpa [#allocation15], 0
    loop: start=0, step=1, limit=4
    $region2: #{decoder_layer.3} parent=1 // loop_pre_header
      _
    $region3: #{decoder_layer.3} parent=1 // loop_header
      %s26 = sphi 0, %s30
      %p27 = scmp.ge.s32.totalorder %s26, 4
      %s36 = sphi 0, %s38
      %s39 = sphi 0, %s36
      %s40 = sphi 0, %s39
      %s56 = sphi 0, %s40
      %s62 = sphi 0, %s64
      %s65 = sphi 0, %s62
      %s66 = sphi 0, %s65
      %s82 = sphi 0, %s66
      %s88 = sphi 0, %s90
      %s91 = sphi 0, %s88
      %s92 = sphi 0, %s91
      %s108 = sphi 0, %s92
      %s112 = sphi 0, %s112
      %s114 = sphi 0, %s112
      %s115 = sphi 0, %s114
      %s129 = sphi 0, %s115
      %s133 = sphi 0, %s133
      %s135 = sphi 0, %s133
      %s136 = sphi 0, %s135
      %s150 = sphi 0, %s136
      %s154 = sphi 0, %s154
      %s156 = sphi 0, %s154
      %s157 = sphi 0, %s156
      %s171 = sphi 0, %s157
      %s175 = sphi 0, %s175
      %s177 = sphi 0, %s175
      %s178 = sphi 0, %s177
      %s192 = sphi 0, %s178
      %s196 = sphi 0, %s196
      %s198 = sphi 0, %s196
      %s199 = sphi 0, %s198
      %s213 = sphi 0, %s199
      %s217 = sphi 0, %s217
      %s219 = sphi 0, %s217
      %s220 = sphi 0, %s219
      %s234 = sphi 0, %s220
      %s238 = sphi 0, %s238
      %s240 = sphi 0, %s238
      %s241 = sphi 0, %s240
      %s255 = sphi 0, %s241
      %s259 = sphi 0, %s259
      %s261 = sphi 0, %s259
      %s262 = sphi 0, %s261
      %s276 = sphi 0, %s262
      %s282 = sphi 0, %s284
      %s285 = sphi 0, %s282
      %s286 = sphi 0, %s285
      %s302 = sphi 0, %s286
    $region4: #{decoder_layer.3} parent=1 // loop_header_branch
      %29 = sbr.rel (%p27) target = $region8
    $region5: #{decoder_layer.3} parent=1 // loop_body
      %s31 = ssub.s32 %s26, 1
      %s32 = ssub.s32 %s26, 2
      %s33 = sadd.s32 %s26, 1
      %s34 = ssub.s32 %s26, %s33
      %p35 = scmp.eq.s32.totalorder %s34, 0
      %s37 = sadd.s32 %s36, 1
      %s38 = scalar_select %p35, %s36, %s37
      %p41 = pneg %p35
      %p42 = scmp.eq.s32.totalorder %s26, 1
      %p43 = por %p41, %p42
      %p44 = scmp.ne.s32.totalorder %s36, %s39
      %p45 = scmp.eq.s32.totalorder %s26, 0
      %p46 = por %p44, %p45
      %p47 = scmp.ne.s32.totalorder %s36, %s39
      %p48 = scmp.eq.s32.totalorder %s31, 1
      %p49 = por %p47, %p48
      %p50 = scmp.ne.s32.totalorder %s39, %s40
      %p51 = scmp.eq.s32.totalorder %s31, 0
      %p52 = por %p50, %p51
      %p53 = scmp.ne.s32.totalorder %s39, %s40
      %p54 = scmp.eq.s32.totalorder %s32, 1
      %p55 = por %p53, %p54
      %p57 = scmp.ne.s32.totalorder %s40, %s56
      %p58 = scmp.eq.s32.totalorder %s32, 0
      %p59 = por %p57, %p58
      %s60 = ssub.s32 %s26, %s33
      %p61 = scmp.eq.s32.totalorder %s60, 0
      %s63 = sadd.s32 %s62, 1
      %s64 = scalar_select %p61, %s62, %s63
      %p67 = pneg %p61
      %p68 = scmp.eq.s32.totalorder %s26, 1
      %p69 = por %p67, %p68
      %p70 = scmp.ne.s32.totalorder %s62, %s65
      %p71 = scmp.eq.s32.totalorder %s26, 0
      %p72 = por %p70, %p71
      %p73 = scmp.ne.s32.totalorder %s62, %s65
      %p74 = scmp.eq.s32.totalorder %s31, 1
      %p75 = por %p73, %p74
      %p76 = scmp.ne.s32.totalorder %s65, %s66
      %p77 = scmp.eq.s32.totalorder %s31, 0
      %p78 = por %p76, %p77
      %p79 = scmp.ne.s32.totalorder %s65, %s66
      %p80 = scmp.eq.s32.totalorder %s32, 1
      %p81 = por %p79, %p80
      %p83 = scmp.ne.s32.totalorder %s66, %s82
      %p84 = scmp.eq.s32.totalorder %s32, 0
      %p85 = por %p83, %p84
      %s86 = ssub.s32 %s26, %s33
      %p87 = scmp.eq.s32.totalorder %s86, 0
      %s89 = sadd.s32 %s88, 1
      %s90 = scalar_select %p87, %s88, %s89
      %p93 = pneg %p87
      %p94 = scmp.eq.s32.totalorder %s26, 1
      %p95 = por %p93, %p94
      %p96 = scmp.ne.s32.totalorder %s88, %s91
      %p97 = scmp.eq.s32.totalorder %s26, 0
      %p98 = por %p96, %p97
      %p99 = scmp.ne.s32.totalorder %s88, %s91
      %p100 = scmp.eq.s32.totalorder %s31, 1
      %p101 = por %p99, %p100
      %p102 = scmp.ne.s32.totalorder %s91, %s92
      %p103 = scmp.eq.s32.totalorder %s31, 0
      %p104 = por %p102, %p103
      %p105 = scmp.ne.s32.totalorder %s91, %s92
      %p106 = scmp.eq.s32.totalorder %s32, 1
      %p107 = por %p105, %p106
      %p109 = scmp.ne.s32.totalorder %s92, %s108
      %p110 = scmp.eq.s32.totalorder %s32, 0
      %p111 = por %p109, %p110
      %s113 = sadd.s32 %s112, 1
      %p116 = scmp.eq.s32.totalorder %s26, 1
      %p117 = scmp.ne.s32.totalorder %s112, %s114
      %p118 = scmp.eq.s32.totalorder %s26, 0
      %p119 = por %p117, %p118
      %p120 = scmp.ne.s32.totalorder %s112, %s114
      %p121 = scmp.eq.s32.totalorder %s31, 1
      %p122 = por %p120, %p121
      %p123 = scmp.ne.s32.totalorder %s114, %s115
      %p124 = scmp.eq.s32.totalorder %s31, 0
      %p125 = por %p123, %p124
      %p126 = scmp.ne.s32.totalorder %s114, %s115
      %p127 = scmp.eq.s32.totalorder %s32, 1
      %p128 = por %p126, %p127
      %p130 = scmp.ne.s32.totalorder %s115, %s129
      %p131 = scmp.eq.s32.totalorder %s32, 0
      %p132 = por %p130, %p131
      %s134 = sadd.s32 %s133, 1
      %p137 = scmp.eq.s32.totalorder %s26, 1
      %p138 = scmp.ne.s32.totalorder %s133, %s135
      %p139 = scmp.eq.s32.totalorder %s26, 0
      %p140 = por %p138, %p139
      %p141 = scmp.ne.s32.totalorder %s133, %s135
      %p142 = scmp.eq.s32.totalorder %s31, 1
      %p143 = por %p141, %p142
      %p144 = scmp.ne.s32.totalorder %s135, %s136
      %p145 = scmp.eq.s32.totalorder %s31, 0
      %p146 = por %p144, %p145
      %p147 = scmp.ne.s32.totalorder %s135, %s136
      %p148 = scmp.eq.s32.totalorder %s32, 1
      %p149 = por %p147, %p148
      %p151 = scmp.ne.s32.totalorder %s136, %s150
      %p152 = scmp.eq.s32.totalorder %s32, 0
      %p153 = por %p151, %p152
      %s155 = sadd.s32 %s154, 1
      %p158 = scmp.eq.s32.totalorder %s26, 1
      %p159 = scmp.ne.s32.totalorder %s154, %s156
      %p160 = scmp.eq.s32.totalorder %s26, 0
      %p161 = por %p159, %p160
      %p162 = scmp.ne.s32.totalorder %s154, %s156
      %p163 = scmp.eq.s32.totalorder %s31, 1
      %p164 = por %p162, %p163
      %p165 = scmp.ne.s32.totalorder %s156, %s157
      %p166 = scmp.eq.s32.totalorder %s31, 0
      %p167 = por %p165, %p166
      %p168 = scmp.ne.s32.totalorder %s156, %s157
      %p169 = scmp.eq.s32.totalorder %s32, 1
      %p170 = por %p168, %p169
      %p172 = scmp.ne.s32.totalorder %s157, %s171
      %p173 = scmp.eq.s32.totalorder %s32, 0
      %p174 = por %p172, %p173
      %s176 = sadd.s32 %s175, 1
      %p179 = scmp.eq.s32.totalorder %s26, 1
      %p180 = scmp.ne.s32.totalorder %s175, %s177
      %p181 = scmp.eq.s32.totalorder %s26, 0
      %p182 = por %p180, %p181
      %p183 = scmp.ne.s32.totalorder %s175, %s177
      %p184 = scmp.eq.s32.totalorder %s31, 1
      %p185 = por %p183, %p184
      %p186 = scmp.ne.s32.totalorder %s177, %s178
      %p187 = scmp.eq.s32.totalorder %s31, 0
      %p188 = por %p186, %p187
      %p189 = scmp.ne.s32.totalorder %s177, %s178
      %p190 = scmp.eq.s32.totalorder %s32, 1
      %p191 = por %p189, %p190
      %p193 = scmp.ne.s32.totalorder %s178, %s192
      %p194 = scmp.eq.s32.totalorder %s32, 0
      %p195 = por %p193, %p194
      %s197 = sadd.s32 %s196, 1
      %p200 = scmp.eq.s32.totalorder %s26, 1
      %p201 = scmp.ne.s32.totalorder %s196, %s198
      %p202 = scmp.eq.s32.totalorder %s26, 0
      %p203 = por %p201, %p202
      %p204 = scmp.ne.s32.totalorder %s196, %s198
      %p205 = scmp.eq.s32.totalorder %s31, 1
      %p206 = por %p204, %p205
      %p207 = scmp.ne.s32.totalorder %s198, %s199
      %p208 = scmp.eq.s32.totalorder %s31, 0
      %p209 = por %p207, %p208
      %p210 = scmp.ne.s32.totalorder %s198, %s199
      %p211 = scmp.eq.s32.totalorder %s32, 1
      %p212 = por %p210, %p211
      %p214 = scmp.ne.s32.totalorder %s199, %s213
      %p215 = scmp.eq.s32.totalorder %s32, 0
      %p216 = por %p214, %p215
      %s218 = sadd.s32 %s217, 1
      %p221 = scmp.eq.s32.totalorder %s26, 1
      %p222 = scmp.ne.s32.totalorder %s217, %s219
      %p223 = scmp.eq.s32.totalorder %s26, 0
      %p224 = por %p222, %p223
      %p225 = scmp.ne.s32.totalorder %s217, %s219
      %p226 = scmp.eq.s32.totalorder %s31, 1
      %p227 = por %p225, %p226
      %p228 = scmp.ne.s32.totalorder %s219, %s220
      %p229 = scmp.eq.s32.totalorder %s31, 0
      %p230 = por %p228, %p229
      %p231 = scmp.ne.s32.totalorder %s219, %s220
      %p232 = scmp.eq.s32.totalorder %s32, 1
      %p233 = por %p231, %p232
      %p235 = scmp.ne.s32.totalorder %s220, %s234
      %p236 = scmp.eq.s32.totalorder %s32, 0
      %p237 = por %p235, %p236
      %s239 = sadd.s32 %s238, 1
      %p242 = scmp.eq.s32.totalorder %s26, 1
      %p243 = scmp.ne.s32.totalorder %s238, %s240
      %p244 = scmp.eq.s32.totalorder %s26, 0
      %p245 = por %p243, %p244
      %p246 = scmp.ne.s32.totalorder %s238, %s240
      %p247 = scmp.eq.s32.totalorder %s31, 1
      %p248 = por %p246, %p247
      %p249 = scmp.ne.s32.totalorder %s240, %s241
      %p250 = scmp.eq.s32.totalorder %s31, 0
      %p251 = por %p249, %p250
      %p252 = scmp.ne.s32.totalorder %s240, %s241
      %p253 = scmp.eq.s32.totalorder %s32, 1
      %p254 = por %p252, %p253
      %p256 = scmp.ne.s32.totalorder %s241, %s255
      %p257 = scmp.eq.s32.totalorder %s32, 0
      %p258 = por %p256, %p257
      %s260 = sadd.s32 %s259, 1
      %p263 = scmp.eq.s32.totalorder %s26, 1
      %p264 = scmp.ne.s32.totalorder %s259, %s261
      %p265 = scmp.eq.s32.totalorder %s26, 0
      %p266 = por %p264, %p265
      %p267 = scmp.ne.s32.totalorder %s259, %s261
      %p268 = scmp.eq.s32.totalorder %s31, 1
      %p269 = por %p267, %p268
      %p270 = scmp.ne.s32.totalorder %s261, %s262
      %p271 = scmp.eq.s32.totalorder %s31, 0
      %p272 = por %p270, %p271
      %p273 = scmp.ne.s32.totalorder %s261, %s262
      %p274 = scmp.eq.s32.totalorder %s32, 1
      %p275 = por %p273, %p274
      %p277 = scmp.ne.s32.totalorder %s262, %s276
      %p278 = scmp.eq.s32.totalorder %s32, 0
      %p279 = por %p277, %p278
      %s280 = ssub.s32 %s26, %s33
      %p281 = scmp.eq.s32.totalorder %s280, 0
      %s283 = sadd.s32 %s282, 1
      %s284 = scalar_select %p281, %s282, %s283
      %p287 = pneg %p281
      %p288 = scmp.eq.s32.totalorder %s26, 1
      %p289 = por %p287, %p288
      %p290 = scmp.ne.s32.totalorder %s282, %s285
      %p291 = scmp.eq.s32.totalorder %s26, 0
      %p292 = por %p290, %p291
      %p293 = scmp.ne.s32.totalorder %s282, %s285
      %p294 = scmp.eq.s32.totalorder %s31, 1
      %p295 = por %p293, %p294
      %p296 = scmp.ne.s32.totalorder %s285, %s286
      %p297 = scmp.eq.s32.totalorder %s31, 0
      %p298 = por %p296, %p297
      %p299 = scmp.ne.s32.totalorder %s285, %s286
      %p300 = scmp.eq.s32.totalorder %s32, 1
      %p301 = por %p299, %p300
      %p303 = scmp.ne.s32.totalorder %s286, %s302
      %p304 = scmp.eq.s32.totalorder %s32, 0
      %p305 = por %p303, %p304
      %p306 = scmp.le.s32.totalorder 1, %s26
      %p307 = scmp.lt.s32.totalorder %s26, 3
      %p308 = pnand %p306, %p307
      %p309 = pneg %p308
      // Predicated region
      $region9: #{decoder_layer.3} parent=5 // pred_check
        _
      $region10: #{decoder_layer.3} parent=5 // pred_check_branch
        %311 = sbr.rel (%p308) target = $region12
      $region11: #{decoder_layer.3} parent=5 // pred_region
        %s312 = ssub.s32 %s26, 1
        // Predicated region
        $region13: #{decoder_layer.3} parent=11 // pred_check
          %p313 = pneg %p125
        $region14: #{decoder_layer.3} parent=11 // pred_check_branch
          %315 = sbr.rel (%p313) target = $region16
        $region15: #{decoder_layer.3} parent=11 // pred_region
          _
        $region16: #{decoder_layer.3} parent=11 // pred_fallthru
          _
        // Predicated region
        $region17: #{decoder_layer.3} parent=11 // pred_check
          %p316 = pneg %p146
        $region18: #{decoder_layer.3} parent=11 // pred_check_branch
          %318 = sbr.rel (%p316) target = $region20
        $region19: #{decoder_layer.3} parent=11 // pred_region
          _
        $region20: #{decoder_layer.3} parent=11 // pred_fallthru
          _
        // Predicated region
        $region21: #{decoder_layer.3} parent=11 // pred_check
          %p319 = pneg %p167
        $region22: #{decoder_layer.3} parent=11 // pred_check_branch
          %321 = sbr.rel (%p319) target = $region24
        $region23: #{decoder_layer.3} parent=11 // pred_region
          _
        $region24: #{decoder_layer.3} parent=11 // pred_fallthru
          _
        // Predicated region
        $region25: #{decoder_layer.3} parent=11 // pred_check
          %p322 = pneg %p188
        $region26: #{decoder_layer.3} parent=11 // pred_check_branch
          %324 = sbr.rel (%p322) target = $region28
        $region27: #{decoder_layer.3} parent=11 // pred_region
          %326 = vsyncadd [#allocation9], 0
          %s328 = sshll.u32 %s6, 4
          %s329 = int_to_ptr.hbm [resolvable:$true] %s328
          %s330 = sshll.u32 [#allocation8], 4
          %s331 = int_to_ptr.vmem [resolvable:$true] %s330
          %333 = dma.hbm_to_vmem [thread:$0]  %s329, 16, %s331, [#allocation9]
        $region28: #{decoder_layer.3} parent=11 // pred_fallthru
          _
        // Predicated region
        $region29: #{decoder_layer.3} parent=11 // pred_check
          %p334 = pneg %p209
        $region30: #{decoder_layer.3} parent=11 // pred_check_branch
          %336 = sbr.rel (%p334) target = $region32
        $region31: #{decoder_layer.3} parent=11 // pred_region
          %338 = vsyncadd [#allocation9], 0
          %s339 = sshll.u32 %s7, 4
          %s340 = int_to_ptr.hbm [resolvable:$true] %s339
          %s341 = sshll.u32 [#allocation10], 4
          %s342 = int_to_ptr.vmem [resolvable:$true] %s341
          %347 = dma.hbm_to_vmem [thread:$0]  %s340, 256, %s342, [#allocation9], 64, 64, 4
        $region32: #{decoder_layer.3} parent=11 // pred_fallthru
          _
        // Predicated region
        $region33: #{decoder_layer.3} parent=11 // pred_check
          %p348 = pneg %p230
        $region34: #{decoder_layer.3} parent=11 // pred_check_branch
          %350 = sbr.rel (%p348) target = $region36
        $region35: #{decoder_layer.3} parent=11 // pred_region
          %352 = vsyncadd [#allocation12], 0
          %s354 = sshll.u32 %s8, 4
          %s355 = int_to_ptr.hbm [resolvable:$true] %s354
          %s356 = sshll.u32 [#allocation11], 4
          %s357 = int_to_ptr.vmem [resolvable:$true] %s356
          %359 = dma.hbm_to_vmem [thread:$0]  %s355, 16, %s357, [#allocation12]
        $region36: #{decoder_layer.3} parent=11 // pred_fallthru
          _
        // Predicated region
        $region37: #{decoder_layer.3} parent=11 // pred_check
          %p360 = pneg %p251
        $region38: #{decoder_layer.3} parent=11 // pred_check_branch
          %362 = sbr.rel (%p360) target = $region40
        $region39: #{decoder_layer.3} parent=11 // pred_region
          %364 = vsyncadd [#allocation12], 0
          %s365 = sshll.u32 %s9, 4
          %s366 = int_to_ptr.hbm [resolvable:$true] %s365
          %s367 = sshll.u32 [#allocation13], 4
          %s368 = int_to_ptr.vmem [resolvable:$true] %s367
          %373 = dma.hbm_to_vmem [thread:$0]  %s366, 256, %s368, [#allocation12], 64, 64, 4
        $region40: #{decoder_layer.3} parent=11 // pred_fallthru
          _
        // Predicated region
        $region41: #{decoder_layer.3} parent=11 // pred_check
          %p374 = pneg %p272
        $region42: #{decoder_layer.3} parent=11 // pred_check_branch
          %376 = sbr.rel (%p374) target = $region44
        $region43: #{decoder_layer.3} parent=11 // pred_region
          %378 = vsyncadd [#allocation15], 0
          %s380 = sshll.u32 %s10, 4
          %s381 = int_to_ptr.hbm [resolvable:$true] %s380
          %s382 = sshll.u32 [#allocation14], 4
          %s383 = int_to_ptr.vmem [resolvable:$true] %s382
          %385 = dma.hbm_to_vmem [thread:$0]  %s381, 16, %s383, [#allocation15]
        $region44: #{decoder_layer.3} parent=11 // pred_fallthru
          _
      $region12: #{decoder_layer.3} parent=5 // pred_fallthru
        _
      %p386 = scmp.lt.s32.totalorder %s26, 2
      // Predicated region
      $region45: #{decoder_layer.3} parent=5 // pred_check
        %p387 = pneg %p386
      $region46: #{decoder_layer.3} parent=5 // pred_check_branch
        %389 = sbr.rel (%p387) target = $region48
      $region47: #{decoder_layer.3} parent=5 // pred_region
        // Predicated region
        $region49: #{decoder_layer.3} parent=47 // pred_check
          %p390 = pneg %p46
        $region50: #{decoder_layer.3} parent=47 // pred_check_branch
          %392 = sbr.rel (%p390) target = $region52
        $region51: #{decoder_layer.3} parent=47 // pred_region
          %s393 = sand.u32 %s36, 1
          %s394 = scalar_lea.sflag [#allocation4], %s393
          %s395 = sand.u32 %s36, 1
          %s396 = smul.addr %s395, 8
          %s397 = scalar_lea.vmem [#allocation3], %s396
          %399 = vsyncadd %s394, 0
          %s400 = smul.addr %s26, 8
          %s401 = scalar_lea.hbm %s0, %s400
          %s403 = sshll.u32 %s401, 4
          %s404 = int_to_ptr.hbm [resolvable:$true] %s403
          %s405 = sshll.u32 %s397, 4
          %s406 = int_to_ptr.vmem [resolvable:$true] %s405
          %408 = dma.hbm_to_vmem [thread:$0]  %s404, 128, %s406, %s394
        $region52: #{decoder_layer.3} parent=47 // pred_fallthru
          _
        // Predicated region
        $region53: #{decoder_layer.3} parent=47 // pred_check
          %p409 = pneg %p72
        $region54: #{decoder_layer.3} parent=47 // pred_check_branch
          %411 = sbr.rel (%p409) target = $region56
        $region55: #{decoder_layer.3} parent=47 // pred_region
          %s412 = sand.u32 %s26, 1
          %s413 = scalar_lea.sflag [#allocation6], %s412
          %s414 = sand.u32 %s62, 1
          %s415 = smul.addr %s414, 8
          %s416 = scalar_lea.vmem [#allocation5], %s415
          %418 = vsyncadd %s413, 0
          %s419 = smul.addr %s26, 8
          %s420 = scalar_lea.hbm %s1, %s419
          %s422 = sshll.u32 %s420, 4
          %s423 = int_to_ptr.hbm [resolvable:$true] %s422
          %s424 = sshll.u32 %s416, 4
          %s425 = int_to_ptr.vmem [resolvable:$true] %s424
          %427 = dma.hbm_to_vmem [thread:$0]  %s423, 128, %s425, %s413
        $region56: #{decoder_layer.3} parent=47 // pred_fallthru
          _
        // Predicated region
        $region57: #{decoder_layer.3} parent=47 // pred_check
          %p428 = pneg %p98
        $region58: #{decoder_layer.3} parent=47 // pred_check_branch
          %430 = sbr.rel (%p428) target = $region60
        $region59: #{decoder_layer.3} parent=47 // pred_region
          %s431 = sand.u32 %s26, 1
          %s432 = scalar_lea.sflag [#allocation6], %s431
          %s433 = sand.u32 %s88, 1
          %s434 = smul.addr %s433, 8
          %s435 = scalar_lea.vmem [#allocation7], %s434
          %437 = vsyncadd %s432, 0
          %s438 = smul.addr %s26, 8
          %s439 = scalar_lea.hbm %s2, %s438
          %s441 = sshll.u32 %s439, 4
          %s442 = int_to_ptr.hbm [resolvable:$true] %s441
          %s443 = sshll.u32 %s435, 4
          %s444 = int_to_ptr.vmem [resolvable:$true] %s443
          %446 = dma.hbm_to_vmem [thread:$0]  %s442, 128, %s444, %s432
        $region60: #{decoder_layer.3} parent=47 // pred_fallthru
          _
      $region48: #{decoder_layer.3} parent=5 // pred_fallthru
        _
      %p447 = scmp.le.s32.totalorder 1, %s26
      %p448 = scmp.lt.s32.totalorder %s26, 3
      %p449 = pnand %p447, %p448
      %p450 = pneg %p449
      // Predicated region
      $region61: #{decoder_layer.3} parent=5 // pred_check
        _
      $region62: #{decoder_layer.3} parent=5 // pred_check_branch
        %452 = sbr.rel (%p449) target = $region64
      $region63: #{decoder_layer.3} parent=5 // pred_region
        %s453 = ssub.s32 %s26, 1
        %s454 = sand.u32 %s39, 1
        %s455 = scalar_lea.sflag [#allocation4], %s454
        %s456 = sand.u32 %s39, 1
        %s457 = smul.addr %s456, 8
        %s458 = scalar_lea.vmem [#allocation3], %s457
        // Predicated region
        $region65: #{decoder_layer.3} parent=63 // pred_check
          %p459 = pneg %p52
        $region66: #{decoder_layer.3} parent=63 // pred_check_branch
          %461 = sbr.rel (%p459) target = $region68
        $region67: #{decoder_layer.3} parent=63 // pred_region
          %463 = dma.done %s455, 128
        $region68: #{decoder_layer.3} parent=63 // pred_fallthru
          _
        %s464 = sand.u32 %s31, 1
        %s465 = scalar_lea.sflag [#allocation6], %s464
        %s466 = sand.u32 %s65, 1
        %s467 = smul.addr %s466, 8
        %s468 = scalar_lea.vmem [#allocation5], %s467
        // Predicated region
        $region69: #{decoder_layer.3} parent=63 // pred_check
          %p469 = pneg %p78
        $region70: #{decoder_layer.3} parent=63 // pred_check_branch
          %471 = sbr.rel (%p469) target = $region72
        $region71: #{decoder_layer.3} parent=63 // pred_region
          %473 = dma.done %s465, 128
        $region72: #{decoder_layer.3} parent=63 // pred_fallthru
          _
        %s474 = sand.u32 %s31, 1
        %s475 = scalar_lea.sflag [#allocation6], %s474
        %s476 = sand.u32 %s91, 1
        %s477 = smul.addr %s476, 8
        %s478 = scalar_lea.vmem [#allocation7], %s477
        // Predicated region
        $region73: #{decoder_layer.3} parent=63 // pred_check
          %p479 = pneg %p104
        $region74: #{decoder_layer.3} parent=63 // pred_check_branch
          %481 = sbr.rel (%p479) target = $region76
        $region75: #{decoder_layer.3} parent=63 // pred_region
          %483 = dma.done %s475, 128
        $region76: #{decoder_layer.3} parent=63 // pred_fallthru
          _
        // Predicated region
        $region77: #{decoder_layer.3} parent=63 // pred_check
          %p484 = pneg %p188
        $region78: #{decoder_layer.3} parent=63 // pred_check_branch
          %486 = sbr.rel (%p484) target = $region80
        $region79: #{decoder_layer.3} parent=63 // pred_region
          %488 = dma.done [#allocation9], 16
        $region80: #{decoder_layer.3} parent=63 // pred_fallthru
          _
        // Predicated region
        $region81: #{decoder_layer.3} parent=63 // pred_check
          %p489 = pneg %p209
        $region82: #{decoder_layer.3} parent=63 // pred_check_branch
          %491 = sbr.rel (%p489) target = $region84
        $region83: #{decoder_layer.3} parent=63 // pred_region
          %493 = dma.done [#allocation9], 256
        $region84: #{decoder_layer.3} parent=63 // pred_fallthru
          _
        // Predicated region
        $region85: #{decoder_layer.3} parent=63 // pred_check
          %p494 = pneg %p230
        $region86: #{decoder_layer.3} parent=63 // pred_check_branch
          %496 = sbr.rel (%p494) target = $region88
        $region87: #{decoder_layer.3} parent=63 // pred_region
          %498 = dma.done [#allocation12], 16
        $region88: #{decoder_layer.3} parent=63 // pred_fallthru
          _
        // Predicated region
        $region89: #{decoder_layer.3} parent=63 // pred_check
          %p499 = pneg %p251
        $region90: #{decoder_layer.3} parent=63 // pred_check_branch
          %501 = sbr.rel (%p499) target = $region92
        $region91: #{decoder_layer.3} parent=63 // pred_region
          %503 = dma.done [#allocation12], 256
        $region92: #{decoder_layer.3} parent=63 // pred_fallthru
          _
        // Predicated region
        $region93: #{decoder_layer.3} parent=63 // pred_check
          %p504 = pneg %p272
        $region94: #{decoder_layer.3} parent=63 // pred_check_branch
          %506 = sbr.rel (%p504) target = $region96
        $region95: #{decoder_layer.3} parent=63 // pred_region
          %508 = dma.done [#allocation15], 16
        $region96: #{decoder_layer.3} parent=63 // pred_fallthru
          _
        %s509 = sand.u32 %s39, 1
        %s510 = scalar_lea.sflag [#allocation4], %s509
        %s511 = sand.u32 %s39, 1
        %s512 = smul.addr %s511, 8
        %s513 = scalar_lea.vmem [#allocation3], %s512
        %p514 = pneg %p52
        %p515 = pneg %p49
        %s516 = sand.u32 %s31, 1
        %s517 = scalar_lea.sflag [#allocation6], %s516
        %s518 = sand.u32 %s65, 1
        %s519 = smul.addr %s518, 8
        %s520 = scalar_lea.vmem [#allocation5], %s519
        %p521 = pneg %p78
        %p522 = pneg %p75
        %s523 = sand.u32 %s31, 1
        %s524 = scalar_lea.sflag [#allocation6], %s523
        %s525 = sand.u32 %s91, 1
        %s526 = smul.addr %s525, 8
        %s527 = scalar_lea.vmem [#allocation7], %s526
        %p528 = pneg %p104
        %p529 = pneg %p101
        %p530 = pneg %p125
        %p531 = pneg %p122
        %p532 = pneg %p146
        %p533 = pneg %p143
        %p534 = pneg %p167
        %p535 = pneg %p164
        %p536 = pneg %p188
        %p537 = pneg %p185
        %p538 = pneg %p209
        %p539 = pneg %p206
        %p540 = pneg %p230
        %p541 = pneg %p227
        %p542 = pneg %p251
        %p543 = pneg %p248
        %p544 = pneg %p272
        %p545 = pneg %p269
        %p546 = pneg %p298
        %p547 = pneg %p295
        %p548 = scmp.lt.s32.totalorder %s31, 1
        %s549 = scalar_select %p548, %s31, 1
        %s550 = smul.addr %s549, 8
        %s551 = scalar_lea.vmem %s11, %s550
        %p552 = scmp.lt.s32.totalorder %s31, 1
        %s553 = scalar_select %p552, %s31, 1
        %s554 = smul.addr %s553, 8
        %s555 = scalar_lea.vmem %s11, %s554
        %v557 = vld [vmem:[%s458] sm:$0xff]
        %v558 = vld [vmem:[%s3] sm:$0x1]
        %v559 = vld [vmem:[%s4] sm:$0x1]
        %vm560 = vcmask 261120
        %v561 = vsel %vm560, %v557, 0.0
        %562 = vadd.xlane.f32.xlu0 %v561
        %v563 = vpop.xlane.xlu0 %562
        %v564 = vrcp.pop 32.0
        %v565 = vmul.f32 32.0, %v564
        %v566 = vsub.f32 1.0, %v565
        %v567 = vmul.f32 %v564, %v566
        %v568 = vadd.f32 %v564, %v567
        %vm569 = vweird.f32 %v564
        %v570 = vsel %vm569, %v564, %v568
        %v571 = vmul.f32 %v563, %v570
        %v572 = vsub.f32 %v557, %v571
        %v573 = vmul.f32 %v572, %v572
        %v574 = vsel %vm560, %v573, 0.0
        %575 = vadd.xlane.f32.xlu0 %v574
        %v576 = vpop.xlane.xlu0 %575
        %v577 = vmul.f32 %v576, %v570
        %v578 = vadd.f32 %v577, 1e-06
        %v579 = vrsqrt.pop %v578
        %v580 = vmul.f32 %v579, %v578
        %v581 = vmul.f32 %v580, %v579
        %v582 = vmul.f32 0.5, %v581
        %v583 = vsub.f32 1.5, %v582
        %v584 = vmul.f32 %v579, %v583
        %vm585 = vweird.f32 %v578
        %vm586 = vweird.f32 %v579
        %vm587 = vmor %vm585, %vm586
        %v588 = vsel %vm587, %v579, %v584
        %v589 = vmul.f32 %v572, %v588
        %v591 = vperm.slane %v558, 0
        %v593 = vmul.f32 %v589, %v591
        %v595 = vperm.slane %v559, 0
        %v597 = vadd.f32 %v593, %v595
        %v598 = vpack.c.bf16 %v597, %v597
        %v599 = vld [vmem:[%s5] sm:$0xf]
        %v600 = vld [vmem:[%s5 + $0x4] sm:$0xf]
        %v601 = vld [vmem:[%s5 + $0x8] sm:$0xf]
        %v602 = vld [vmem:[%s5 + $0xc] sm:$0xf]
        %v603 = vld [vmem:[#allocation8] sm:$0x1]
        %v605 = vperm.slane %v603, 0
        %v611 = vunpack.c.l.b16 %v599
        %v612 = vunpack.c.l.b16 %v600
        %v613 = vunpack.c.l.b16 %v601
        %v614 = vunpack.c.l.b16 %v602
        %v615 = vpack.c.b16 %v612, %v611
        %v616 = vpack.c.b16 %v614, %v613
        %v620 = vsel %vm560, %v598, 0
        %622 = vmatpush.bf16.msra.mxu0 0
        %623 = vmatpush.bf16.msra.mxu0 0
        %624 = vmatpush.bf16.msra.mxu0 0
        %625 = vmatpush.bf16.msra.mxu0 0
        %626 = vmatpush.bf16.msra.mxu0 0
        %627 = vmatpush.bf16.msra.mxu0 0
        %628 = vmatpush.bf16.msra.mxu0 %v616
        %629 = vmatpush.bf16.msra.mxu0 %v615
        %630 = vmatmul.bf16.gmra.mxu0 %v620
        %v631 = vpop.f32.mrf.mxu0
        %v632 = vadd.f32 %v605, %v631
        %v633 = vpop.f32.mrf.mxu0
        %634 = vdwg.mxu0
        %v635 = vld [vmem:[#allocation10] sm:$0xf]
        %v636 = vld [vmem:[#allocation10 + $0x4] sm:$0xf]
        %v637 = vld [vmem:[#allocation10 + $0x8] sm:$0xf]
        %v638 = vld [vmem:[#allocation10 + $0xc] sm:$0xf]
        %v639 = vld [vmem:[#allocation11] sm:$0x1]
        %v641 = vperm.slane %v639, 0
        %v647 = vunpack.c.l.b16 %v635
        %v648 = vunpack.c.l.b16 %v636
        %v649 = vunpack.c.l.b16 %v637
        %v650 = vunpack.c.l.b16 %v638
        %v651 = vpack.c.b16 %v648, %v647
        %v652 = vpack.c.b16 %v650, %v649
        %655 = vmatpush.bf16.msra.mxu0 0
        %656 = vmatpush.bf16.msra.mxu0 0
        %657 = vmatpush.bf16.msra.mxu0 0
        %658 = vmatpush.bf16.msra.mxu0 0
        %659 = vmatpush.bf16.msra.mxu0 0
        %660 = vmatpush.bf16.msra.mxu0 0
        %661 = vmatpush.bf16.msra.mxu0 %v652
        %662 = vmatpush.bf16.msra.mxu0 %v651
        %663 = vmatmul.bf16.gmra.mxu0 %v620
        %v664 = vpop.f32.mrf.mxu0
        %v665 = vadd.f32 %v641, %v664
        %v666 = vpop.f32.mrf.mxu0
        %667 = vdwg.mxu0
        %v668 = vld [vmem:[%s478] sm:$0xff]
        %v669 = vpack.c.bf16 %v632, %v632
        %v670 = vpack.c.bf16 %v665, %v665
        %vm671 = vcmask 64512
        %v673 = vsel %vm671, %v669, 0
        %v676 = vsel %vm671, %v670, 0
        %678 = vmatpush.bf16.xpose.msra.mxu0 0
        %679 = vmatpush.bf16.xpose.msra.mxu0 0
        %680 = vmatpush.bf16.xpose.msra.mxu0 0
        %681 = vmatpush.bf16.xpose.msra.mxu0 0
        %682 = vmatpush.bf16.xpose.msra.mxu0 0
        %683 = vmatpush.bf16.xpose.msra.mxu0 0
        %684 = vmatpush.bf16.xpose.msra.mxu0 0
        %685 = vmatpush.bf16.xpose.msra.mxu0 %v676
        %686 = vmatmul.bf16.gmra.mxu0 %v673
        %v687 = vpop.f32.mrf.mxu0
        %v688 = vadd.f32 0.0, %v687
        %v689 = vpop.f32.mrf.mxu0
        %690 = vdwg.mxu0
        %v691 = vmul.f32 %v688, 0.35355338
        %vm692 = vcmp.eq.f32.partialorder %v668, 0.0
        %v693 = vsel %vm692, -1e+09, %v691
        %v694 = vsel %vm671, %v693, -inf
        %695 = vmax.xlane.f32.xlu0 %v694
        %v696 = vpop.xlane.xlu0 %695
        %v697 = vsub.f32 %v693, %v696
        %v698 = vmul.f32 %v697, 1.442695
        %v699 = vpow.pop %v698
        %v700 = vsel %vm671, %v699, 0.0
        %701 = vadd.xlane.f32.xlu0 %v700
        %v702 = vpop.xlane.xlu0 %701
        %v703 = vrcp.pop %v702
        %v704 = vmul.f32 %v699, %v703
        %v705 = vpack.c.bf16 %v704, %v704
        %v707 = vunpack.c.l.b16 %v670
        %v708 = vpack.c.b16 %v707, %v707
        %709 = vrot.lane.b32.xlu0 %v708, 96
        %v710 = vpop.permute.xlu0 %709
        %v712 = vsel %vm671, %v705, 0
        %vm714 = vcmask 1043456
        %v716 = vsel %vm714, %v710, 0
        %718 = vmatpush.bf16.msra.mxu0 0
        %719 = vmatpush.bf16.msra.mxu0 0
        %720 = vmatpush.bf16.msra.mxu0 0
        %721 = vmatpush.bf16.msra.mxu0 0
        %722 = vmatpush.bf16.msra.mxu0 0
        %723 = vmatpush.bf16.msra.mxu0 0
        %724 = vmatpush.bf16.msra.mxu0 0
        %725 = vmatpush.bf16.msra.mxu0 %v716
        %726 = vmatmul.bf16.gmra.mxu0 %v712
        %v727 = vpop.f32.mrf.mxu0
        %v728 = vadd.f32 0.0, %v727
        %v729 = vpop.f32.mrf.mxu0
        %730 = vdwg.mxu0
        %731 = vst.msk [vmem:[#allocation2] sm:$0xff] %vm671, %v728
        %v733 = vunpack.c.l.b16 %v669
        %v734 = vpack.c.b16 %v733, %v733
        %735 = vrot.lane.b32.xlu0 %v734, 120
        %v736 = vpop.permute.xlu0 %735
        %737 = vrot.lane.b32.xlu0 %v708, 120
        %v738 = vpop.permute.xlu0 %737
        %v740 = vsel %vm671, %v736, 0
        %v743 = vsel %vm671, %v738, 0
        %745 = vmatpush.bf16.xpose.msra.mxu0 0
        %746 = vmatpush.bf16.xpose.msra.mxu0 0
        %747 = vmatpush.bf16.xpose.msra.mxu0 0
        %748 = vmatpush.bf16.xpose.msra.mxu0 0
        %749 = vmatpush.bf16.xpose.msra.mxu0 0
        %750 = vmatpush.bf16.xpose.msra.mxu0 0
        %751 = vmatpush.bf16.xpose.msra.mxu0 0
        %752 = vmatpush.bf16.xpose.msra.mxu0 %v743
        %753 = vmatmul.bf16.gmra.mxu0 %v740
        %v754 = vpop.f32.mrf.mxu0
        %v755 = vadd.f32 0.0, %v754
        %v756 = vpop.f32.mrf.mxu0
        %757 = vdwg.mxu0
        %v758 = vmul.f32 %v755, 0.35355338
        %v759 = vsel %vm692, -1e+09, %v758
        %v760 = vsel %vm671, %v759, -inf
        %761 = vmax.xlane.f32.xlu0 %v760
        %v762 = vpop.xlane.xlu0 %761
        %v763 = vsub.f32 %v759, %v762
        %v764 = vmul.f32 %v763, 1.442695
        %v765 = vpow.pop %v764
        %v766 = vsel %vm671, %v765, 0.0
        %767 = vadd.xlane.f32.xlu0 %v766
        %v768 = vpop.xlane.xlu0 %767
        %v769 = vrcp.pop %v768
        %v770 = vmul.f32 %v765, %v769
        %v771 = vpack.c.bf16 %v770, %v770
        %772 = vrot.lane.b32.xlu0 %v708, 88
        %v773 = vpop.permute.xlu0 %772
        %v775 = vsel %vm671, %v771, 0
        %v778 = vsel %vm714, %v773, 0
        %780 = vmatpush.bf16.msra.mxu0 0
        %781 = vmatpush.bf16.msra.mxu0 0
        %782 = vmatpush.bf16.msra.mxu0 0
        %783 = vmatpush.bf16.msra.mxu0 0
        %784 = vmatpush.bf16.msra.mxu0 0
        %785 = vmatpush.bf16.msra.mxu0 0
        %786 = vmatpush.bf16.msra.mxu0 0
        %787 = vmatpush.bf16.msra.mxu0 %v778
        %788 = vmatmul.bf16.gmra.mxu0 %v775
        %v789 = vpop.f32.mrf.mxu0
        %v790 = vadd.f32 0.0, %v789
        %v791 = vpop.f32.mrf.mxu0
        %792 = vdwg.mxu0
        %794 = vrot.lane.b32.xlu0 %v790, 8
        %v795 = vpop.permute.xlu0 %794
        %vm797 = vcmask 130112
        %798 = vst.msk [vmem:[#allocation2] sm:$0xff] %vm797, %v795
        %799 = vrot.lane.b32.xlu0 %v734, 112
        %v800 = vpop.permute.xlu0 %799
        %801 = vrot.lane.b32.xlu0 %v708, 112
        %v802 = vpop.permute.xlu0 %801
        %v804 = vsel %vm671, %v800, 0
        %v807 = vsel %vm671, %v802, 0
        %809 = vmatpush.bf16.xpose.msra.mxu0 0
        %810 = vmatpush.bf16.xpose.msra.mxu0 0
        %811 = vmatpush.bf16.xpose.msra.mxu0 0
        %812 = vmatpush.bf16.xpose.msra.mxu0 0
        %813 = vmatpush.bf16.xpose.msra.mxu0 0
        %814 = vmatpush.bf16.xpose.msra.mxu0 0
        %815 = vmatpush.bf16.xpose.msra.mxu0 0
        %816 = vmatpush.bf16.xpose.msra.mxu0 %v807
        %817 = vmatmul.bf16.gmra.mxu0 %v804
        %v818 = vpop.f32.mrf.mxu0
        %v819 = vadd.f32 0.0, %v818
        %v820 = vpop.f32.mrf.mxu0
        %821 = vdwg.mxu0
        %v822 = vmul.f32 %v819, 0.35355338
        %v823 = vsel %vm692, -1e+09, %v822
        %v824 = vsel %vm671, %v823, -inf
        %825 = vmax.xlane.f32.xlu0 %v824
        %v826 = vpop.xlane.xlu0 %825
        %v827 = vsub.f32 %v823, %v826
        %v828 = vmul.f32 %v827, 1.442695
        %v829 = vpow.pop %v828
        %v830 = vsel %vm671, %v829, 0.0
        %831 = vadd.xlane.f32.xlu0 %v830
        %v832 = vpop.xlane.xlu0 %831
        %v833 = vrcp.pop %v832
        %v834 = vmul.f32 %v829, %v833
        %v835 = vpack.c.bf16 %v834, %v834
        %836 = vrot.lane.b32.xlu0 %v708, 80
        %v837 = vpop.permute.xlu0 %836
        %v839 = vsel %vm671, %v835, 0
        %v842 = vsel %vm714, %v837, 0
        %844 = vmatpush.bf16.msra.mxu0 0
        %845 = vmatpush.bf16.msra.mxu0 0
        %846 = vmatpush.bf16.msra.mxu0 0
        %847 = vmatpush.bf16.msra.mxu0 0
        %848 = vmatpush.bf16.msra.mxu0 0
        %849 = vmatpush.bf16.msra.mxu0 0
        %850 = vmatpush.bf16.msra.mxu0 0
        %851 = vmatpush.bf16.msra.mxu0 %v842
        %852 = vmatmul.bf16.gmra.mxu0 %v839
        %v853 = vpop.f32.mrf.mxu0
        %v854 = vadd.f32 0.0, %v853
        %v855 = vpop.f32.mrf.mxu0
        %856 = vdwg.mxu0
        %858 = vrot.lane.b32.xlu0 %v854, 16
        %v859 = vpop.permute.xlu0 %858
        %vm861 = vcmask 195712
        %862 = vst.msk [vmem:[#allocation2] sm:$0xff] %vm861, %v859
        %863 = vrot.lane.b32.xlu0 %v734, 104
        %v864 = vpop.permute.xlu0 %863
        %865 = vrot.lane.b32.xlu0 %v708, 104
        %v866 = vpop.permute.xlu0 %865
        %v868 = vsel %vm671, %v864, 0
        %v871 = vsel %vm671, %v866, 0
        %873 = vmatpush.bf16.xpose.msra.mxu0 0
        %874 = vmatpush.bf16.xpose.msra.mxu0 0
        %875 = vmatpush.bf16.xpose.msra.mxu0 0
        %876 = vmatpush.bf16.xpose.msra.mxu0 0
        %877 = vmatpush.bf16.xpose.msra.mxu0 0
        %878 = vmatpush.bf16.xpose.msra.mxu0 0
        %879 = vmatpush.bf16.xpose.msra.mxu0 0
        %880 = vmatpush.bf16.xpose.msra.mxu0 %v871
        %881 = vmatmul.bf16.gmra.mxu0 %v868
        %v882 = vpop.f32.mrf.mxu0
        %v883 = vadd.f32 0.0, %v882
        %v884 = vpop.f32.mrf.mxu0
        %885 = vdwg.mxu0
        %v886 = vmul.f32 %v883, 0.35355338
        %v887 = vsel %vm692, -1e+09, %v886
        %v888 = vsel %vm671, %v887, -inf
        %889 = vmax.xlane.f32.xlu0 %v888
        %v890 = vpop.xlane.xlu0 %889
        %v891 = vsub.f32 %v887, %v890
        %v892 = vmul.f32 %v891, 1.442695
        %v893 = vpow.pop %v892
        %v894 = vsel %vm671, %v893, 0.0
        %895 = vadd.xlane.f32.xlu0 %v894
        %v896 = vpop.xlane.xlu0 %895
        %v897 = vrcp.pop %v896
        %v898 = vmul.f32 %v893, %v897
        %v899 = vpack.c.bf16 %v898, %v898
        %900 = vrot.lane.b32.xlu0 %v708, 72
        %v901 = vpop.permute.xlu0 %900
        %v903 = vsel %vm671, %v899, 0
        %v906 = vsel %vm714, %v901, 0
        %908 = vmatpush.bf16.msra.mxu0 0
        %909 = vmatpush.bf16.msra.mxu0 0
        %910 = vmatpush.bf16.msra.mxu0 0
        %911 = vmatpush.bf16.msra.mxu0 0
        %912 = vmatpush.bf16.msra.mxu0 0
        %913 = vmatpush.bf16.msra.mxu0 0
        %914 = vmatpush.bf16.msra.mxu0 0
        %915 = vmatpush.bf16.msra.mxu0 %v906
        %916 = vmatmul.bf16.gmra.mxu0 %v903
        %v917 = vpop.f32.mrf.mxu0
        %v918 = vadd.f32 0.0, %v917
        %v919 = vpop.f32.mrf.mxu0
        %920 = vdwg.mxu0
        %922 = vrot.lane.b32.xlu0 %v918, 24
        %v923 = vpop.permute.xlu0 %922
        %vm925 = vcmask 261312
        %926 = vst.msk [vmem:[#allocation2] sm:$0xff] %vm925, %v923
        %v927 = vld [vmem:[#allocation2] sm:$0xff]
        %v928 = vpack.c.bf16 %v927, %v927
        %v929 = vld [vmem:[#allocation13] sm:$0xf]
        %v930 = vld [vmem:[#allocation13 + $0x4] sm:$0xf]
        %v931 = vld [vmem:[#allocation13 + $0x8] sm:$0xf]
        %v932 = vld [vmem:[#allocation13 + $0xc] sm:$0xf]
        %v933 = vld [vmem:[#allocation14] sm:$0x1]
        %v935 = vperm.slane %v933, 0
        %v941 = vunpack.c.l.b16 %v929
        %v942 = vunpack.c.l.b16 %v930
        %v943 = vunpack.c.l.b16 %v931
        %v944 = vunpack.c.l.b16 %v932
        %v945 = vpack.c.b16 %v942, %v941
        %v946 = vpack.c.b16 %v944, %v943
        %v950 = vsel %vm560, %v928, 0
        %952 = vmatpush.bf16.msra.mxu0 0
        %953 = vmatpush.bf16.msra.mxu0 0
        %954 = vmatpush.bf16.msra.mxu0 0
        %955 = vmatpush.bf16.msra.mxu0 0
        %956 = vmatpush.bf16.msra.mxu0 0
        %957 = vmatpush.bf16.msra.mxu0 0
        %958 = vmatpush.bf16.msra.mxu0 %v946
        %959 = vmatpush.bf16.msra.mxu0 %v945
        %960 = vmatmul.bf16.gmra.mxu0 %v950
        %v961 = vpop.f32.mrf.mxu0
        %v962 = vadd.f32 %v935, %v961
        %v963 = vpop.f32.mrf.mxu0
        %964 = vdwg.mxu0
        %v965 = vadd.f32 %v557, %v962
        %966 = vst.msk [vmem:[%s555] sm:$0xff] %vm560, %v965
        %p967 = scmp.lt.s32.totalorder %s31, 1
        %s968 = scalar_select %p967, %s31, 1
        %s969 = smul.addr %s968, 8
        %s970 = scalar_lea.vmem %s11, %s969
        // Predicated region
        $region97: #{decoder_layer.3} parent=63 // pred_check
          %p971 = pneg %p295
        $region98: #{decoder_layer.3} parent=63 // pred_check_branch
          %973 = sbr.rel (%p971) target = $region100
        $region99: #{decoder_layer.3} parent=63 // pred_region
          _
        $region100: #{decoder_layer.3} parent=63 // pred_fallthru
          _
      $region64: #{decoder_layer.3} parent=5 // pred_fallthru
        _
      %p974 = scmp.le.s32.totalorder 2, %s26
      // Predicated region
      $region101: #{decoder_layer.3} parent=5 // pred_check
        %p975 = pneg %p974
      $region102: #{decoder_layer.3} parent=5 // pred_check_branch
        %977 = sbr.rel (%p975) target = $region104
      $region103: #{decoder_layer.3} parent=5 // pred_region
        %s978 = ssub.s32 %s26, 2
        // Predicated region
        $region105: #{decoder_layer.3} parent=103 // pred_check
          %p979 = pneg %p301
        $region106: #{decoder_layer.3} parent=103 // pred_check_branch
          %981 = sbr.rel (%p979) target = $region108
        $region107: #{decoder_layer.3} parent=103 // pred_region
          %p982 = scmp.lt.s32.totalorder %s32, 1
          %s983 = scalar_select %p982, %s32, 1
          %s984 = smul.addr %s983, 8
          %s985 = scalar_lea.vmem %s11, %s984
        $region108: #{decoder_layer.3} parent=103 // pred_fallthru
          _
      $region104: #{decoder_layer.3} parent=5 // pred_fallthru
        _
    $region6: #{decoder_layer.3} parent=1 // loop_footer
      %s30 = sadd.s32 1, %s26
    $region7: #{decoder_layer.3} parent=1 // loop_footer_branch
      %25 = sbr.rel target = $region3
    $region8: #{decoder_layer.3} parent=1 // loop_exit
      _
    %986 = vsyncpa [#allocation4], 1
    %s987 = scalar_lea.sflag [#allocation4], 1
    %988 = vsyncpa %s987, 1
    %989 = vsyncpa [#allocation6], 1
    %s990 = scalar_lea.sflag [#allocation6], 1
    %991 = vsyncpa %s990, 1
    %992 = vsyncpa [#allocation9], 1
    %993 = vsyncpa [#allocation12], 1
    %994 = vsyncpa [#allocation15], 1

// kernel: decoder_layer.5
$region0: #{decoder_layer.5}
  #allocation0 [shape = 'u32[]', space=smem, size = 0x4, offset = 0x4, fixed_abs, tag = 'smem constant byte address 0x4 - core index']
  #allocation1 [shape = 'u32[72,128]{1,0:T(1,128)}', space=vmem, size = 0x9000, scoped, tag = 'internal scratch']
  %s0 = inlined_call_operand.vmem [shape: f32[16,32], index: 0, kind: input, shape index: {}]
  %s1 = inlined_call_operand.vmem [shape: f32[1,32], index: 1, kind: input, shape index: {}]
  %s2 = inlined_call_operand.vmem [shape: f32[1,32], index: 2, kind: input, shape index: {}]
  %s3 = inlined_call_operand.vmem [shape: bf16[32,64], index: 3, kind: input, shape index: {}]
  %s4 = inlined_call_operand.vmem [shape: f32[1,64], index: 4, kind: input, shape index: {}]
  %s5 = inlined_call_operand.vmem [shape: bf16[64,32], index: 5, kind: input, shape index: {}]
  %s6 = inlined_call_operand.vmem [shape: f32[1,32], index: 6, kind: input, shape index: {}]
  %s7 = inlined_call_operand.hbm [shape: f32[16,32], index: 7, kind: output, shape index: {}]
  %s8 = sld [smem:[#allocation0]]
  $region38: #{decoder_layer.5} parent=0
    _
  %s10 = ssub.s32 1, %s8
  %s11 = scalar_select 0, %s10, %s8
  $region1: #{decoder_layer.5} parent=0
    #allocation2 [shape = 'u8[8192]{0}', space=vmem, size = 0x2000, scoped, tag = 'output window, operand 0, single buffered']
    #allocation3 [shape = 's32[1]{0}', space=sflag, size = 0x4, scoped, tag = 'scoped memory for decoder_layer.5']
    %12 = vsyncpa [#allocation3], 0
    // Predicated region
    $region2: #{decoder_layer.5} parent=1 // pred_check
      _
    $region3: #{decoder_layer.5} parent=1 // pred_check_branch
      %14 = sbr.rel (0) target = $region5
    $region4: #{decoder_layer.5} parent=1 // pred_region
      _
    $region5: #{decoder_layer.5} parent=1 // pred_fallthru
      _
    // Predicated region
    $region6: #{decoder_layer.5} parent=1 // pred_check
      _
    $region7: #{decoder_layer.5} parent=1 // pred_check_branch
      %16 = sbr.rel (0) target = $region9
    $region8: #{decoder_layer.5} parent=1 // pred_region
      _
    $region9: #{decoder_layer.5} parent=1 // pred_fallthru
      _
    // Predicated region
    $region10: #{decoder_layer.5} parent=1 // pred_check
      _
    $region11: #{decoder_layer.5} parent=1 // pred_check_branch
      %18 = sbr.rel (0) target = $region13
    $region12: #{decoder_layer.5} parent=1 // pred_region
      _
    $region13: #{decoder_layer.5} parent=1 // pred_fallthru
      _
    // Predicated region
    $region14: #{decoder_layer.5} parent=1 // pred_check
      _
    $region15: #{decoder_layer.5} parent=1 // pred_check_branch
      %20 = sbr.rel (0) target = $region17
    $region16: #{decoder_layer.5} parent=1 // pred_region
      _
    $region17: #{decoder_layer.5} parent=1 // pred_fallthru
      _
    // Predicated region
    $region18: #{decoder_layer.5} parent=1 // pred_check
      _
    $region19: #{decoder_layer.5} parent=1 // pred_check_branch
      %22 = sbr.rel (0) target = $region21
    $region20: #{decoder_layer.5} parent=1 // pred_region
      _
    $region21: #{decoder_layer.5} parent=1 // pred_fallthru
      _
    // Predicated region
    $region22: #{decoder_layer.5} parent=1 // pred_check
      _
    $region23: #{decoder_layer.5} parent=1 // pred_check_branch
      %24 = sbr.rel (0) target = $region25
    $region24: #{decoder_layer.5} parent=1 // pred_region
      _
    $region25: #{decoder_layer.5} parent=1 // pred_fallthru
      _
    // Predicated region
    $region26: #{decoder_layer.5} parent=1 // pred_check
      _
    $region27: #{decoder_layer.5} parent=1 // pred_check_branch
      %26 = sbr.rel (0) target = $region29
    $region28: #{decoder_layer.5} parent=1 // pred_region
      _
    $region29: #{decoder_layer.5} parent=1 // pred_fallthru
      _
    %v28 = vld [vmem:[%s0] sm:$0xff]
    %v29 = vld [vmem:[%s0 + $0x8] sm:$0xff]
    %v30 = vld [vmem:[%s1] sm:$0x1]
    %v31 = vld [vmem:[%s2] sm:$0x1]
    %vm32 = vcmask 261120
    %v33 = vsel %vm32, %v28, 0.0
    %34 = vadd.xlane.f32.xlu0 %v33
    %v35 = vpop.xlane.xlu0 %34
    %v36 = vsel %vm32, %v29, 0.0
    %37 = vadd.xlane.f32.xlu0 %v36
    %v38 = vpop.xlane.xlu0 %37
    %v39 = vrcp.pop 32.0
    %v40 = vmul.f32 32.0, %v39
    %v41 = vsub.f32 1.0, %v40
    %v42 = vmul.f32 %v39, %v41
    %v43 = vadd.f32 %v39, %v42
    %vm44 = vweird.f32 %v39
    %v45 = vsel %vm44, %v39, %v43
    %v46 = vmul.f32 %v35, %v45
    %v47 = vmul.f32 %v38, %v45
    %v48 = vsub.f32 %v28, %v46
    %v49 = vsub.f32 %v29, %v47
    %v50 = vmul.f32 %v48, %v48
    %v51 = vmul.f32 %v49, %v49
    %v52 = vsel %vm32, %v50, 0.0
    %53 = vadd.xlane.f32.xlu0 %v52
    %v54 = vpop.xlane.xlu0 %53
    %v55 = vsel %vm32, %v51, 0.0
    %56 = vadd.xlane.f32.xlu0 %v55
    %v57 = vpop.xlane.xlu0 %56
    %v58 = vmul.f32 %v54, %v45
    %v59 = vmul.f32 %v57, %v45
    %v60 = vadd.f32 %v58, 1e-06
    %v61 = vadd.f32 %v59, 1e-06
    %v62 = vrsqrt.pop %v60
    %v63 = vmul.f32 %v62, %v60
    %v64 = vmul.f32 %v63, %v62
    %v65 = vmul.f32 0.5, %v64
    %v66 = vsub.f32 1.5, %v65
    %v67 = vmul.f32 %v62, %v66
    %vm68 = vweird.f32 %v60
    %vm69 = vweird.f32 %v62
    %vm70 = vmor %vm68, %vm69
    %v71 = vsel %vm70, %v62, %v67
    %v72 = vrsqrt.pop %v61
    %v73 = vmul.f32 %v72, %v61
    %v74 = vmul.f32 %v73, %v72
    %v75 = vmul.f32 0.5, %v74
    %v76 = vsub.f32 1.5, %v75
    %v77 = vmul.f32 %v72, %v76
    %vm78 = vweird.f32 %v61
    %vm79 = vweird.f32 %v72
    %vm80 = vmor %vm78, %vm79
    %v81 = vsel %vm80, %v72, %v77
    %v82 = vmul.f32 %v48, %v71
    %v83 = vmul.f32 %v49, %v81
    %v85 = vperm.slane %v30, 0
    %v87 = vmul.f32 %v82, %v85
    %v88 = vmul.f32 %v83, %v85
    %v90 = vperm.slane %v31, 0
    %v92 = vadd.f32 %v87, %v90
    %v93 = vadd.f32 %v88, %v90
    %v94 = vpack.c.bf16 %v93, %v92
    %v95 = vld [vmem:[%s3] sm:$0xf]
    %v96 = vld [vmem:[%s3 + $0x4] sm:$0xf]
    %v97 = vld [vmem:[%s3 + $0x8] sm:$0xf]
    %v98 = vld [vmem:[%s3 + $0xc] sm:$0xf]
    %v99 = vld [vmem:[%s4] sm:$0x1]
    %v101 = vperm.slane %v99, 0
    %v107 = vunpack.c.l.b16 %v95
    %v108 = vunpack.c.l.b16 %v96
    %v109 = vunpack.c.l.b16 %v97
    %v110 = vunpack.c.l.b16 %v98
    %v111 = vpack.c.b16 %v108, %v107
    %v112 = vpack.c.b16 %v110, %v109
    %v116 = vsel %vm32, %v94, 0
    %118 = vmatpush.bf16.msra.mxu0 0
    %119 = vmatpush.bf16.msra.mxu0 0
    %120 = vmatpush.bf16.msra.mxu0 0
    %121 = vmatpush.bf16.msra.mxu0 0
    %122 = vmatpush.bf16.msra.mxu0 0
    %123 = vmatpush.bf16.msra.mxu0 0
    %124 = vmatpush.bf16.msra.mxu0 %v112
    %125 = vmatpush.bf16.msra.mxu0 %v111
    %126 = vmatmul.bf16.gmra.mxu0 %v116
    %v127 = vpop.f32.mrf.mxu0
    %v128 = vadd.f32 %v101, %v127
    %v129 = vpop.f32.mrf.mxu0
    %v130 = vadd.f32 %v101, %v129
    %131 = vdwg.mxu0
    %v132 = vmax.f32 %v128, 0.0
    %v133 = vmax.f32 %v130, 0.0
    %v134 = vpack.c.bf16 %v133, %v132
    %v135 = vld [vmem:[%s5] sm:$0xf]
    %v136 = vld [vmem:[%s5 + $0x4] sm:$0xf]
    %v137 = vld [vmem:[%s5 + $0x8] sm:$0xf]
    %v138 = vld [vmem:[%s5 + $0xc] sm:$0xf]
    %v139 = vld [vmem:[%s5 + $0x10] sm:$0xf]
    %v140 = vld [vmem:[%s5 + $0x14] sm:$0xf]
    %v141 = vld [vmem:[%s5 + $0x18] sm:$0xf]
    %v142 = vld [vmem:[%s5 + $0x1c] sm:$0xf]
    %v143 = vld [vmem:[%s6] sm:$0x1]
    %v145 = vperm.slane %v143, 0
    %v155 = vunpack.c.l.b16 %v135
    %v156 = vunpack.c.l.b16 %v136
    %v157 = vunpack.c.l.b16 %v137
    %v158 = vunpack.c.l.b16 %v138
    %v159 = vunpack.c.l.b16 %v139
    %v160 = vunpack.c.l.b16 %v140
    %v161 = vunpack.c.l.b16 %v141
    %v162 = vunpack.c.l.b16 %v142
    %v163 = vpack.c.b16 %v156, %v155
    %v164 = vpack.c.b16 %v158, %v157
    %v165 = vpack.c.b16 %v160, %v159
    %v166 = vpack.c.b16 %v162, %v161
    %vm171 = vcmask 523264
    %v173 = vsel %vm171, %v134, 0
    %175 = vmatpush.bf16.msra.mxu0 0
    %176 = vmatpush.bf16.msra.mxu0 0
    %177 = vmatpush.bf16.msra.mxu0 0
    %178 = vmatpush.bf16.msra.mxu0 0
    %179 = vmatpush.bf16.msra.mxu0 %v166
    %180 = vmatpush.bf16.msra.mxu0 %v165
    %181 = vmatpush.bf16.msra.mxu0 %v164
    %182 = vmatpush.bf16.msra.mxu0 %v163
    %183 = vmatmul.bf16.gmra.mxu0 %v173
    %v184 = vpop.f32.mrf.mxu0
    %v185 = vadd.f32 %v145, %v184
    %v186 = vpop.f32.mrf.mxu0
    %v187 = vadd.f32 %v145, %v186
    %188 = vdwg.mxu0
    %v189 = vadd.f32 %v28, %v185
    %v190 = vadd.f32 %v29, %v187
    %191 = vst.msk [vmem:[#allocation2] sm:$0xff] %vm32, %v189
    %192 = vst.msk [vmem:[#allocation2 + $0x8] sm:$0xff] %vm32, %v190
    // Predicated region
    $region30: #{decoder_layer.5} parent=1 // pred_check
      _
    $region31: #{decoder_layer.5} parent=1 // pred_check_branch
      %194 = sbr.rel (0) target = $region33
    $region32: #{decoder_layer.5} parent=1 // pred_region
      %196 = vsyncadd [#allocation3], 0
      %s197 = sshll.u32 [#allocation2], 4
      %s198 = int_to_ptr.vmem [resolvable:$true] %s197
      %s199 = sshll.u32 %s7, 4
      %s200 = int_to_ptr.hbm [resolvable:$true] %s199
      %205 = dma.vmem_to_hbm [thread:$0]  %s198, 256, %s200, [#allocation3], 128, 128, 8
    $region33: #{decoder_layer.5} parent=1 // pred_fallthru
      _
    // Predicated region
    $region34: #{decoder_layer.5} parent=1 // pred_check
      _
    $region35: #{decoder_layer.5} parent=1 // pred_check_branch
      %207 = sbr.rel (0) target = $region37
    $region36: #{decoder_layer.5} parent=1 // pred_region
      %209 = dma.done [#allocation3], 256
    $region37: #{decoder_layer.5} parent=1 // pred_fallthru
      _
    %210 = vsyncpa [#allocation3], 1

</llo_original>
